<compile_context>
chip_gen: v7x
topology: tpu7x:2x2x1
jax: 0.10.0
libtpu: 0.0.40
codegen_flags: <defaults>
</compile_context>

<pallas_src>
import jax
import jax.numpy as jnp
from jax.experimental import pallas as pl

# ---------------- configuration (small synthetic sizes) ----------------
B = 2        # batch
N = 32       # canonical vertices per batch item
DIM = 3      # point dimensionality
H = 32       # ResnetPointnet hidden_size
OUT = 16     # ShapeEncoder out_dim


# ======================================================================
# Pallas kernel: full ResnetPointnet forward for the whole batch
# ======================================================================
def _resnet_pointnet_kernel(pts_ref, wpos_ref, wblk0_ref, wblk_ref,
                            bblk_ref, wc_ref, bc_ref, out_ref):
    f32 = jnp.float32

    def mm(a, b):
        return jnp.dot(a, b, preferred_element_type=f32)

    def seg_max(v):          # per-batch max over each item's N rows -> (B, W)
        return jnp.concatenate(
            [jnp.max(v[b * N:(b + 1) * N, :], axis=0, keepdims=True)
             for b in range(B)], axis=0)

    def seg_bcast(rows):     # (B, W) -> (B*N, W): row b repeated for segment b
        return jnp.concatenate(
            [jnp.broadcast_to(rows[b:b + 1, :], (N, rows.shape[-1]))
             for b in range(B)], axis=0)

    # fc_pos (bias folded into the trailing ones column of pts)
    net = mm(pts_ref[...], wpos_ref[...])                     # (B*N, 2H)

    # ---- block 0: plain ResnetBlockFC on the 2H-wide fc_pos output ----
    fc0_w = wblk0_ref[0:2 * H, :]                             # (2H, H)
    fc1_w = wblk0_ref[2 * H:3 * H, :]                         # (H, H)
    sc_w = wblk0_ref[3 * H:5 * H, :]                          # (2H, H)
    h = mm(jnp.maximum(net, 0.0), fc0_w) + bblk_ref[0:1, :]
    dx = mm(jnp.maximum(h, 0.0), fc1_w) + bblk_ref[5:6, :]
    net = mm(net, sc_w) + dx                                  # (B*N, H)

    # ---- blocks 1..4: cat([net, pooled]) folded into split weights ----
    for i in range(1, 5):
        r0 = (i - 1) * 5 * H
        w0a = wblk_ref[r0 + 0 * H:r0 + 1 * H, :]   # fc_0 weight, net half
        w0b = wblk_ref[r0 + 1 * H:r0 + 2 * H, :]   # fc_0 weight, pooled half
        w1 = wblk_ref[r0 + 2 * H:r0 + 3 * H, :]    # fc_1 weight
        wsa = wblk_ref[r0 + 3 * H:r0 + 4 * H, :]   # shortcut, net half
        wsb = wblk_ref[r0 + 4 * H:r0 + 5 * H, :]   # shortcut, pooled half

        pooled = seg_max(net)                                 # (B, H)
        # relu(cat) == cat(relu) (elementwise), so the split is exact.
        h = (mm(jnp.maximum(net, 0.0), w0a)
             + seg_bcast(mm(jnp.maximum(pooled, 0.0), w0b))
             + bblk_ref[i:i + 1, :])
        dx = mm(jnp.maximum(h, 0.0), w1) + bblk_ref[5 + i:6 + i, :]
        net = mm(net, wsa) + seg_bcast(mm(pooled, wsb)) + dx  # (B*N, H)

    # final pool + fc_c
    pooled = seg_max(net)                                     # (B, H)
    out_ref[...] = mm(jnp.maximum(pooled, 0.0), wc_ref[...]) + bc_ref[...]


# ======================================================================
# Wrapper: weight packing + single kernel launch
# ======================================================================
def _pack_params(p):
    """Re-pack per-layer (in, out)-layout weights into contiguous arrays."""
    # fc_pos bias folded in as an extra input row (points get a ones column)
    w_pos = jnp.concatenate([p["fc_pos_w"], p["fc_pos_b"][None, :]], axis=0)  # (DIM+1, 2H)
    # block 0 keeps its full 2H-wide weights: [fc_0 ; fc_1 ; shortcut]
    w_blk0 = jnp.concatenate(
        [p["blk_fc0_w"][0], p["blk_fc1_w"][0], p["blk_sc_w"][0]], axis=0)     # (5H, H)
    # blocks 1..4: split the 2H-wide fc_0 / shortcut weights into halves
    rows = []
    for i in range(1, 5):
        rows += [p["blk_fc0_w"][i][:H], p["blk_fc0_w"][i][H:],
                 p["blk_fc1_w"][i],
                 p["blk_sc_w"][i][:H], p["blk_sc_w"][i][H:]]
    w_blk = jnp.concatenate(rows, axis=0)                                      # (20H, H)
    b_blk = jnp.concatenate([p["blk_fc0_b"], p["blk_fc1_b"]], axis=0)          # (10, H)
    w_c = p["fc_c_w"]                                                          # (H, OUT)
    b_c = p["fc_c_b"][None, :]                                                 # (1, OUT)
    return w_pos, w_blk0, w_blk, b_blk, w_c, b_c


def shape_encoder(can_vertices, params):
    """ShapeEncoder.forward: (B, N, 3) canonical vertices -> (B, out_dim)."""
    assert can_vertices.shape == (B, N, DIM)
    w_pos, w_blk0, w_blk, b_blk, w_c, b_c = _pack_params(params)
    pts = jnp.concatenate(
        [can_vertices.astype(jnp.float32), jnp.ones((B, N, 1), jnp.float32)],
        axis=-1).reshape(B * N, DIM + 1)                       # batch stacked on sublanes
    # The whole problem is a few hundred KB: one grid-less pallas_call with every
    # operand fully resident in VMEM (no BlockSpec tiling, no per-batch grid).
    return pl.pallas_call(
        _resnet_pointnet_kernel,
        out_shape=jax.ShapeDtypeStruct((B, OUT), jnp.float32),
    )(pts, w_pos, w_blk0, w_blk, b_blk, w_c, b_c)


# ======================================================================
# Pure-JAX reference (mirrors the PyTorch ResnetPointnet forward)
# ======================================================================
def shape_encoder_reference(can_vertices, p):
    hp = jax.lax.Precision.HIGHEST

    def lin(x, w, b):
        return jnp.dot(x, w, precision=hp) + b

    def block(x, i):
        h = lin(jax.nn.relu(x), p["blk_fc0_w"][i], p["blk_fc0_b"][i])
        dx = lin(jax.nn.relu(h), p["blk_fc1_w"][i], p["blk_fc1_b"][i])
        xs = jnp.dot(x, p["blk_sc_w"][i], precision=hp)
        return xs + dx

    net = lin(can_vertices, p["fc_pos_w"], p["fc_pos_b"])
    net = block(net, 0)
    for i in range(1, 5):
        pooled = jnp.max(net, axis=1, keepdims=True)
        net = block(jnp.concatenate(
            [net, jnp.broadcast_to(pooled, net.shape)], axis=-1), i)
    pooled = jnp.max(net, axis=1)
    return lin(jax.nn.relu(pooled), p["fc_c_w"], p["fc_c_b"])


# ======================================================================
# Deterministic synthetic parameters (matmul (in, out) layout)
# ======================================================================
def init_params(key):
    ks = iter(jax.random.split(key, 9))

    def w(*shape):
        return 0.1 * jax.random.normal(next(ks), shape, jnp.float32)

    return dict(
        fc_pos_w=w(DIM, 2 * H), fc_pos_b=w(2 * H),
        blk_fc0_w=w(5, 2 * H, H), blk_fc0_b=w(5, H),
        blk_fc1_w=w(5, H, H), blk_fc1_b=w(5, H),
        blk_sc_w=w(5, 2 * H, H),
        fc_c_w=w(H, OUT), fc_c_b=w(OUT))


if __name__ == "__main__":
    root_key = jax.random.PRNGKey(0)
    kp, kx = jax.random.split(root_key)
    params = init_params(kp)
    can_vertices = jax.random.normal(kx, (B, N, DIM), jnp.float32)

    out = shape_encoder(can_vertices, params)
    out = jax.block_until_ready(out)

    assert out.shape == (B, OUT), out.shape
    assert bool(jnp.all(jnp.isfinite(out)))
    ref = shape_encoder_reference(can_vertices, params)
    assert bool(jnp.allclose(out, ref, atol=2e-2, rtol=2e-2)), \
        float(jnp.max(jnp.abs(out - ref)))
    print("KERNEL_OK")
</pallas_src>

<mosaic_0001>
module attributes {stable_mosaic.version = 11 : i64} {
  func.func @_resnet_pointnet_kernel(%arg0: memref<64x4xf32, #tpu.memory_space<vmem>>, %arg1: memref<4x64xf32, #tpu.memory_space<vmem>>, %arg2: memref<160x32xf32, #tpu.memory_space<vmem>>, %arg3: memref<640x32xf32, #tpu.memory_space<vmem>>, %arg4: memref<10x32xf32, #tpu.memory_space<vmem>>, %arg5: memref<32x16xf32, #tpu.memory_space<vmem>>, %arg6: memref<1x16xf32, #tpu.memory_space<vmem>>, %arg7: memref<2x16xf32, #tpu.memory_space<vmem>>) attributes {dimension_semantics = [], scalar_prefetch = 0 : i64, scratch_operands = 0 : i64, tpu.core_type = #tpu.core_type<tc>} {
    %c0 = arith.constant 0 : index
    %c0_0 = arith.constant 0 : index
    %0 = vector.load %arg0[%c0, %c0_0] : memref<64x4xf32, #tpu.memory_space<vmem>>, vector<64x4xf32>
    %c0_1 = arith.constant 0 : index
    %c0_2 = arith.constant 0 : index
    %1 = vector.load %arg1[%c0_1, %c0_2] : memref<4x64xf32, #tpu.memory_space<vmem>>, vector<4x64xf32>
    %cst = arith.constant dense<0.000000e+00> : vector<64x64xf32>
    %2 = tpu.matmul %0, %1, %cst {dimension_numbers = #tpu.dot_dimension_numbers<[1], [0], [0], [1], [0, 0, 1, 1], [], []>} : vector<64x4xf32>, vector<4x64xf32>, vector<64x64xf32> -> vector<64x64xf32>
    %c0_3 = arith.constant 0 : index
    %c0_4 = arith.constant 0 : index
    %3 = vector.load %arg2[%c0_3, %c0_4] : memref<160x32xf32, #tpu.memory_space<vmem>>, vector<64x32xf32>
    %c64 = arith.constant 64 : index
    %c0_5 = arith.constant 0 : index
    %4 = vector.load %arg2[%c64, %c0_5] : memref<160x32xf32, #tpu.memory_space<vmem>>, vector<32x32xf32>
    %c96 = arith.constant 96 : index
    %c0_6 = arith.constant 0 : index
    %5 = vector.load %arg2[%c96, %c0_6] : memref<160x32xf32, #tpu.memory_space<vmem>>, vector<64x32xf32>
    %cst_7 = arith.constant 0.000000e+00 : f32
    %6 = vector.broadcast %cst_7 : f32 to vector<64x64xf32>
    %7 = arith.maximumf %2, %6 : vector<64x64xf32>
    %cst_8 = arith.constant dense<0.000000e+00> : vector<64x32xf32>
    %8 = tpu.matmul %7, %3, %cst_8 {dimension_numbers = #tpu.dot_dimension_numbers<[1], [0], [0], [1], [0, 0, 1, 1], [], []>} : vector<64x64xf32>, vector<64x32xf32>, vector<64x32xf32> -> vector<64x32xf32>
    %c0_9 = arith.constant 0 : index
    %c0_10 = arith.constant 0 : index
    %9 = vector.load %arg4[%c0_9, %c0_10] : memref<10x32xf32, #tpu.memory_space<vmem>>, vector<1x32xf32>
    %10 = vector.broadcast %9 : vector<1x32xf32> to vector<64x32xf32>
    %11 = arith.addf %8, %10 : vector<64x32xf32>
    %cst_11 = arith.constant 0.000000e+00 : f32
    %12 = vector.broadcast %cst_11 : f32 to vector<64x32xf32>
    %13 = arith.maximumf %11, %12 : vector<64x32xf32>
    %cst_12 = arith.constant dense<0.000000e+00> : vector<64x32xf32>
    %14 = tpu.matmul %13, %4, %cst_12 {dimension_numbers = #tpu.dot_dimension_numbers<[1], [0], [0], [1], [0, 0, 1, 1], [], []>} : vector<64x32xf32>, vector<32x32xf32>, vector<64x32xf32> -> vector<64x32xf32>
    %c5 = arith.constant 5 : index
    %c0_13 = arith.constant 0 : index
    %15 = vector.load %arg4[%c5, %c0_13] : memref<10x32xf32, #tpu.memory_space<vmem>>, vector<1x32xf32>
    %16 = vector.broadcast %15 : vector<1x32xf32> to vector<64x32xf32>
    %17 = arith.addf %14, %16 : vector<64x32xf32>
    %cst_14 = arith.constant dense<0.000000e+00> : vector<64x32xf32>
    %18 = tpu.matmul %2, %5, %cst_14 {dimension_numbers = #tpu.dot_dimension_numbers<[1], [0], [0], [1], [0, 0, 1, 1], [], []>} : vector<64x64xf32>, vector<64x32xf32>, vector<64x32xf32> -> vector<64x32xf32>
    %19 = arith.addf %18, %17 : vector<64x32xf32>
    %c0_15 = arith.constant 0 : index
    %c0_16 = arith.constant 0 : index
    %20 = vector.load %arg3[%c0_15, %c0_16] : memref<640x32xf32, #tpu.memory_space<vmem>>, vector<32x32xf32>
    %c32 = arith.constant 32 : index
    %c0_17 = arith.constant 0 : index
    %21 = vector.load %arg3[%c32, %c0_17] : memref<640x32xf32, #tpu.memory_space<vmem>>, vector<32x32xf32>
    %c64_18 = arith.constant 64 : index
    %c0_19 = arith.constant 0 : index
    %22 = vector.load %arg3[%c64_18, %c0_19] : memref<640x32xf32, #tpu.memory_space<vmem>>, vector<32x32xf32>
    %c96_20 = arith.constant 96 : index
    %c0_21 = arith.constant 0 : index
    %23 = vector.load %arg3[%c96_20, %c0_21] : memref<640x32xf32, #tpu.memory_space<vmem>>, vector<32x32xf32>
    %c128 = arith.constant 128 : index
    %c0_22 = arith.constant 0 : index
    %24 = vector.load %arg3[%c128, %c0_22] : memref<640x32xf32, #tpu.memory_space<vmem>>, vector<32x32xf32>
    %25 = vector.extract_strided_slice %19 {offsets = [0, 0], sizes = [32, 32], strides = [1, 1]} : vector<64x32xf32> to vector<32x32xf32>
    %cst_23 = arith.constant dense<0xFF800000> : vector<32xf32>
    %26 = vector.multi_reduction <maximumf>, %25, %cst_23 [0] : vector<32x32xf32> to vector<32xf32>
    %27 = vector.shape_cast %26 : vector<32xf32> to vector<1x32xf32>
    %28 = vector.extract_strided_slice %19 {offsets = [32, 0], sizes = [32, 32], strides = [1, 1]} : vector<64x32xf32> to vector<32x32xf32>
    %cst_24 = arith.constant dense<0xFF800000> : vector<32xf32>
    %29 = vector.multi_reduction <maximumf>, %28, %cst_24 [0] : vector<32x32xf32> to vector<32xf32>
    %30 = vector.shape_cast %29 : vector<32xf32> to vector<1x32xf32>
    %31 = tpu.concatenate %27, %30 in 0 : vector<1x32xf32>, vector<1x32xf32> -> vector<2x32xf32>
    %cst_25 = arith.constant 0.000000e+00 : f32
    %32 = vector.broadcast %cst_25 : f32 to vector<64x32xf32>
    %33 = arith.maximumf %19, %32 : vector<64x32xf32>
    %cst_26 = arith.constant dense<0.000000e+00> : vector<64x32xf32>
    %34 = tpu.matmul %33, %20, %cst_26 {dimension_numbers = #tpu.dot_dimension_numbers<[1], [0], [0], [1], [0, 0, 1, 1], [], []>} : vector<64x32xf32>, vector<32x32xf32>, vector<64x32xf32> -> vector<64x32xf32>
    %cst_27 = arith.constant 0.000000e+00 : f32
    %35 = vector.broadcast %cst_27 : f32 to vector<2x32xf32>
    %36 = arith.maximumf %31, %35 : vector<2x32xf32>
    %cst_28 = arith.constant dense<0.000000e+00> : vector<2x32xf32>
    %37 = tpu.matmul %36, %21, %cst_28 {dimension_numbers = #tpu.dot_dimension_numbers<[1], [0], [0], [1], [0, 0, 1, 1], [], []>} : vector<2x32xf32>, vector<32x32xf32>, vector<2x32xf32> -> vector<2x32xf32>
    %38 = vector.extract_strided_slice %37 {offsets = [0, 0], sizes = [1, 32], strides = [1, 1]} : vector<2x32xf32> to vector<1x32xf32>
    %39 = vector.shape_cast %38 : vector<1x32xf32> to vector<1x32xf32>
    %40 = vector.broadcast %39 : vector<1x32xf32> to vector<32x32xf32>
    %41 = vector.extract_strided_slice %37 {offsets = [1, 0], sizes = [1, 32], strides = [1, 1]} : vector<2x32xf32> to vector<1x32xf32>
    %42 = vector.shape_cast %41 : vector<1x32xf32> to vector<1x32xf32>
    %43 = vector.broadcast %42 : vector<1x32xf32> to vector<32x32xf32>
    %44 = tpu.concatenate %40, %43 in 0 : vector<32x32xf32>, vector<32x32xf32> -> vector<64x32xf32>
    %45 = arith.addf %34, %44 : vector<64x32xf32>
    %c1 = arith.constant 1 : index
    %c0_29 = arith.constant 0 : index
    %46 = vector.load %arg4[%c1, %c0_29] : memref<10x32xf32, #tpu.memory_space<vmem>>, vector<1x32xf32>
    %47 = vector.broadcast %46 : vector<1x32xf32> to vector<64x32xf32>
    %48 = arith.addf %45, %47 : vector<64x32xf32>
    %cst_30 = arith.constant 0.000000e+00 : f32
    %49 = vector.broadcast %cst_30 : f32 to vector<64x32xf32>
    %50 = arith.maximumf %48, %49 : vector<64x32xf32>
    %cst_31 = arith.constant dense<0.000000e+00> : vector<64x32xf32>
    %51 = tpu.matmul %50, %22, %cst_31 {dimension_numbers = #tpu.dot_dimension_numbers<[1], [0], [0], [1], [0, 0, 1, 1], [], []>} : vector<64x32xf32>, vector<32x32xf32>, vector<64x32xf32> -> vector<64x32xf32>
    %c6 = arith.constant 6 : index
    %c0_32 = arith.constant 0 : index
    %52 = vector.load %arg4[%c6, %c0_32] : memref<10x32xf32, #tpu.memory_space<vmem>>, vector<1x32xf32>
    %53 = vector.broadcast %52 : vector<1x32xf32> to vector<64x32xf32>
    %54 = arith.addf %51, %53 : vector<64x32xf32>
    %cst_33 = arith.constant dense<0.000000e+00> : vector<64x32xf32>
    %55 = tpu.matmul %19, %23, %cst_33 {dimension_numbers = #tpu.dot_dimension_numbers<[1], [0], [0], [1], [0, 0, 1, 1], [], []>} : vector<64x32xf32>, vector<32x32xf32>, vector<64x32xf32> -> vector<64x32xf32>
    %cst_34 = arith.constant dense<0.000000e+00> : vector<2x32xf32>
    %56 = tpu.matmul %31, %24, %cst_34 {dimension_numbers = #tpu.dot_dimension_numbers<[1], [0], [0], [1], [0, 0, 1, 1], [], []>} : vector<2x32xf32>, vector<32x32xf32>, vector<2x32xf32> -> vector<2x32xf32>
    %57 = vector.extract_strided_slice %56 {offsets = [0, 0], sizes = [1, 32], strides = [1, 1]} : vector<2x32xf32> to vector<1x32xf32>
    %58 = vector.shape_cast %57 : vector<1x32xf32> to vector<1x32xf32>
    %59 = vector.broadcast %58 : vector<1x32xf32> to vector<32x32xf32>
    %60 = vector.extract_strided_slice %56 {offsets = [1, 0], sizes = [1, 32], strides = [1, 1]} : vector<2x32xf32> to vector<1x32xf32>
    %61 = vector.shape_cast %60 : vector<1x32xf32> to vector<1x32xf32>
    %62 = vector.broadcast %61 : vector<1x32xf32> to vector<32x32xf32>
    %63 = tpu.concatenate %59, %62 in 0 : vector<32x32xf32>, vector<32x32xf32> -> vector<64x32xf32>
    %64 = arith.addf %55, %63 : vector<64x32xf32>
    %65 = arith.addf %64, %54 : vector<64x32xf32>
    %c160 = arith.constant 160 : index
    %c0_35 = arith.constant 0 : index
    %66 = vector.load %arg3[%c160, %c0_35] : memref<640x32xf32, #tpu.memory_space<vmem>>, vector<32x32xf32>
    %c192 = arith.constant 192 : index
    %c0_36 = arith.constant 0 : index
    %67 = vector.load %arg3[%c192, %c0_36] : memref<640x32xf32, #tpu.memory_space<vmem>>, vector<32x32xf32>
    %c224 = arith.constant 224 : index
    %c0_37 = arith.constant 0 : index
    %68 = vector.load %arg3[%c224, %c0_37] : memref<640x32xf32, #tpu.memory_space<vmem>>, vector<32x32xf32>
    %c256 = arith.constant 256 : index
    %c0_38 = arith.constant 0 : index
    %69 = vector.load %arg3[%c256, %c0_38] : memref<640x32xf32, #tpu.memory_space<vmem>>, vector<32x32xf32>
    %c288 = arith.constant 288 : index
    %c0_39 = arith.constant 0 : index
    %70 = vector.load %arg3[%c288, %c0_39] : memref<640x32xf32, #tpu.memory_space<vmem>>, vector<32x32xf32>
    %71 = vector.extract_strided_slice %65 {offsets = [0, 0], sizes = [32, 32], strides = [1, 1]} : vector<64x32xf32> to vector<32x32xf32>
    %cst_40 = arith.constant dense<0xFF800000> : vector<32xf32>
    %72 = vector.multi_reduction <maximumf>, %71, %cst_40 [0] : vector<32x32xf32> to vector<32xf32>
    %73 = vector.shape_cast %72 : vector<32xf32> to vector<1x32xf32>
    %74 = vector.extract_strided_slice %65 {offsets = [32, 0], sizes = [32, 32], strides = [1, 1]} : vector<64x32xf32> to vector<32x32xf32>
    %cst_41 = arith.constant dense<0xFF800000> : vector<32xf32>
    %75 = vector.multi_reduction <maximumf>, %74, %cst_41 [0] : vector<32x32xf32> to vector<32xf32>
    %76 = vector.shape_cast %75 : vector<32xf32> to vector<1x32xf32>
    %77 = tpu.concatenate %73, %76 in 0 : vector<1x32xf32>, vector<1x32xf32> -> vector<2x32xf32>
    %cst_42 = arith.constant 0.000000e+00 : f32
    %78 = vector.broadcast %cst_42 : f32 to vector<64x32xf32>
    %79 = arith.maximumf %65, %78 : vector<64x32xf32>
    %cst_43 = arith.constant dense<0.000000e+00> : vector<64x32xf32>
    %80 = tpu.matmul %79, %66, %cst_43 {dimension_numbers = #tpu.dot_dimension_numbers<[1], [0], [0], [1], [0, 0, 1, 1], [], []>} : vector<64x32xf32>, vector<32x32xf32>, vector<64x32xf32> -> vector<64x32xf32>
    %cst_44 = arith.constant 0.000000e+00 : f32
    %81 = vector.broadcast %cst_44 : f32 to vector<2x32xf32>
    %82 = arith.maximumf %77, %81 : vector<2x32xf32>
    %cst_45 = arith.constant dense<0.000000e+00> : vector<2x32xf32>
    %83 = tpu.matmul %82, %67, %cst_45 {dimension_numbers = #tpu.dot_dimension_numbers<[1], [0], [0], [1], [0, 0, 1, 1], [], []>} : vector<2x32xf32>, vector<32x32xf32>, vector<2x32xf32> -> vector<2x32xf32>
    %84 = vector.extract_strided_slice %83 {offsets = [0, 0], sizes = [1, 32], strides = [1, 1]} : vector<2x32xf32> to vector<1x32xf32>
    %85 = vector.shape_cast %84 : vector<1x32xf32> to vector<1x32xf32>
    %86 = vector.broadcast %85 : vector<1x32xf32> to vector<32x32xf32>
    %87 = vector.extract_strided_slice %83 {offsets = [1, 0], sizes = [1, 32], strides = [1, 1]} : vector<2x32xf32> to vector<1x32xf32>
    %88 = vector.shape_cast %87 : vector<1x32xf32> to vector<1x32xf32>
    %89 = vector.broadcast %88 : vector<1x32xf32> to vector<32x32xf32>
    %90 = tpu.concatenate %86, %89 in 0 : vector<32x32xf32>, vector<32x32xf32> -> vector<64x32xf32>
    %91 = arith.addf %80, %90 : vector<64x32xf32>
    %c2 = arith.constant 2 : index
    %c0_46 = arith.constant 0 : index
    %92 = vector.load %arg4[%c2, %c0_46] : memref<10x32xf32, #tpu.memory_space<vmem>>, vector<1x32xf32>
    %93 = vector.broadcast %92 : vector<1x32xf32> to vector<64x32xf32>
    %94 = arith.addf %91, %93 : vector<64x32xf32>
    %cst_47 = arith.constant 0.000000e+00 : f32
    %95 = vector.broadcast %cst_47 : f32 to vector<64x32xf32>
    %96 = arith.maximumf %94, %95 : vector<64x32xf32>
    %cst_48 = arith.constant dense<0.000000e+00> : vector<64x32xf32>
    %97 = tpu.matmul %96, %68, %cst_48 {dimension_numbers = #tpu.dot_dimension_numbers<[1], [0], [0], [1], [0, 0, 1, 1], [], []>} : vector<64x32xf32>, vector<32x32xf32>, vector<64x32xf32> -> vector<64x32xf32>
    %c7 = arith.constant 7 : index
    %c0_49 = arith.constant 0 : index
    %98 = vector.load %arg4[%c7, %c0_49] : memref<10x32xf32, #tpu.memory_space<vmem>>, vector<1x32xf32>
    %99 = vector.broadcast %98 : vector<1x32xf32> to vector<64x32xf32>
    %100 = arith.addf %97, %99 : vector<64x32xf32>
    %cst_50 = arith.constant dense<0.000000e+00> : vector<64x32xf32>
    %101 = tpu.matmul %65, %69, %cst_50 {dimension_numbers = #tpu.dot_dimension_numbers<[1], [0], [0], [1], [0, 0, 1, 1], [], []>} : vector<64x32xf32>, vector<32x32xf32>, vector<64x32xf32> -> vector<64x32xf32>
    %cst_51 = arith.constant dense<0.000000e+00> : vector<2x32xf32>
    %102 = tpu.matmul %77, %70, %cst_51 {dimension_numbers = #tpu.dot_dimension_numbers<[1], [0], [0], [1], [0, 0, 1, 1], [], []>} : vector<2x32xf32>, vector<32x32xf32>, vector<2x32xf32> -> vector<2x32xf32>
    %103 = vector.extract_strided_slice %102 {offsets = [0, 0], sizes = [1, 32], strides = [1, 1]} : vector<2x32xf32> to vector<1x32xf32>
    %104 = vector.shape_cast %103 : vector<1x32xf32> to vector<1x32xf32>
    %105 = vector.broadcast %104 : vector<1x32xf32> to vector<32x32xf32>
    %106 = vector.extract_strided_slice %102 {offsets = [1, 0], sizes = [1, 32], strides = [1, 1]} : vector<2x32xf32> to vector<1x32xf32>
    %107 = vector.shape_cast %106 : vector<1x32xf32> to vector<1x32xf32>
    %108 = vector.broadcast %107 : vector<1x32xf32> to vector<32x32xf32>
    %109 = tpu.concatenate %105, %108 in 0 : vector<32x32xf32>, vector<32x32xf32> -> vector<64x32xf32>
    %110 = arith.addf %101, %109 : vector<64x32xf32>
    %111 = arith.addf %110, %100 : vector<64x32xf32>
    %c320 = arith.constant 320 : index
    %c0_52 = arith.constant 0 : index
    %112 = vector.load %arg3[%c320, %c0_52] : memref<640x32xf32, #tpu.memory_space<vmem>>, vector<32x32xf32>
    %c352 = arith.constant 352 : index
    %c0_53 = arith.constant 0 : index
    %113 = vector.load %arg3[%c352, %c0_53] : memref<640x32xf32, #tpu.memory_space<vmem>>, vector<32x32xf32>
    %c384 = arith.constant 384 : index
    %c0_54 = arith.constant 0 : index
    %114 = vector.load %arg3[%c384, %c0_54] : memref<640x32xf32, #tpu.memory_space<vmem>>, vector<32x32xf32>
    %c416 = arith.constant 416 : index
    %c0_55 = arith.constant 0 : index
    %115 = vector.load %arg3[%c416, %c0_55] : memref<640x32xf32, #tpu.memory_space<vmem>>, vector<32x32xf32>
    %c448 = arith.constant 448 : index
    %c0_56 = arith.constant 0 : index
    %116 = vector.load %arg3[%c448, %c0_56] : memref<640x32xf32, #tpu.memory_space<vmem>>, vector<32x32xf32>
    %117 = vector.extract_strided_slice %111 {offsets = [0, 0], sizes = [32, 32], strides = [1, 1]} : vector<64x32xf32> to vector<32x32xf32>
    %cst_57 = arith.constant dense<0xFF800000> : vector<32xf32>
    %118 = vector.multi_reduction <maximumf>, %117, %cst_57 [0] : vector<32x32xf32> to vector<32xf32>
    %119 = vector.shape_cast %118 : vector<32xf32> to vector<1x32xf32>
    %120 = vector.extract_strided_slice %111 {offsets = [32, 0], sizes = [32, 32], strides = [1, 1]} : vector<64x32xf32> to vector<32x32xf32>
    %cst_58 = arith.constant dense<0xFF800000> : vector<32xf32>
    %121 = vector.multi_reduction <maximumf>, %120, %cst_58 [0] : vector<32x32xf32> to vector<32xf32>
    %122 = vector.shape_cast %121 : vector<32xf32> to vector<1x32xf32>
    %123 = tpu.concatenate %119, %122 in 0 : vector<1x32xf32>, vector<1x32xf32> -> vector<2x32xf32>
    %cst_59 = arith.constant 0.000000e+00 : f32
    %124 = vector.broadcast %cst_59 : f32 to vector<64x32xf32>
    %125 = arith.maximumf %111, %124 : vector<64x32xf32>
    %cst_60 = arith.constant dense<0.000000e+00> : vector<64x32xf32>
    %126 = tpu.matmul %125, %112, %cst_60 {dimension_numbers = #tpu.dot_dimension_numbers<[1], [0], [0], [1], [0, 0, 1, 1], [], []>} : vector<64x32xf32>, vector<32x32xf32>, vector<64x32xf32> -> vector<64x32xf32>
    %cst_61 = arith.constant 0.000000e+00 : f32
    %127 = vector.broadcast %cst_61 : f32 to vector<2x32xf32>
    %128 = arith.maximumf %123, %127 : vector<2x32xf32>
    %cst_62 = arith.constant dense<0.000000e+00> : vector<2x32xf32>
    %129 = tpu.matmul %128, %113, %cst_62 {dimension_numbers = #tpu.dot_dimension_numbers<[1], [0], [0], [1], [0, 0, 1, 1], [], []>} : vector<2x32xf32>, vector<32x32xf32>, vector<2x32xf32> -> vector<2x32xf32>
    %130 = vector.extract_strided_slice %129 {offsets = [0, 0], sizes = [1, 32], strides = [1, 1]} : vector<2x32xf32> to vector<1x32xf32>
    %131 = vector.shape_cast %130 : vector<1x32xf32> to vector<1x32xf32>
    %132 = vector.broadcast %131 : vector<1x32xf32> to vector<32x32xf32>
    %133 = vector.extract_strided_slice %129 {offsets = [1, 0], sizes = [1, 32], strides = [1, 1]} : vector<2x32xf32> to vector<1x32xf32>
    %134 = vector.shape_cast %133 : vector<1x32xf32> to vector<1x32xf32>
    %135 = vector.broadcast %134 : vector<1x32xf32> to vector<32x32xf32>
    %136 = tpu.concatenate %132, %135 in 0 : vector<32x32xf32>, vector<32x32xf32> -> vector<64x32xf32>
    %137 = arith.addf %126, %136 : vector<64x32xf32>
    %c3 = arith.constant 3 : index
    %c0_63 = arith.constant 0 : index
    %138 = vector.load %arg4[%c3, %c0_63] : memref<10x32xf32, #tpu.memory_space<vmem>>, vector<1x32xf32>
    %139 = vector.broadcast %138 : vector<1x32xf32> to vector<64x32xf32>
    %140 = arith.addf %137, %139 : vector<64x32xf32>
    %cst_64 = arith.constant 0.000000e+00 : f32
    %141 = vector.broadcast %cst_64 : f32 to vector<64x32xf32>
    %142 = arith.maximumf %140, %141 : vector<64x32xf32>
    %cst_65 = arith.constant dense<0.000000e+00> : vector<64x32xf32>
    %143 = tpu.matmul %142, %114, %cst_65 {dimension_numbers = #tpu.dot_dimension_numbers<[1], [0], [0], [1], [0, 0, 1, 1], [], []>} : vector<64x32xf32>, vector<32x32xf32>, vector<64x32xf32> -> vector<64x32xf32>
    %c8 = arith.constant 8 : index
    %c0_66 = arith.constant 0 : index
    %144 = vector.load %arg4[%c8, %c0_66] : memref<10x32xf32, #tpu.memory_space<vmem>>, vector<1x32xf32>
    %145 = vector.broadcast %144 : vector<1x32xf32> to vector<64x32xf32>
    %146 = arith.addf %143, %145 : vector<64x32xf32>
    %cst_67 = arith.constant dense<0.000000e+00> : vector<64x32xf32>
    %147 = tpu.matmul %111, %115, %cst_67 {dimension_numbers = #tpu.dot_dimension_numbers<[1], [0], [0], [1], [0, 0, 1, 1], [], []>} : vector<64x32xf32>, vector<32x32xf32>, vector<64x32xf32> -> vector<64x32xf32>
    %cst_68 = arith.constant dense<0.000000e+00> : vector<2x32xf32>
    %148 = tpu.matmul %123, %116, %cst_68 {dimension_numbers = #tpu.dot_dimension_numbers<[1], [0], [0], [1], [0, 0, 1, 1], [], []>} : vector<2x32xf32>, vector<32x32xf32>, vector<2x32xf32> -> vector<2x32xf32>
    %149 = vector.extract_strided_slice %148 {offsets = [0, 0], sizes = [1, 32], strides = [1, 1]} : vector<2x32xf32> to vector<1x32xf32>
    %150 = vector.shape_cast %149 : vector<1x32xf32> to vector<1x32xf32>
    %151 = vector.broadcast %150 : vector<1x32xf32> to vector<32x32xf32>
    %152 = vector.extract_strided_slice %148 {offsets = [1, 0], sizes = [1, 32], strides = [1, 1]} : vector<2x32xf32> to vector<1x32xf32>
    %153 = vector.shape_cast %152 : vector<1x32xf32> to vector<1x32xf32>
    %154 = vector.broadcast %153 : vector<1x32xf32> to vector<32x32xf32>
    %155 = tpu.concatenate %151, %154 in 0 : vector<32x32xf32>, vector<32x32xf32> -> vector<64x32xf32>
    %156 = arith.addf %147, %155 : vector<64x32xf32>
    %157 = arith.addf %156, %146 : vector<64x32xf32>
    %c480 = arith.constant 480 : index
    %c0_69 = arith.constant 0 : index
    %158 = vector.load %arg3[%c480, %c0_69] : memref<640x32xf32, #tpu.memory_space<vmem>>, vector<32x32xf32>
    %c512 = arith.constant 512 : index
    %c0_70 = arith.constant 0 : index
    %159 = vector.load %arg3[%c512, %c0_70] : memref<640x32xf32, #tpu.memory_space<vmem>>, vector<32x32xf32>
    %c544 = arith.constant 544 : index
    %c0_71 = arith.constant 0 : index
    %160 = vector.load %arg3[%c544, %c0_71] : memref<640x32xf32, #tpu.memory_space<vmem>>, vector<32x32xf32>
    %c576 = arith.constant 576 : index
    %c0_72 = arith.constant 0 : index
    %161 = vector.load %arg3[%c576, %c0_72] : memref<640x32xf32, #tpu.memory_space<vmem>>, vector<32x32xf32>
    %c608 = arith.constant 608 : index
    %c0_73 = arith.constant 0 : index
    %162 = vector.load %arg3[%c608, %c0_73] : memref<640x32xf32, #tpu.memory_space<vmem>>, vector<32x32xf32>
    %163 = vector.extract_strided_slice %157 {offsets = [0, 0], sizes = [32, 32], strides = [1, 1]} : vector<64x32xf32> to vector<32x32xf32>
    %cst_74 = arith.constant dense<0xFF800000> : vector<32xf32>
    %164 = vector.multi_reduction <maximumf>, %163, %cst_74 [0] : vector<32x32xf32> to vector<32xf32>
    %165 = vector.shape_cast %164 : vector<32xf32> to vector<1x32xf32>
    %166 = vector.extract_strided_slice %157 {offsets = [32, 0], sizes = [32, 32], strides = [1, 1]} : vector<64x32xf32> to vector<32x32xf32>
    %cst_75 = arith.constant dense<0xFF800000> : vector<32xf32>
    %167 = vector.multi_reduction <maximumf>, %166, %cst_75 [0] : vector<32x32xf32> to vector<32xf32>
    %168 = vector.shape_cast %167 : vector<32xf32> to vector<1x32xf32>
    %169 = tpu.concatenate %165, %168 in 0 : vector<1x32xf32>, vector<1x32xf32> -> vector<2x32xf32>
    %cst_76 = arith.constant 0.000000e+00 : f32
    %170 = vector.broadcast %cst_76 : f32 to vector<64x32xf32>
    %171 = arith.maximumf %157, %170 : vector<64x32xf32>
    %cst_77 = arith.constant dense<0.000000e+00> : vector<64x32xf32>
    %172 = tpu.matmul %171, %158, %cst_77 {dimension_numbers = #tpu.dot_dimension_numbers<[1], [0], [0], [1], [0, 0, 1, 1], [], []>} : vector<64x32xf32>, vector<32x32xf32>, vector<64x32xf32> -> vector<64x32xf32>
    %cst_78 = arith.constant 0.000000e+00 : f32
    %173 = vector.broadcast %cst_78 : f32 to vector<2x32xf32>
    %174 = arith.maximumf %169, %173 : vector<2x32xf32>
    %cst_79 = arith.constant dense<0.000000e+00> : vector<2x32xf32>
    %175 = tpu.matmul %174, %159, %cst_79 {dimension_numbers = #tpu.dot_dimension_numbers<[1], [0], [0], [1], [0, 0, 1, 1], [], []>} : vector<2x32xf32>, vector<32x32xf32>, vector<2x32xf32> -> vector<2x32xf32>
    %176 = vector.extract_strided_slice %175 {offsets = [0, 0], sizes = [1, 32], strides = [1, 1]} : vector<2x32xf32> to vector<1x32xf32>
    %177 = vector.shape_cast %176 : vector<1x32xf32> to vector<1x32xf32>
    %178 = vector.broadcast %177 : vector<1x32xf32> to vector<32x32xf32>
    %179 = vector.extract_strided_slice %175 {offsets = [1, 0], sizes = [1, 32], strides = [1, 1]} : vector<2x32xf32> to vector<1x32xf32>
    %180 = vector.shape_cast %179 : vector<1x32xf32> to vector<1x32xf32>
    %181 = vector.broadcast %180 : vector<1x32xf32> to vector<32x32xf32>
    %182 = tpu.concatenate %178, %181 in 0 : vector<32x32xf32>, vector<32x32xf32> -> vector<64x32xf32>
    %183 = arith.addf %172, %182 : vector<64x32xf32>
    %c4 = arith.constant 4 : index
    %c0_80 = arith.constant 0 : index
    %184 = vector.load %arg4[%c4, %c0_80] : memref<10x32xf32, #tpu.memory_space<vmem>>, vector<1x32xf32>
    %185 = vector.broadcast %184 : vector<1x32xf32> to vector<64x32xf32>
    %186 = arith.addf %183, %185 : vector<64x32xf32>
    %cst_81 = arith.constant 0.000000e+00 : f32
    %187 = vector.broadcast %cst_81 : f32 to vector<64x32xf32>
    %188 = arith.maximumf %186, %187 : vector<64x32xf32>
    %cst_82 = arith.constant dense<0.000000e+00> : vector<64x32xf32>
    %189 = tpu.matmul %188, %160, %cst_82 {dimension_numbers = #tpu.dot_dimension_numbers<[1], [0], [0], [1], [0, 0, 1, 1], [], []>} : vector<64x32xf32>, vector<32x32xf32>, vector<64x32xf32> -> vector<64x32xf32>
    %c9 = arith.constant 9 : index
    %c0_83 = arith.constant 0 : index
    %190 = vector.load %arg4[%c9, %c0_83] : memref<10x32xf32, #tpu.memory_space<vmem>>, vector<1x32xf32>
    %191 = vector.broadcast %190 : vector<1x32xf32> to vector<64x32xf32>
    %192 = arith.addf %189, %191 : vector<64x32xf32>
    %cst_84 = arith.constant dense<0.000000e+00> : vector<64x32xf32>
    %193 = tpu.matmul %157, %161, %cst_84 {dimension_numbers = #tpu.dot_dimension_numbers<[1], [0], [0], [1], [0, 0, 1, 1], [], []>} : vector<64x32xf32>, vector<32x32xf32>, vector<64x32xf32> -> vector<64x32xf32>
    %cst_85 = arith.constant dense<0.000000e+00> : vector<2x32xf32>
    %194 = tpu.matmul %169, %162, %cst_85 {dimension_numbers = #tpu.dot_dimension_numbers<[1], [0], [0], [1], [0, 0, 1, 1], [], []>} : vector<2x32xf32>, vector<32x32xf32>, vector<2x32xf32> -> vector<2x32xf32>
    %195 = vector.extract_strided_slice %194 {offsets = [0, 0], sizes = [1, 32], strides = [1, 1]} : vector<2x32xf32> to vector<1x32xf32>
    %196 = vector.shape_cast %195 : vector<1x32xf32> to vector<1x32xf32>
    %197 = vector.broadcast %196 : vector<1x32xf32> to vector<32x32xf32>
    %198 = vector.extract_strided_slice %194 {offsets = [1, 0], sizes = [1, 32], strides = [1, 1]} : vector<2x32xf32> to vector<1x32xf32>
    %199 = vector.shape_cast %198 : vector<1x32xf32> to vector<1x32xf32>
    %200 = vector.broadcast %199 : vector<1x32xf32> to vector<32x32xf32>
    %201 = tpu.concatenate %197, %200 in 0 : vector<32x32xf32>, vector<32x32xf32> -> vector<64x32xf32>
    %202 = arith.addf %193, %201 : vector<64x32xf32>
    %203 = arith.addf %202, %192 : vector<64x32xf32>
    %204 = vector.extract_strided_slice %203 {offsets = [0, 0], sizes = [32, 32], strides = [1, 1]} : vector<64x32xf32> to vector<32x32xf32>
    %cst_86 = arith.constant dense<0xFF800000> : vector<32xf32>
    %205 = vector.multi_reduction <maximumf>, %204, %cst_86 [0] : vector<32x32xf32> to vector<32xf32>
    %206 = vector.shape_cast %205 : vector<32xf32> to vector<1x32xf32>
    %207 = vector.extract_strided_slice %203 {offsets = [32, 0], sizes = [32, 32], strides = [1, 1]} : vector<64x32xf32> to vector<32x32xf32>
    %cst_87 = arith.constant dense<0xFF800000> : vector<32xf32>
    %208 = vector.multi_reduction <maximumf>, %207, %cst_87 [0] : vector<32x32xf32> to vector<32xf32>
    %209 = vector.shape_cast %208 : vector<32xf32> to vector<1x32xf32>
    %210 = tpu.concatenate %206, %209 in 0 : vector<1x32xf32>, vector<1x32xf32> -> vector<2x32xf32>
    %cst_88 = arith.constant 0.000000e+00 : f32
    %211 = vector.broadcast %cst_88 : f32 to vector<2x32xf32>
    %212 = arith.maximumf %210, %211 : vector<2x32xf32>
    %c0_89 = arith.constant 0 : index
    %c0_90 = arith.constant 0 : index
    %213 = vector.load %arg5[%c0_89, %c0_90] : memref<32x16xf32, #tpu.memory_space<vmem>>, vector<32x16xf32>
    %cst_91 = arith.constant dense<0.000000e+00> : vector<2x16xf32>
    %214 = tpu.matmul %212, %213, %cst_91 {dimension_numbers = #tpu.dot_dimension_numbers<[1], [0], [0], [1], [0, 0, 1, 1], [], []>} : vector<2x32xf32>, vector<32x16xf32>, vector<2x16xf32> -> vector<2x16xf32>
    %c0_92 = arith.constant 0 : index
    %c0_93 = arith.constant 0 : index
    %215 = vector.load %arg6[%c0_92, %c0_93] : memref<1x16xf32, #tpu.memory_space<vmem>>, vector<1x16xf32>
    %216 = vector.broadcast %215 : vector<1x16xf32> to vector<2x16xf32>
    %217 = arith.addf %214, %216 : vector<2x16xf32>
    %c0_94 = arith.constant 0 : index
    %c0_95 = arith.constant 0 : index
    %218 = vector.load %arg7[%c0_94, %c0_95] : memref<2x16xf32, #tpu.memory_space<vmem>>, vector<2x16xf32>
    tpu.vector_store %arg7[%c0_94, %c0_95], %217 {strides = array<i32>} : memref<2x16xf32, #tpu.memory_space<vmem>>, vector<2x16xf32>,
    return
  }
}

</mosaic_0001>

<llo_original>
// kernel: tpu_custom_call.1
$region0: #{tpu_custom_call.1}
  #allocation0 [shape = 'u32[]', space=smem, size = 0x4, offset = 0x4, fixed_abs, tag = 'smem constant byte address 0x4 - core index']
  #allocation1 [shape = 'u32[144,128]{1,0:T(1,128)}', space=vmem, size = 0x12000, scoped, tag = 'internal scratch']
  %s0 = inlined_call_operand.vmem [shape: f32[64,4], index: 0, kind: input, shape index: {}]
  %s1 = inlined_call_operand.vmem [shape: f32[4,64], index: 1, kind: input, shape index: {}]
  %s2 = inlined_call_operand.vmem [shape: f32[160,32], index: 2, kind: input, shape index: {}]
  %s3 = inlined_call_operand.vmem [shape: f32[640,32], index: 3, kind: input, shape index: {}]
  %s4 = inlined_call_operand.vmem [shape: f32[10,32], index: 4, kind: input, shape index: {}]
  %s5 = inlined_call_operand.vmem [shape: f32[32,16], index: 5, kind: input, shape index: {}]
  %s6 = inlined_call_operand.vmem [shape: f32[1,16], index: 6, kind: input, shape index: {}]
  %s7 = inlined_call_operand.hbm [shape: f32[2,16], index: 7, kind: output, shape index: {}]
  %s8 = sld [smem:[#allocation0]]
  $region38: #{tpu_custom_call.1} parent=0
    _
  %s10 = ssub.s32 1, %s8
  %s11 = scalar_select 0, %s10, %s8
  $region1: #{tpu_custom_call.1} parent=0
    #allocation2 [shape = 'u8[1024]{0}', space=vmem, size = 0x400, scoped, tag = 'output window, operand 0, single buffered']
    #allocation3 [shape = 's32[1]{0}', space=sflag, size = 0x4, scoped, tag = 'scoped memory for tpu_custom_call.1']
    %12 = vsyncpa [#allocation3], 0
    // Predicated region
    $region2: #{tpu_custom_call.1} parent=1 // pred_check
      _
    $region3: #{tpu_custom_call.1} parent=1 // pred_check_branch
      %14 = sbr.rel (0) target = $region5
    $region4: #{tpu_custom_call.1} parent=1 // pred_region
      _
    $region5: #{tpu_custom_call.1} parent=1 // pred_fallthru
      _
    // Predicated region
    $region6: #{tpu_custom_call.1} parent=1 // pred_check
      _
    $region7: #{tpu_custom_call.1} parent=1 // pred_check_branch
      %16 = sbr.rel (0) target = $region9
    $region8: #{tpu_custom_call.1} parent=1 // pred_region
      _
    $region9: #{tpu_custom_call.1} parent=1 // pred_fallthru
      _
    // Predicated region
    $region10: #{tpu_custom_call.1} parent=1 // pred_check
      _
    $region11: #{tpu_custom_call.1} parent=1 // pred_check_branch
      %18 = sbr.rel (0) target = $region13
    $region12: #{tpu_custom_call.1} parent=1 // pred_region
      _
    $region13: #{tpu_custom_call.1} parent=1 // pred_fallthru
      _
    // Predicated region
    $region14: #{tpu_custom_call.1} parent=1 // pred_check
      _
    $region15: #{tpu_custom_call.1} parent=1 // pred_check_branch
      %20 = sbr.rel (0) target = $region17
    $region16: #{tpu_custom_call.1} parent=1 // pred_region
      _
    $region17: #{tpu_custom_call.1} parent=1 // pred_fallthru
      _
    // Predicated region
    $region18: #{tpu_custom_call.1} parent=1 // pred_check
      _
    $region19: #{tpu_custom_call.1} parent=1 // pred_check_branch
      %22 = sbr.rel (0) target = $region21
    $region20: #{tpu_custom_call.1} parent=1 // pred_region
      _
    $region21: #{tpu_custom_call.1} parent=1 // pred_fallthru
      _
    // Predicated region
    $region22: #{tpu_custom_call.1} parent=1 // pred_check
      _
    $region23: #{tpu_custom_call.1} parent=1 // pred_check_branch
      %24 = sbr.rel (0) target = $region25
    $region24: #{tpu_custom_call.1} parent=1 // pred_region
      _
    $region25: #{tpu_custom_call.1} parent=1 // pred_fallthru
      _
    // Predicated region
    $region26: #{tpu_custom_call.1} parent=1 // pred_check
      _
    $region27: #{tpu_custom_call.1} parent=1 // pred_check_branch
      %26 = sbr.rel (0) target = $region29
    $region28: #{tpu_custom_call.1} parent=1 // pred_region
      _
    $region29: #{tpu_custom_call.1} parent=1 // pred_fallthru
      _
    %v27 = vld [vmem:[%s0] sm:$0xff]
    %v28 = vld [vmem:[%s0 + $0x8] sm:$0xff]
    %v29 = vld [vmem:[%s0 + $0x10] sm:$0xff]
    %v30 = vld [vmem:[%s0 + $0x18] sm:$0xff]
    %v31 = vld [vmem:[%s0 + $0x20] sm:$0xff]
    %v32 = vld [vmem:[%s0 + $0x28] sm:$0xff]
    %v33 = vld [vmem:[%s0 + $0x30] sm:$0xff]
    %v34 = vld [vmem:[%s0 + $0x38] sm:$0xff]
    %v35 = vld [vmem:[%s1] sm:$0xf]
    %vm36 = vcmask 31744
    %v38 = vsel %vm36, %v27, 0
    %v41 = vsel %vm36, %v28, 0
    %v44 = vsel %vm36, %v29, 0
    %v47 = vsel %vm36, %v30, 0
    %v50 = vsel %vm36, %v31, 0
    %v53 = vsel %vm36, %v32, 0
    %v56 = vsel %vm36, %v33, 0
    %v59 = vsel %vm36, %v34, 0
    %vm61 = vcmask 1043456
    %v63 = vsel %vm61, %v35, 0
    %65 = vmatprep.subr.mxu0 0.0
    %66 = vmatpush1.msra.mxu0 %v63
    %67 = vmatprep.subr.mxu0 0.0
    %68 = vmatpush1.msra.mxu0 0.0
    %69 = vmatprep.subr.mxu0 0.0
    %70 = vmatpush1.msra.mxu0 0.0
    %71 = vmatprep.subr.mxu0 0.0
    %72 = vmatpush1.msra.mxu0 0.0
    %73 = vmatprep.subr.mxu0 0.0
    %74 = vmatpush1.msra.mxu0 0.0
    %75 = vmatprep.subr.mxu0 0.0
    %76 = vmatpush1.msra.mxu0 0.0
    %77 = vmatprep.subr.mxu0 0.0
    %78 = vmatpush1.msra.mxu0 0.0
    %79 = vmatprep.subr.mxu0 0.0
    %80 = vmatpush1.msra.mxu0 0.0
    %81 = vmatprep.subr.mxu0 0.0
    %82 = vmatpush1.msra.mxu0 0.0
    %83 = vmatprep.subr.mxu0 0.0
    %84 = vmatpush1.msra.mxu0 0.0
    %85 = vmatprep.subr.mxu0 0.0
    %86 = vmatpush1.msra.mxu0 0.0
    %87 = vmatprep.subr.mxu0 0.0
    %88 = vmatpush1.msra.mxu0 0.0
    %89 = vmatprep.subr.mxu0 0.0
    %90 = vmatpush1.msra.mxu0 0.0
    %91 = vmatprep.subr.mxu0 0.0
    %92 = vmatpush1.msra.mxu0 0.0
    %93 = vmatprep.subr.mxu0 0.0
    %94 = vmatpush1.msra.mxu0 0.0
    %95 = vmatprep.subr.mxu0 0.0
    %96 = vmatpush1.msra.mxu0 0.0
    %97 = vmatprep.subr.mxu0 0.0
    %98 = vmatpush1.msra.mxu0 0.0
    %99 = vmatprep.subr.mxu0 0.0
    %100 = vmatpush1.msra.mxu0 0.0
    %101 = vmatprep.subr.mxu0 0.0
    %102 = vmatpush1.msra.mxu0 0.0
    %103 = vmatprep.subr.mxu0 0.0
    %104 = vmatpush1.msra.mxu0 0.0
    %105 = vmatprep.subr.mxu0 0.0
    %106 = vmatpush1.msra.mxu0 0.0
    %107 = vmatprep.subr.mxu0 0.0
    %108 = vmatpush1.msra.mxu0 0.0
    %109 = vmatprep.subr.mxu0 0.0
    %110 = vmatpush1.msra.mxu0 0.0
    %111 = vmatprep.subr.mxu0 0.0
    %112 = vmatpush1.msra.mxu0 0.0
    %113 = vmatprep.subr.mxu0 0.0
    %114 = vmatpush1.msra.mxu0 0.0
    %115 = vmatprep.subr.mxu0 0.0
    %116 = vmatpush1.msra.mxu0 0.0
    %117 = vmatprep.subr.mxu0 0.0
    %118 = vmatpush1.msra.mxu0 0.0
    %119 = vmatprep.subr.mxu0 0.0
    %120 = vmatpush1.msra.mxu0 0.0
    %121 = vmatprep.subr.mxu0 0.0
    %122 = vmatpush1.msra.mxu0 0.0
    %123 = vmatprep.subr.mxu0 0.0
    %124 = vmatpush1.msra.mxu0 0.0
    %125 = vmatprep.subr.mxu0 0.0
    %126 = vmatpush1.msra.mxu0 0.0
    %127 = vmatprep.subr.mxu0 0.0
    %128 = vmatpush1.msra.mxu0 0.0
    %129 = vmatprep.mubr.f32.mxu0 0.0
    %130 = vmatmul.mubr.f32.gmra.mrb[0].mxu0 %v38
    %v131 = vpop.f32.mrb[0].mxu0
    %v132 = vadd.f32 0.0, %v131
    %v133 = vpop.f32.mrb[0].mxu0
    %134 = vmatprep.mubr.f32.mxu0 0.0
    %135 = vmatmul.mubr.f32.gmra.mrb[0].mxu0 %v41
    %v136 = vpop.f32.mrb[0].mxu0
    %v137 = vadd.f32 0.0, %v136
    %v138 = vpop.f32.mrb[0].mxu0
    %139 = vmatprep.mubr.f32.mxu0 0.0
    %140 = vmatmul.mubr.f32.gmra.mrb[0].mxu0 %v44
    %v141 = vpop.f32.mrb[0].mxu0
    %v142 = vadd.f32 0.0, %v141
    %v143 = vpop.f32.mrb[0].mxu0
    %144 = vmatprep.mubr.f32.mxu0 0.0
    %145 = vmatmul.mubr.f32.gmra.mrb[0].mxu0 %v47
    %v146 = vpop.f32.mrb[0].mxu0
    %v147 = vadd.f32 0.0, %v146
    %v148 = vpop.f32.mrb[0].mxu0
    %149 = vmatprep.mubr.f32.mxu0 0.0
    %150 = vmatmul.mubr.f32.gmra.mrb[0].mxu0 %v50
    %v151 = vpop.f32.mrb[0].mxu0
    %v152 = vadd.f32 0.0, %v151
    %v153 = vpop.f32.mrb[0].mxu0
    %154 = vmatprep.mubr.f32.mxu0 0.0
    %155 = vmatmul.mubr.f32.gmra.mrb[0].mxu0 %v53
    %v156 = vpop.f32.mrb[0].mxu0
    %v157 = vadd.f32 0.0, %v156
    %v158 = vpop.f32.mrb[0].mxu0
    %159 = vmatprep.mubr.f32.mxu0 0.0
    %160 = vmatmul.mubr.f32.gmra.mrb[0].mxu0 %v56
    %v161 = vpop.f32.mrb[0].mxu0
    %v162 = vadd.f32 0.0, %v161
    %v163 = vpop.f32.mrb[0].mxu0
    %164 = vmatprep.mubr.f32.mxu0 0.0
    %165 = vmatmul.mubr.f32.gmra.mrb[0].mxu0 %v59
    %v166 = vpop.f32.mrb[0].mxu0
    %v167 = vadd.f32 0.0, %v166
    %v168 = vpop.f32.mrb[0].mxu0
    %169 = vdwg.mxu0
    %v170 = vld [vmem:[%s2] sm:$0xff]
    %v171 = vld [vmem:[%s2 + $0x8] sm:$0xff]
    %v172 = vld [vmem:[%s2 + $0x10] sm:$0xff]
    %v173 = vld [vmem:[%s2 + $0x18] sm:$0xff]
    %v174 = vld [vmem:[%s2 + $0x20] sm:$0xff]
    %v175 = vld [vmem:[%s2 + $0x28] sm:$0xff]
    %v176 = vld [vmem:[%s2 + $0x30] sm:$0xff]
    %v177 = vld [vmem:[%s2 + $0x38] sm:$0xff]
    %v178 = vld [vmem:[%s2 + $0x40] sm:$0xff]
    %v179 = vld [vmem:[%s2 + $0x48] sm:$0xff]
    %v180 = vld [vmem:[%s2 + $0x50] sm:$0xff]
    %v181 = vld [vmem:[%s2 + $0x58] sm:$0xff]
    %v182 = vld [vmem:[%s2 + $0x60] sm:$0xff]
    %v183 = vld [vmem:[%s2 + $0x68] sm:$0xff]
    %v184 = vld [vmem:[%s2 + $0x70] sm:$0xff]
    %v185 = vld [vmem:[%s2 + $0x78] sm:$0xff]
    %v186 = vld [vmem:[%s2 + $0x80] sm:$0xff]
    %v187 = vld [vmem:[%s2 + $0x88] sm:$0xff]
    %v188 = vld [vmem:[%s2 + $0x90] sm:$0xff]
    %v189 = vld [vmem:[%s2 + $0x98] sm:$0xff]
    %v190 = vmax.f32 %v132, 0.0
    %v191 = vmax.f32 %v137, 0.0
    %v192 = vmax.f32 %v142, 0.0
    %v193 = vmax.f32 %v147, 0.0
    %v194 = vmax.f32 %v152, 0.0
    %v195 = vmax.f32 %v157, 0.0
    %v196 = vmax.f32 %v162, 0.0
    %v197 = vmax.f32 %v167, 0.0
    %v198 = vld [vmem:[%s4] sm:$0x1]
    %v199 = vlaneseq
    %v200 = vshrl.u32 %v199, 7
    %v201 = vsub.s32 0, %v200
    %v202 = vrot.slane %v198, %v201
    %vm203 = vcmask 523264
    %v205 = vsel %vm203, %v190, 0
    %v208 = vsel %vm203, %v191, 0
    %v211 = vsel %vm203, %v192, 0
    %v214 = vsel %vm203, %v193, 0
    %v217 = vsel %vm203, %v194, 0
    %v220 = vsel %vm203, %v195, 0
    %v223 = vsel %vm203, %v196, 0
    %v226 = vsel %vm203, %v197, 0
    %228 = vmatprep.subr.mxu0 0.0
    %229 = vmatpush1.msra.mxu0 %v170
    %230 = vmatprep.subr.mxu0 0.0
    %231 = vmatpush1.msra.mxu0 %v171
    %232 = vmatprep.subr.mxu0 0.0
    %233 = vmatpush1.msra.mxu0 %v172
    %234 = vmatprep.subr.mxu0 0.0
    %235 = vmatpush1.msra.mxu0 %v173
    %236 = vmatprep.subr.mxu0 0.0
    %237 = vmatpush1.msra.mxu0 %v174
    %238 = vmatprep.subr.mxu0 0.0
    %239 = vmatpush1.msra.mxu0 %v175
    %240 = vmatprep.subr.mxu0 0.0
    %241 = vmatpush1.msra.mxu0 %v176
    %242 = vmatprep.subr.mxu0 0.0
    %243 = vmatpush1.msra.mxu0 %v177
    %244 = vmatprep.subr.mxu0 0.0
    %245 = vmatpush1.msra.mxu0 0.0
    %246 = vmatprep.subr.mxu0 0.0
    %247 = vmatpush1.msra.mxu0 0.0
    %248 = vmatprep.subr.mxu0 0.0
    %249 = vmatpush1.msra.mxu0 0.0
    %250 = vmatprep.subr.mxu0 0.0
    %251 = vmatpush1.msra.mxu0 0.0
    %252 = vmatprep.subr.mxu0 0.0
    %253 = vmatpush1.msra.mxu0 0.0
    %254 = vmatprep.subr.mxu0 0.0
    %255 = vmatpush1.msra.mxu0 0.0
    %256 = vmatprep.subr.mxu0 0.0
    %257 = vmatpush1.msra.mxu0 0.0
    %258 = vmatprep.subr.mxu0 0.0
    %259 = vmatpush1.msra.mxu0 0.0
    %260 = vmatprep.subr.mxu0 0.0
    %261 = vmatpush1.msra.mxu0 0.0
    %262 = vmatprep.subr.mxu0 0.0
    %263 = vmatpush1.msra.mxu0 0.0
    %264 = vmatprep.subr.mxu0 0.0
    %265 = vmatpush1.msra.mxu0 0.0
    %266 = vmatprep.subr.mxu0 0.0
    %267 = vmatpush1.msra.mxu0 0.0
    %268 = vmatprep.subr.mxu0 0.0
    %269 = vmatpush1.msra.mxu0 0.0
    %270 = vmatprep.subr.mxu0 0.0
    %271 = vmatpush1.msra.mxu0 0.0
    %272 = vmatprep.subr.mxu0 0.0
    %273 = vmatpush1.msra.mxu0 0.0
    %274 = vmatprep.subr.mxu0 0.0
    %275 = vmatpush1.msra.mxu0 0.0
    %276 = vmatprep.subr.mxu0 0.0
    %277 = vmatpush1.msra.mxu0 0.0
    %278 = vmatprep.subr.mxu0 0.0
    %279 = vmatpush1.msra.mxu0 0.0
    %280 = vmatprep.subr.mxu0 0.0
    %281 = vmatpush1.msra.mxu0 0.0
    %282 = vmatprep.subr.mxu0 0.0
    %283 = vmatpush1.msra.mxu0 0.0
    %284 = vmatprep.subr.mxu0 0.0
    %285 = vmatpush1.msra.mxu0 0.0
    %286 = vmatprep.subr.mxu0 0.0
    %287 = vmatpush1.msra.mxu0 0.0
    %288 = vmatprep.subr.mxu0 0.0
    %289 = vmatpush1.msra.mxu0 0.0
    %290 = vmatprep.subr.mxu0 0.0
    %291 = vmatpush1.msra.mxu0 0.0
    %292 = vmatprep.mubr.f32.mxu0 0.0
    %293 = vmatmul.mubr.f32.gmra.mrb[0].mxu0 %v205
    %v294 = vpop.f32.mrb[0].mxu0
    %v295 = vadd.f32 %v202, %v294
    %v296 = vpop.f32.mrb[0].mxu0
    %297 = vmatprep.mubr.f32.mxu0 0.0
    %298 = vmatmul.mubr.f32.gmra.mrb[0].mxu0 %v208
    %v299 = vpop.f32.mrb[0].mxu0
    %v300 = vadd.f32 %v202, %v299
    %v301 = vpop.f32.mrb[0].mxu0
    %302 = vmatprep.mubr.f32.mxu0 0.0
    %303 = vmatmul.mubr.f32.gmra.mrb[0].mxu0 %v211
    %v304 = vpop.f32.mrb[0].mxu0
    %v305 = vadd.f32 %v202, %v304
    %v306 = vpop.f32.mrb[0].mxu0
    %307 = vmatprep.mubr.f32.mxu0 0.0
    %308 = vmatmul.mubr.f32.gmra.mrb[0].mxu0 %v214
    %v309 = vpop.f32.mrb[0].mxu0
    %v310 = vadd.f32 %v202, %v309
    %v311 = vpop.f32.mrb[0].mxu0
    %312 = vmatprep.mubr.f32.mxu0 0.0
    %313 = vmatmul.mubr.f32.gmra.mrb[0].mxu0 %v217
    %v314 = vpop.f32.mrb[0].mxu0
    %v315 = vadd.f32 %v202, %v314
    %v316 = vpop.f32.mrb[0].mxu0
    %317 = vmatprep.mubr.f32.mxu0 0.0
    %318 = vmatmul.mubr.f32.gmra.mrb[0].mxu0 %v220
    %v319 = vpop.f32.mrb[0].mxu0
    %v320 = vadd.f32 %v202, %v319
    %v321 = vpop.f32.mrb[0].mxu0
    %322 = vmatprep.mubr.f32.mxu0 0.0
    %323 = vmatmul.mubr.f32.gmra.mrb[0].mxu0 %v223
    %v324 = vpop.f32.mrb[0].mxu0
    %v325 = vadd.f32 %v202, %v324
    %v326 = vpop.f32.mrb[0].mxu0
    %327 = vmatprep.mubr.f32.mxu0 0.0
    %328 = vmatmul.mubr.f32.gmra.mrb[0].mxu0 %v226
    %v329 = vpop.f32.mrb[0].mxu0
    %v330 = vadd.f32 %v202, %v329
    %v331 = vpop.f32.mrb[0].mxu0
    %332 = vdwg.mxu0
    %v333 = vmax.f32 %v295, 0.0
    %v334 = vmax.f32 %v300, 0.0
    %v335 = vmax.f32 %v305, 0.0
    %v336 = vmax.f32 %v310, 0.0
    %v337 = vmax.f32 %v315, 0.0
    %v338 = vmax.f32 %v320, 0.0
    %v339 = vmax.f32 %v325, 0.0
    %v340 = vmax.f32 %v330, 0.0
    %v341 = vld [vmem:[%s4 + $0x5] sm:$0x1]
    %v342 = vlaneseq
    %v343 = vshrl.u32 %v342, 7
    %v344 = vsub.s32 0, %v343
    %v345 = vrot.slane %v341, %v344
    %vm346 = vcmask 261120
    %v348 = vsel %vm346, %v333, 0
    %v351 = vsel %vm346, %v334, 0
    %v354 = vsel %vm346, %v335, 0
    %v357 = vsel %vm346, %v336, 0
    %v360 = vsel %vm346, %v337, 0
    %v363 = vsel %vm346, %v338, 0
    %v366 = vsel %vm346, %v339, 0
    %v369 = vsel %vm346, %v340, 0
    %371 = vmatprep.subr.mxu0 0.0
    %372 = vmatpush1.msra.mxu0 %v178
    %373 = vmatprep.subr.mxu0 0.0
    %374 = vmatpush1.msra.mxu0 %v179
    %375 = vmatprep.subr.mxu0 0.0
    %376 = vmatpush1.msra.mxu0 %v180
    %377 = vmatprep.subr.mxu0 0.0
    %378 = vmatpush1.msra.mxu0 %v181
    %379 = vmatprep.subr.mxu0 0.0
    %380 = vmatpush1.msra.mxu0 0.0
    %381 = vmatprep.subr.mxu0 0.0
    %382 = vmatpush1.msra.mxu0 0.0
    %383 = vmatprep.subr.mxu0 0.0
    %384 = vmatpush1.msra.mxu0 0.0
    %385 = vmatprep.subr.mxu0 0.0
    %386 = vmatpush1.msra.mxu0 0.0
    %387 = vmatprep.subr.mxu0 0.0
    %388 = vmatpush1.msra.mxu0 0.0
    %389 = vmatprep.subr.mxu0 0.0
    %390 = vmatpush1.msra.mxu0 0.0
    %391 = vmatprep.subr.mxu0 0.0
    %392 = vmatpush1.msra.mxu0 0.0
    %393 = vmatprep.subr.mxu0 0.0
    %394 = vmatpush1.msra.mxu0 0.0
    %395 = vmatprep.subr.mxu0 0.0
    %396 = vmatpush1.msra.mxu0 0.0
    %397 = vmatprep.subr.mxu0 0.0
    %398 = vmatpush1.msra.mxu0 0.0
    %399 = vmatprep.subr.mxu0 0.0
    %400 = vmatpush1.msra.mxu0 0.0
    %401 = vmatprep.subr.mxu0 0.0
    %402 = vmatpush1.msra.mxu0 0.0
    %403 = vmatprep.subr.mxu0 0.0
    %404 = vmatpush1.msra.mxu0 0.0
    %405 = vmatprep.subr.mxu0 0.0
    %406 = vmatpush1.msra.mxu0 0.0
    %407 = vmatprep.subr.mxu0 0.0
    %408 = vmatpush1.msra.mxu0 0.0
    %409 = vmatprep.subr.mxu0 0.0
    %410 = vmatpush1.msra.mxu0 0.0
    %411 = vmatprep.subr.mxu0 0.0
    %412 = vmatpush1.msra.mxu0 0.0
    %413 = vmatprep.subr.mxu0 0.0
    %414 = vmatpush1.msra.mxu0 0.0
    %415 = vmatprep.subr.mxu0 0.0
    %416 = vmatpush1.msra.mxu0 0.0
    %417 = vmatprep.subr.mxu0 0.0
    %418 = vmatpush1.msra.mxu0 0.0
    %419 = vmatprep.subr.mxu0 0.0
    %420 = vmatpush1.msra.mxu0 0.0
    %421 = vmatprep.subr.mxu0 0.0
    %422 = vmatpush1.msra.mxu0 0.0
    %423 = vmatprep.subr.mxu0 0.0
    %424 = vmatpush1.msra.mxu0 0.0
    %425 = vmatprep.subr.mxu0 0.0
    %426 = vmatpush1.msra.mxu0 0.0
    %427 = vmatprep.subr.mxu0 0.0
    %428 = vmatpush1.msra.mxu0 0.0
    %429 = vmatprep.subr.mxu0 0.0
    %430 = vmatpush1.msra.mxu0 0.0
    %431 = vmatprep.subr.mxu0 0.0
    %432 = vmatpush1.msra.mxu0 0.0
    %433 = vmatprep.subr.mxu0 0.0
    %434 = vmatpush1.msra.mxu0 0.0
    %435 = vmatprep.mubr.f32.mxu0 0.0
    %436 = vmatmul.mubr.f32.gmra.mrb[0].mxu0 %v348
    %v437 = vpop.f32.mrb[0].mxu0
    %v438 = vadd.f32 %v345, %v437
    %v439 = vpop.f32.mrb[0].mxu0
    %440 = vmatprep.mubr.f32.mxu0 0.0
    %441 = vmatmul.mubr.f32.gmra.mrb[0].mxu0 %v351
    %v442 = vpop.f32.mrb[0].mxu0
    %v443 = vadd.f32 %v345, %v442
    %v444 = vpop.f32.mrb[0].mxu0
    %445 = vmatprep.mubr.f32.mxu0 0.0
    %446 = vmatmul.mubr.f32.gmra.mrb[0].mxu0 %v354
    %v447 = vpop.f32.mrb[0].mxu0
    %v448 = vadd.f32 %v345, %v447
    %v449 = vpop.f32.mrb[0].mxu0
    %450 = vmatprep.mubr.f32.mxu0 0.0
    %451 = vmatmul.mubr.f32.gmra.mrb[0].mxu0 %v357
    %v452 = vpop.f32.mrb[0].mxu0
    %v453 = vadd.f32 %v345, %v452
    %v454 = vpop.f32.mrb[0].mxu0
    %455 = vmatprep.mubr.f32.mxu0 0.0
    %456 = vmatmul.mubr.f32.gmra.mrb[0].mxu0 %v360
    %v457 = vpop.f32.mrb[0].mxu0
    %v458 = vadd.f32 %v345, %v457
    %v459 = vpop.f32.mrb[0].mxu0
    %460 = vmatprep.mubr.f32.mxu0 0.0
    %461 = vmatmul.mubr.f32.gmra.mrb[0].mxu0 %v363
    %v462 = vpop.f32.mrb[0].mxu0
    %v463 = vadd.f32 %v345, %v462
    %v464 = vpop.f32.mrb[0].mxu0
    %465 = vmatprep.mubr.f32.mxu0 0.0
    %466 = vmatmul.mubr.f32.gmra.mrb[0].mxu0 %v366
    %v467 = vpop.f32.mrb[0].mxu0
    %v468 = vadd.f32 %v345, %v467
    %v469 = vpop.f32.mrb[0].mxu0
    %470 = vmatprep.mubr.f32.mxu0 0.0
    %471 = vmatmul.mubr.f32.gmra.mrb[0].mxu0 %v369
    %v472 = vpop.f32.mrb[0].mxu0
    %v473 = vadd.f32 %v345, %v472
    %v474 = vpop.f32.mrb[0].mxu0
    %475 = vdwg.mxu0
    %v477 = vsel %vm203, %v132, 0
    %v480 = vsel %vm203, %v137, 0
    %v483 = vsel %vm203, %v142, 0
    %v486 = vsel %vm203, %v147, 0
    %v489 = vsel %vm203, %v152, 0
    %v492 = vsel %vm203, %v157, 0
    %v495 = vsel %vm203, %v162, 0
    %v498 = vsel %vm203, %v167, 0
    %500 = vmatprep.subr.mxu0 0.0
    %501 = vmatpush1.msra.mxu0 %v182
    %502 = vmatprep.subr.mxu0 0.0
    %503 = vmatpush1.msra.mxu0 %v183
    %504 = vmatprep.subr.mxu0 0.0
    %505 = vmatpush1.msra.mxu0 %v184
    %506 = vmatprep.subr.mxu0 0.0
    %507 = vmatpush1.msra.mxu0 %v185
    %508 = vmatprep.subr.mxu0 0.0
    %509 = vmatpush1.msra.mxu0 %v186
    %510 = vmatprep.subr.mxu0 0.0
    %511 = vmatpush1.msra.mxu0 %v187
    %512 = vmatprep.subr.mxu0 0.0
    %513 = vmatpush1.msra.mxu0 %v188
    %514 = vmatprep.subr.mxu0 0.0
    %515 = vmatpush1.msra.mxu0 %v189
    %516 = vmatprep.subr.mxu0 0.0
    %517 = vmatpush1.msra.mxu0 0.0
    %518 = vmatprep.subr.mxu0 0.0
    %519 = vmatpush1.msra.mxu0 0.0
    %520 = vmatprep.subr.mxu0 0.0
    %521 = vmatpush1.msra.mxu0 0.0
    %522 = vmatprep.subr.mxu0 0.0
    %523 = vmatpush1.msra.mxu0 0.0
    %524 = vmatprep.subr.mxu0 0.0
    %525 = vmatpush1.msra.mxu0 0.0
    %526 = vmatprep.subr.mxu0 0.0
    %527 = vmatpush1.msra.mxu0 0.0
    %528 = vmatprep.subr.mxu0 0.0
    %529 = vmatpush1.msra.mxu0 0.0
    %530 = vmatprep.subr.mxu0 0.0
    %531 = vmatpush1.msra.mxu0 0.0
    %532 = vmatprep.subr.mxu0 0.0
    %533 = vmatpush1.msra.mxu0 0.0
    %534 = vmatprep.subr.mxu0 0.0
    %535 = vmatpush1.msra.mxu0 0.0
    %536 = vmatprep.subr.mxu0 0.0
    %537 = vmatpush1.msra.mxu0 0.0
    %538 = vmatprep.subr.mxu0 0.0
    %539 = vmatpush1.msra.mxu0 0.0
    %540 = vmatprep.subr.mxu0 0.0
    %541 = vmatpush1.msra.mxu0 0.0
    %542 = vmatprep.subr.mxu0 0.0
    %543 = vmatpush1.msra.mxu0 0.0
    %544 = vmatprep.subr.mxu0 0.0
    %545 = vmatpush1.msra.mxu0 0.0
    %546 = vmatprep.subr.mxu0 0.0
    %547 = vmatpush1.msra.mxu0 0.0
    %548 = vmatprep.subr.mxu0 0.0
    %549 = vmatpush1.msra.mxu0 0.0
    %550 = vmatprep.subr.mxu0 0.0
    %551 = vmatpush1.msra.mxu0 0.0
    %552 = vmatprep.subr.mxu0 0.0
    %553 = vmatpush1.msra.mxu0 0.0
    %554 = vmatprep.subr.mxu0 0.0
    %555 = vmatpush1.msra.mxu0 0.0
    %556 = vmatprep.subr.mxu0 0.0
    %557 = vmatpush1.msra.mxu0 0.0
    %558 = vmatprep.subr.mxu0 0.0
    %559 = vmatpush1.msra.mxu0 0.0
    %560 = vmatprep.subr.mxu0 0.0
    %561 = vmatpush1.msra.mxu0 0.0
    %562 = vmatprep.subr.mxu0 0.0
    %563 = vmatpush1.msra.mxu0 0.0
    %564 = vmatprep.mubr.f32.mxu0 0.0
    %565 = vmatmul.mubr.f32.gmra.mrb[0].mxu0 %v477
    %v566 = vpop.f32.mrb[0].mxu0
    %v567 = vadd.f32 %v438, %v566
    %v568 = vpop.f32.mrb[0].mxu0
    %569 = vmatprep.mubr.f32.mxu0 0.0
    %570 = vmatmul.mubr.f32.gmra.mrb[0].mxu0 %v480
    %v571 = vpop.f32.mrb[0].mxu0
    %v572 = vadd.f32 %v443, %v571
    %v573 = vpop.f32.mrb[0].mxu0
    %574 = vmatprep.mubr.f32.mxu0 0.0
    %575 = vmatmul.mubr.f32.gmra.mrb[0].mxu0 %v483
    %v576 = vpop.f32.mrb[0].mxu0
    %v577 = vadd.f32 %v448, %v576
    %v578 = vpop.f32.mrb[0].mxu0
    %579 = vmatprep.mubr.f32.mxu0 0.0
    %580 = vmatmul.mubr.f32.gmra.mrb[0].mxu0 %v486
    %v581 = vpop.f32.mrb[0].mxu0
    %v582 = vadd.f32 %v453, %v581
    %v583 = vpop.f32.mrb[0].mxu0
    %584 = vmatprep.mubr.f32.mxu0 0.0
    %585 = vmatmul.mubr.f32.gmra.mrb[0].mxu0 %v489
    %v586 = vpop.f32.mrb[0].mxu0
    %v587 = vadd.f32 %v458, %v586
    %v588 = vpop.f32.mrb[0].mxu0
    %589 = vmatprep.mubr.f32.mxu0 0.0
    %590 = vmatmul.mubr.f32.gmra.mrb[0].mxu0 %v492
    %v591 = vpop.f32.mrb[0].mxu0
    %v592 = vadd.f32 %v463, %v591
    %v593 = vpop.f32.mrb[0].mxu0
    %594 = vmatprep.mubr.f32.mxu0 0.0
    %595 = vmatmul.mubr.f32.gmra.mrb[0].mxu0 %v495
    %v596 = vpop.f32.mrb[0].mxu0
    %v597 = vadd.f32 %v468, %v596
    %v598 = vpop.f32.mrb[0].mxu0
    %599 = vmatprep.mubr.f32.mxu0 0.0
    %600 = vmatmul.mubr.f32.gmra.mrb[0].mxu0 %v498
    %v601 = vpop.f32.mrb[0].mxu0
    %v602 = vadd.f32 %v473, %v601
    %v603 = vpop.f32.mrb[0].mxu0
    %604 = vdwg.mxu0
    %v605 = vld [vmem:[%s3] sm:$0xff]
    %v606 = vld [vmem:[%s3 + $0x8] sm:$0xff]
    %v607 = vld [vmem:[%s3 + $0x10] sm:$0xff]
    %v608 = vld [vmem:[%s3 + $0x18] sm:$0xff]
    %v609 = vld [vmem:[%s3 + $0x20] sm:$0xff]
    %v610 = vld [vmem:[%s3 + $0x28] sm:$0xff]
    %v611 = vld [vmem:[%s3 + $0x30] sm:$0xff]
    %v612 = vld [vmem:[%s3 + $0x38] sm:$0xff]
    %v613 = vld [vmem:[%s3 + $0x40] sm:$0xff]
    %v614 = vld [vmem:[%s3 + $0x48] sm:$0xff]
    %v615 = vld [vmem:[%s3 + $0x50] sm:$0xff]
    %v616 = vld [vmem:[%s3 + $0x58] sm:$0xff]
    %v617 = vld [vmem:[%s3 + $0x60] sm:$0xff]
    %v618 = vld [vmem:[%s3 + $0x68] sm:$0xff]
    %v619 = vld [vmem:[%s3 + $0x70] sm:$0xff]
    %v620 = vld [vmem:[%s3 + $0x78] sm:$0xff]
    %v621 = vld [vmem:[%s3 + $0x80] sm:$0xff]
    %v622 = vld [vmem:[%s3 + $0x88] sm:$0xff]
    %v623 = vld [vmem:[%s3 + $0x90] sm:$0xff]
    %v624 = vld [vmem:[%s3 + $0x98] sm:$0xff]
    %v625 = vsel %vm346, %v567, -inf
    %v626 = vsel %vm346, %v572, -inf
    %v627 = vsel %vm346, %v577, -inf
    %v628 = vsel %vm346, %v582, -inf
    %v629 = vmax.f32 %v625, %v626
    %v630 = vmax.f32 %v627, %v628
    %v631 = vmax.f32 %v629, %v630
    %v632 = vrot.slane %v631, 4
    %v633 = vmax.f32 %v631, %v632
    %v634 = vrot.slane %v633, 2
    %v635 = vmax.f32 %v633, %v634
    %v636 = vrot.slane %v635, 1
    %v637 = vmax.f32 %v635, %v636
    %v638 = vsel %vm346, %v587, -inf
    %v639 = vsel %vm346, %v592, -inf
    %v640 = vsel %vm346, %v597, -inf
    %v641 = vsel %vm346, %v602, -inf
    %v642 = vmax.f32 %v638, %v639
    %v643 = vmax.f32 %v640, %v641
    %v644 = vmax.f32 %v642, %v643
    %v645 = vrot.slane %v644, 4
    %v646 = vmax.f32 %v644, %v645
    %v647 = vrot.slane %v646, 2
    %v648 = vmax.f32 %v646, %v647
    %v649 = vrot.slane %v648, 1
    %v650 = vmax.f32 %v648, %v649
    %vm651 = vcmask 1040384
    %v652 = vsel %vm651, %v637, %v650
    %v653 = vmax.f32 %v567, 0.0
    %v654 = vmax.f32 %v572, 0.0
    %v655 = vmax.f32 %v577, 0.0
    %v656 = vmax.f32 %v582, 0.0
    %v657 = vmax.f32 %v587, 0.0
    %v658 = vmax.f32 %v592, 0.0
    %v659 = vmax.f32 %v597, 0.0
    %v660 = vmax.f32 %v602, 0.0
    %v661 = vmax.f32 %v652, 0.0
    %v663 = vsel %vm346, %v661, 0
    %665 = vmatprep.subr.mxu0 0.0
    %666 = vmatpush1.msra.mxu0 %v609
    %667 = vmatprep.subr.mxu0 0.0
    %668 = vmatpush1.msra.mxu0 %v610
    %669 = vmatprep.subr.mxu0 0.0
    %670 = vmatpush1.msra.mxu0 %v611
    %671 = vmatprep.subr.mxu0 0.0
    %672 = vmatpush1.msra.mxu0 %v612
    %673 = vmatprep.subr.mxu0 0.0
    %674 = vmatpush1.msra.mxu0 0.0
    %675 = vmatprep.subr.mxu0 0.0
    %676 = vmatpush1.msra.mxu0 0.0
    %677 = vmatprep.subr.mxu0 0.0
    %678 = vmatpush1.msra.mxu0 0.0
    %679 = vmatprep.subr.mxu0 0.0
    %680 = vmatpush1.msra.mxu0 0.0
    %681 = vmatprep.subr.mxu0 0.0
    %682 = vmatpush1.msra.mxu0 0.0
    %683 = vmatprep.subr.mxu0 0.0
    %684 = vmatpush1.msra.mxu0 0.0
    %685 = vmatprep.subr.mxu0 0.0
    %686 = vmatpush1.msra.mxu0 0.0
    %687 = vmatprep.subr.mxu0 0.0
    %688 = vmatpush1.msra.mxu0 0.0
    %689 = vmatprep.subr.mxu0 0.0
    %690 = vmatpush1.msra.mxu0 0.0
    %691 = vmatprep.subr.mxu0 0.0
    %692 = vmatpush1.msra.mxu0 0.0
    %693 = vmatprep.subr.mxu0 0.0
    %694 = vmatpush1.msra.mxu0 0.0
    %695 = vmatprep.subr.mxu0 0.0
    %696 = vmatpush1.msra.mxu0 0.0
    %697 = vmatprep.subr.mxu0 0.0
    %698 = vmatpush1.msra.mxu0 0.0
    %699 = vmatprep.subr.mxu0 0.0
    %700 = vmatpush1.msra.mxu0 0.0
    %701 = vmatprep.subr.mxu0 0.0
    %702 = vmatpush1.msra.mxu0 0.0
    %703 = vmatprep.subr.mxu0 0.0
    %704 = vmatpush1.msra.mxu0 0.0
    %705 = vmatprep.subr.mxu0 0.0
    %706 = vmatpush1.msra.mxu0 0.0
    %707 = vmatprep.subr.mxu0 0.0
    %708 = vmatpush1.msra.mxu0 0.0
    %709 = vmatprep.subr.mxu0 0.0
    %710 = vmatpush1.msra.mxu0 0.0
    %711 = vmatprep.subr.mxu0 0.0
    %712 = vmatpush1.msra.mxu0 0.0
    %713 = vmatprep.subr.mxu0 0.0
    %714 = vmatpush1.msra.mxu0 0.0
    %715 = vmatprep.subr.mxu0 0.0
    %716 = vmatpush1.msra.mxu0 0.0
    %717 = vmatprep.subr.mxu0 0.0
    %718 = vmatpush1.msra.mxu0 0.0
    %719 = vmatprep.subr.mxu0 0.0
    %720 = vmatpush1.msra.mxu0 0.0
    %721 = vmatprep.subr.mxu0 0.0
    %722 = vmatpush1.msra.mxu0 0.0
    %723 = vmatprep.subr.mxu0 0.0
    %724 = vmatpush1.msra.mxu0 0.0
    %725 = vmatprep.subr.mxu0 0.0
    %726 = vmatpush1.msra.mxu0 0.0
    %727 = vmatprep.subr.mxu0 0.0
    %728 = vmatpush1.msra.mxu0 0.0
    %729 = vmatprep.mubr.f32.mxu0 0.0
    %730 = vmatmul.mubr.f32.gmra.mrb[0].mxu0 %v663
    %v731 = vpop.f32.mrb[0].mxu0
    %v732 = vadd.f32 0.0, %v731
    %v733 = vpop.f32.mrb[0].mxu0
    %734 = vdwg.mxu0
    %v735 = vlaneseq
    %v736 = vshrl.u32 %v735, 7
    %v737 = vsub.s32 0, %v736
    %v738 = vrot.slane %v732, %v737
    %v739 = vlaneseq
    %v740 = vshrl.u32 %v739, 7
    %v741 = vsub.s32 1, %v740
    %v742 = vrot.slane %v732, %v741
    %v744 = vsel %vm346, %v653, 0
    %v747 = vsel %vm346, %v654, 0
    %v750 = vsel %vm346, %v655, 0
    %v753 = vsel %vm346, %v656, 0
    %v756 = vsel %vm346, %v657, 0
    %v759 = vsel %vm346, %v658, 0
    %v762 = vsel %vm346, %v659, 0
    %v765 = vsel %vm346, %v660, 0
    %767 = vmatprep.subr.mxu0 0.0
    %768 = vmatpush1.msra.mxu0 %v605
    %769 = vmatprep.subr.mxu0 0.0
    %770 = vmatpush1.msra.mxu0 %v606
    %771 = vmatprep.subr.mxu0 0.0
    %772 = vmatpush1.msra.mxu0 %v607
    %773 = vmatprep.subr.mxu0 0.0
    %774 = vmatpush1.msra.mxu0 %v608
    %775 = vmatprep.subr.mxu0 0.0
    %776 = vmatpush1.msra.mxu0 0.0
    %777 = vmatprep.subr.mxu0 0.0
    %778 = vmatpush1.msra.mxu0 0.0
    %779 = vmatprep.subr.mxu0 0.0
    %780 = vmatpush1.msra.mxu0 0.0
    %781 = vmatprep.subr.mxu0 0.0
    %782 = vmatpush1.msra.mxu0 0.0
    %783 = vmatprep.subr.mxu0 0.0
    %784 = vmatpush1.msra.mxu0 0.0
    %785 = vmatprep.subr.mxu0 0.0
    %786 = vmatpush1.msra.mxu0 0.0
    %787 = vmatprep.subr.mxu0 0.0
    %788 = vmatpush1.msra.mxu0 0.0
    %789 = vmatprep.subr.mxu0 0.0
    %790 = vmatpush1.msra.mxu0 0.0
    %791 = vmatprep.subr.mxu0 0.0
    %792 = vmatpush1.msra.mxu0 0.0
    %793 = vmatprep.subr.mxu0 0.0
    %794 = vmatpush1.msra.mxu0 0.0
    %795 = vmatprep.subr.mxu0 0.0
    %796 = vmatpush1.msra.mxu0 0.0
    %797 = vmatprep.subr.mxu0 0.0
    %798 = vmatpush1.msra.mxu0 0.0
    %799 = vmatprep.subr.mxu0 0.0
    %800 = vmatpush1.msra.mxu0 0.0
    %801 = vmatprep.subr.mxu0 0.0
    %802 = vmatpush1.msra.mxu0 0.0
    %803 = vmatprep.subr.mxu0 0.0
    %804 = vmatpush1.msra.mxu0 0.0
    %805 = vmatprep.subr.mxu0 0.0
    %806 = vmatpush1.msra.mxu0 0.0
    %807 = vmatprep.subr.mxu0 0.0
    %808 = vmatpush1.msra.mxu0 0.0
    %809 = vmatprep.subr.mxu0 0.0
    %810 = vmatpush1.msra.mxu0 0.0
    %811 = vmatprep.subr.mxu0 0.0
    %812 = vmatpush1.msra.mxu0 0.0
    %813 = vmatprep.subr.mxu0 0.0
    %814 = vmatpush1.msra.mxu0 0.0
    %815 = vmatprep.subr.mxu0 0.0
    %816 = vmatpush1.msra.mxu0 0.0
    %817 = vmatprep.subr.mxu0 0.0
    %818 = vmatpush1.msra.mxu0 0.0
    %819 = vmatprep.subr.mxu0 0.0
    %820 = vmatpush1.msra.mxu0 0.0
    %821 = vmatprep.subr.mxu0 0.0
    %822 = vmatpush1.msra.mxu0 0.0
    %823 = vmatprep.subr.mxu0 0.0
    %824 = vmatpush1.msra.mxu0 0.0
    %825 = vmatprep.subr.mxu0 0.0
    %826 = vmatpush1.msra.mxu0 0.0
    %827 = vmatprep.subr.mxu0 0.0
    %828 = vmatpush1.msra.mxu0 0.0
    %829 = vmatprep.subr.mxu0 0.0
    %830 = vmatpush1.msra.mxu0 0.0
    %831 = vmatprep.mubr.f32.mxu0 0.0
    %832 = vmatmul.mubr.f32.gmra.mrb[0].mxu0 %v744
    %v833 = vpop.f32.mrb[0].mxu0
    %v834 = vadd.f32 %v738, %v833
    %v835 = vpop.f32.mrb[0].mxu0
    %836 = vmatprep.mubr.f32.mxu0 0.0
    %837 = vmatmul.mubr.f32.gmra.mrb[0].mxu0 %v747
    %v838 = vpop.f32.mrb[0].mxu0
    %v839 = vadd.f32 %v738, %v838
    %v840 = vpop.f32.mrb[0].mxu0
    %841 = vmatprep.mubr.f32.mxu0 0.0
    %842 = vmatmul.mubr.f32.gmra.mrb[0].mxu0 %v750
    %v843 = vpop.f32.mrb[0].mxu0
    %v844 = vadd.f32 %v738, %v843
    %v845 = vpop.f32.mrb[0].mxu0
    %846 = vmatprep.mubr.f32.mxu0 0.0
    %847 = vmatmul.mubr.f32.gmra.mrb[0].mxu0 %v753
    %v848 = vpop.f32.mrb[0].mxu0
    %v849 = vadd.f32 %v738, %v848
    %v850 = vpop.f32.mrb[0].mxu0
    %851 = vmatprep.mubr.f32.mxu0 0.0
    %852 = vmatmul.mubr.f32.gmra.mrb[0].mxu0 %v756
    %v853 = vpop.f32.mrb[0].mxu0
    %v854 = vadd.f32 %v742, %v853
    %v855 = vpop.f32.mrb[0].mxu0
    %856 = vmatprep.mubr.f32.mxu0 0.0
    %857 = vmatmul.mubr.f32.gmra.mrb[0].mxu0 %v759
    %v858 = vpop.f32.mrb[0].mxu0
    %v859 = vadd.f32 %v742, %v858
    %v860 = vpop.f32.mrb[0].mxu0
    %861 = vmatprep.mubr.f32.mxu0 0.0
    %862 = vmatmul.mubr.f32.gmra.mrb[0].mxu0 %v762
    %v863 = vpop.f32.mrb[0].mxu0
    %v864 = vadd.f32 %v742, %v863
    %v865 = vpop.f32.mrb[0].mxu0
    %866 = vmatprep.mubr.f32.mxu0 0.0
    %867 = vmatmul.mubr.f32.gmra.mrb[0].mxu0 %v765
    %v868 = vpop.f32.mrb[0].mxu0
    %v869 = vadd.f32 %v742, %v868
    %v870 = vpop.f32.mrb[0].mxu0
    %871 = vdwg.mxu0
    %v872 = vld [vmem:[%s4 + $0x1] sm:$0x1]
    %v873 = vlaneseq
    %v874 = vshrl.u32 %v873, 7
    %v875 = vsub.s32 0, %v874
    %v876 = vrot.slane %v872, %v875
    %v877 = vadd.f32 %v834, %v876
    %v878 = vadd.f32 %v839, %v876
    %v879 = vadd.f32 %v844, %v876
    %v880 = vadd.f32 %v849, %v876
    %v881 = vadd.f32 %v854, %v876
    %v882 = vadd.f32 %v859, %v876
    %v883 = vadd.f32 %v864, %v876
    %v884 = vadd.f32 %v869, %v876
    %v885 = vmax.f32 %v877, 0.0
    %v886 = vmax.f32 %v878, 0.0
    %v887 = vmax.f32 %v879, 0.0
    %v888 = vmax.f32 %v880, 0.0
    %v889 = vmax.f32 %v881, 0.0
    %v890 = vmax.f32 %v882, 0.0
    %v891 = vmax.f32 %v883, 0.0
    %v892 = vmax.f32 %v884, 0.0
    %v893 = vld [vmem:[%s4 + $0x6] sm:$0x1]
    %v894 = vlaneseq
    %v895 = vshrl.u32 %v894, 7
    %v896 = vsub.s32 0, %v895
    %v897 = vrot.slane %v893, %v896
    %v899 = vsel %vm346, %v885, 0
    %v902 = vsel %vm346, %v886, 0
    %v905 = vsel %vm346, %v887, 0
    %v908 = vsel %vm346, %v888, 0
    %v911 = vsel %vm346, %v889, 0
    %v914 = vsel %vm346, %v890, 0
    %v917 = vsel %vm346, %v891, 0
    %v920 = vsel %vm346, %v892, 0
    %922 = vmatprep.subr.mxu0 0.0
    %923 = vmatpush1.msra.mxu0 %v613
    %924 = vmatprep.subr.mxu0 0.0
    %925 = vmatpush1.msra.mxu0 %v614
    %926 = vmatprep.subr.mxu0 0.0
    %927 = vmatpush1.msra.mxu0 %v615
    %928 = vmatprep.subr.mxu0 0.0
    %929 = vmatpush1.msra.mxu0 %v616
    %930 = vmatprep.subr.mxu0 0.0
    %931 = vmatpush1.msra.mxu0 0.0
    %932 = vmatprep.subr.mxu0 0.0
    %933 = vmatpush1.msra.mxu0 0.0
    %934 = vmatprep.subr.mxu0 0.0
    %935 = vmatpush1.msra.mxu0 0.0
    %936 = vmatprep.subr.mxu0 0.0
    %937 = vmatpush1.msra.mxu0 0.0
    %938 = vmatprep.subr.mxu0 0.0
    %939 = vmatpush1.msra.mxu0 0.0
    %940 = vmatprep.subr.mxu0 0.0
    %941 = vmatpush1.msra.mxu0 0.0
    %942 = vmatprep.subr.mxu0 0.0
    %943 = vmatpush1.msra.mxu0 0.0
    %944 = vmatprep.subr.mxu0 0.0
    %945 = vmatpush1.msra.mxu0 0.0
    %946 = vmatprep.subr.mxu0 0.0
    %947 = vmatpush1.msra.mxu0 0.0
    %948 = vmatprep.subr.mxu0 0.0
    %949 = vmatpush1.msra.mxu0 0.0
    %950 = vmatprep.subr.mxu0 0.0
    %951 = vmatpush1.msra.mxu0 0.0
    %952 = vmatprep.subr.mxu0 0.0
    %953 = vmatpush1.msra.mxu0 0.0
    %954 = vmatprep.subr.mxu0 0.0
    %955 = vmatpush1.msra.mxu0 0.0
    %956 = vmatprep.subr.mxu0 0.0
    %957 = vmatpush1.msra.mxu0 0.0
    %958 = vmatprep.subr.mxu0 0.0
    %959 = vmatpush1.msra.mxu0 0.0
    %960 = vmatprep.subr.mxu0 0.0
    %961 = vmatpush1.msra.mxu0 0.0
    %962 = vmatprep.subr.mxu0 0.0
    %963 = vmatpush1.msra.mxu0 0.0
    %964 = vmatprep.subr.mxu0 0.0
    %965 = vmatpush1.msra.mxu0 0.0
    %966 = vmatprep.subr.mxu0 0.0
    %967 = vmatpush1.msra.mxu0 0.0
    %968 = vmatprep.subr.mxu0 0.0
    %969 = vmatpush1.msra.mxu0 0.0
    %970 = vmatprep.subr.mxu0 0.0
    %971 = vmatpush1.msra.mxu0 0.0
    %972 = vmatprep.subr.mxu0 0.0
    %973 = vmatpush1.msra.mxu0 0.0
    %974 = vmatprep.subr.mxu0 0.0
    %975 = vmatpush1.msra.mxu0 0.0
    %976 = vmatprep.subr.mxu0 0.0
    %977 = vmatpush1.msra.mxu0 0.0
    %978 = vmatprep.subr.mxu0 0.0
    %979 = vmatpush1.msra.mxu0 0.0
    %980 = vmatprep.subr.mxu0 0.0
    %981 = vmatpush1.msra.mxu0 0.0
    %982 = vmatprep.subr.mxu0 0.0
    %983 = vmatpush1.msra.mxu0 0.0
    %984 = vmatprep.subr.mxu0 0.0
    %985 = vmatpush1.msra.mxu0 0.0
    %986 = vmatprep.mubr.f32.mxu0 0.0
    %987 = vmatmul.mubr.f32.gmra.mrb[0].mxu0 %v899
    %v988 = vpop.f32.mrb[0].mxu0
    %v989 = vadd.f32 %v897, %v988
    %v990 = vpop.f32.mrb[0].mxu0
    %991 = vmatprep.mubr.f32.mxu0 0.0
    %992 = vmatmul.mubr.f32.gmra.mrb[0].mxu0 %v902
    %v993 = vpop.f32.mrb[0].mxu0
    %v994 = vadd.f32 %v897, %v993
    %v995 = vpop.f32.mrb[0].mxu0
    %996 = vmatprep.mubr.f32.mxu0 0.0
    %997 = vmatmul.mubr.f32.gmra.mrb[0].mxu0 %v905
    %v998 = vpop.f32.mrb[0].mxu0
    %v999 = vadd.f32 %v897, %v998
    %v1000 = vpop.f32.mrb[0].mxu0
    %1001 = vmatprep.mubr.f32.mxu0 0.0
    %1002 = vmatmul.mubr.f32.gmra.mrb[0].mxu0 %v908
    %v1003 = vpop.f32.mrb[0].mxu0
    %v1004 = vadd.f32 %v897, %v1003
    %v1005 = vpop.f32.mrb[0].mxu0
    %1006 = vmatprep.mubr.f32.mxu0 0.0
    %1007 = vmatmul.mubr.f32.gmra.mrb[0].mxu0 %v911
    %v1008 = vpop.f32.mrb[0].mxu0
    %v1009 = vadd.f32 %v897, %v1008
    %v1010 = vpop.f32.mrb[0].mxu0
    %1011 = vmatprep.mubr.f32.mxu0 0.0
    %1012 = vmatmul.mubr.f32.gmra.mrb[0].mxu0 %v914
    %v1013 = vpop.f32.mrb[0].mxu0
    %v1014 = vadd.f32 %v897, %v1013
    %v1015 = vpop.f32.mrb[0].mxu0
    %1016 = vmatprep.mubr.f32.mxu0 0.0
    %1017 = vmatmul.mubr.f32.gmra.mrb[0].mxu0 %v917
    %v1018 = vpop.f32.mrb[0].mxu0
    %v1019 = vadd.f32 %v897, %v1018
    %v1020 = vpop.f32.mrb[0].mxu0
    %1021 = vmatprep.mubr.f32.mxu0 0.0
    %1022 = vmatmul.mubr.f32.gmra.mrb[0].mxu0 %v920
    %v1023 = vpop.f32.mrb[0].mxu0
    %v1024 = vadd.f32 %v897, %v1023
    %v1025 = vpop.f32.mrb[0].mxu0
    %1026 = vdwg.mxu0
    %v1028 = vsel %vm346, %v652, 0
    %1030 = vmatprep.subr.mxu0 0.0
    %1031 = vmatpush1.msra.mxu0 %v621
    %1032 = vmatprep.subr.mxu0 0.0
    %1033 = vmatpush1.msra.mxu0 %v622
    %1034 = vmatprep.subr.mxu0 0.0
    %1035 = vmatpush1.msra.mxu0 %v623
    %1036 = vmatprep.subr.mxu0 0.0
    %1037 = vmatpush1.msra.mxu0 %v624
    %1038 = vmatprep.subr.mxu0 0.0
    %1039 = vmatpush1.msra.mxu0 0.0
    %1040 = vmatprep.subr.mxu0 0.0
    %1041 = vmatpush1.msra.mxu0 0.0
    %1042 = vmatprep.subr.mxu0 0.0
    %1043 = vmatpush1.msra.mxu0 0.0
    %1044 = vmatprep.subr.mxu0 0.0
    %1045 = vmatpush1.msra.mxu0 0.0
    %1046 = vmatprep.subr.mxu0 0.0
    %1047 = vmatpush1.msra.mxu0 0.0
    %1048 = vmatprep.subr.mxu0 0.0
    %1049 = vmatpush1.msra.mxu0 0.0
    %1050 = vmatprep.subr.mxu0 0.0
    %1051 = vmatpush1.msra.mxu0 0.0
    %1052 = vmatprep.subr.mxu0 0.0
    %1053 = vmatpush1.msra.mxu0 0.0
    %1054 = vmatprep.subr.mxu0 0.0
    %1055 = vmatpush1.msra.mxu0 0.0
    %1056 = vmatprep.subr.mxu0 0.0
    %1057 = vmatpush1.msra.mxu0 0.0
    %1058 = vmatprep.subr.mxu0 0.0
    %1059 = vmatpush1.msra.mxu0 0.0
    %1060 = vmatprep.subr.mxu0 0.0
    %1061 = vmatpush1.msra.mxu0 0.0
    %1062 = vmatprep.subr.mxu0 0.0
    %1063 = vmatpush1.msra.mxu0 0.0
    %1064 = vmatprep.subr.mxu0 0.0
    %1065 = vmatpush1.msra.mxu0 0.0
    %1066 = vmatprep.subr.mxu0 0.0
    %1067 = vmatpush1.msra.mxu0 0.0
    %1068 = vmatprep.subr.mxu0 0.0
    %1069 = vmatpush1.msra.mxu0 0.0
    %1070 = vmatprep.subr.mxu0 0.0
    %1071 = vmatpush1.msra.mxu0 0.0
    %1072 = vmatprep.subr.mxu0 0.0
    %1073 = vmatpush1.msra.mxu0 0.0
    %1074 = vmatprep.subr.mxu0 0.0
    %1075 = vmatpush1.msra.mxu0 0.0
    %1076 = vmatprep.subr.mxu0 0.0
    %1077 = vmatpush1.msra.mxu0 0.0
    %1078 = vmatprep.subr.mxu0 0.0
    %1079 = vmatpush1.msra.mxu0 0.0
    %1080 = vmatprep.subr.mxu0 0.0
    %1081 = vmatpush1.msra.mxu0 0.0
    %1082 = vmatprep.subr.mxu0 0.0
    %1083 = vmatpush1.msra.mxu0 0.0
    %1084 = vmatprep.subr.mxu0 0.0
    %1085 = vmatpush1.msra.mxu0 0.0
    %1086 = vmatprep.subr.mxu0 0.0
    %1087 = vmatpush1.msra.mxu0 0.0
    %1088 = vmatprep.subr.mxu0 0.0
    %1089 = vmatpush1.msra.mxu0 0.0
    %1090 = vmatprep.subr.mxu0 0.0
    %1091 = vmatpush1.msra.mxu0 0.0
    %1092 = vmatprep.subr.mxu0 0.0
    %1093 = vmatpush1.msra.mxu0 0.0
    %1094 = vmatprep.mubr.f32.mxu0 0.0
    %1095 = vmatmul.mubr.f32.gmra.mrb[0].mxu0 %v1028
    %v1096 = vpop.f32.mrb[0].mxu0
    %v1097 = vadd.f32 0.0, %v1096
    %v1098 = vpop.f32.mrb[0].mxu0
    %1099 = vdwg.mxu0
    %v1100 = vlaneseq
    %v1101 = vshrl.u32 %v1100, 7
    %v1102 = vsub.s32 0, %v1101
    %v1103 = vrot.slane %v1097, %v1102
    %v1104 = vlaneseq
    %v1105 = vshrl.u32 %v1104, 7
    %v1106 = vsub.s32 1, %v1105
    %v1107 = vrot.slane %v1097, %v1106
    %v1109 = vsel %vm346, %v567, 0
    %v1112 = vsel %vm346, %v572, 0
    %v1115 = vsel %vm346, %v577, 0
    %v1118 = vsel %vm346, %v582, 0
    %v1121 = vsel %vm346, %v587, 0
    %v1124 = vsel %vm346, %v592, 0
    %v1127 = vsel %vm346, %v597, 0
    %v1130 = vsel %vm346, %v602, 0
    %1132 = vmatprep.subr.mxu0 0.0
    %1133 = vmatpush1.msra.mxu0 %v617
    %1134 = vmatprep.subr.mxu0 0.0
    %1135 = vmatpush1.msra.mxu0 %v618
    %1136 = vmatprep.subr.mxu0 0.0
    %1137 = vmatpush1.msra.mxu0 %v619
    %1138 = vmatprep.subr.mxu0 0.0
    %1139 = vmatpush1.msra.mxu0 %v620
    %1140 = vmatprep.subr.mxu0 0.0
    %1141 = vmatpush1.msra.mxu0 0.0
    %1142 = vmatprep.subr.mxu0 0.0
    %1143 = vmatpush1.msra.mxu0 0.0
    %1144 = vmatprep.subr.mxu0 0.0
    %1145 = vmatpush1.msra.mxu0 0.0
    %1146 = vmatprep.subr.mxu0 0.0
    %1147 = vmatpush1.msra.mxu0 0.0
    %1148 = vmatprep.subr.mxu0 0.0
    %1149 = vmatpush1.msra.mxu0 0.0
    %1150 = vmatprep.subr.mxu0 0.0
    %1151 = vmatpush1.msra.mxu0 0.0
    %1152 = vmatprep.subr.mxu0 0.0
    %1153 = vmatpush1.msra.mxu0 0.0
    %1154 = vmatprep.subr.mxu0 0.0
    %1155 = vmatpush1.msra.mxu0 0.0
    %1156 = vmatprep.subr.mxu0 0.0
    %1157 = vmatpush1.msra.mxu0 0.0
    %1158 = vmatprep.subr.mxu0 0.0
    %1159 = vmatpush1.msra.mxu0 0.0
    %1160 = vmatprep.subr.mxu0 0.0
    %1161 = vmatpush1.msra.mxu0 0.0
    %1162 = vmatprep.subr.mxu0 0.0
    %1163 = vmatpush1.msra.mxu0 0.0
    %1164 = vmatprep.subr.mxu0 0.0
    %1165 = vmatpush1.msra.mxu0 0.0
    %1166 = vmatprep.subr.mxu0 0.0
    %1167 = vmatpush1.msra.mxu0 0.0
    %1168 = vmatprep.subr.mxu0 0.0
    %1169 = vmatpush1.msra.mxu0 0.0
    %1170 = vmatprep.subr.mxu0 0.0
    %1171 = vmatpush1.msra.mxu0 0.0
    %1172 = vmatprep.subr.mxu0 0.0
    %1173 = vmatpush1.msra.mxu0 0.0
    %1174 = vmatprep.subr.mxu0 0.0
    %1175 = vmatpush1.msra.mxu0 0.0
    %1176 = vmatprep.subr.mxu0 0.0
    %1177 = vmatpush1.msra.mxu0 0.0
    %1178 = vmatprep.subr.mxu0 0.0
    %1179 = vmatpush1.msra.mxu0 0.0
    %1180 = vmatprep.subr.mxu0 0.0
    %1181 = vmatpush1.msra.mxu0 0.0
    %1182 = vmatprep.subr.mxu0 0.0
    %1183 = vmatpush1.msra.mxu0 0.0
    %1184 = vmatprep.subr.mxu0 0.0
    %1185 = vmatpush1.msra.mxu0 0.0
    %1186 = vmatprep.subr.mxu0 0.0
    %1187 = vmatpush1.msra.mxu0 0.0
    %1188 = vmatprep.subr.mxu0 0.0
    %1189 = vmatpush1.msra.mxu0 0.0
    %1190 = vmatprep.subr.mxu0 0.0
    %1191 = vmatpush1.msra.mxu0 0.0
    %1192 = vmatprep.subr.mxu0 0.0
    %1193 = vmatpush1.msra.mxu0 0.0
    %1194 = vmatprep.subr.mxu0 0.0
    %1195 = vmatpush1.msra.mxu0 0.0
    %1196 = vmatprep.mubr.f32.mxu0 0.0
    %1197 = vmatmul.mubr.f32.gmra.mrb[0].mxu0 %v1109
    %v1198 = vpop.f32.mrb[0].mxu0
    %v1199 = vadd.f32 %v1103, %v1198
    %v1200 = vpop.f32.mrb[0].mxu0
    %1201 = vmatprep.mubr.f32.mxu0 0.0
    %1202 = vmatmul.mubr.f32.gmra.mrb[0].mxu0 %v1112
    %v1203 = vpop.f32.mrb[0].mxu0
    %v1204 = vadd.f32 %v1103, %v1203
    %v1205 = vpop.f32.mrb[0].mxu0
    %1206 = vmatprep.mubr.f32.mxu0 0.0
    %1207 = vmatmul.mubr.f32.gmra.mrb[0].mxu0 %v1115
    %v1208 = vpop.f32.mrb[0].mxu0
    %v1209 = vadd.f32 %v1103, %v1208
    %v1210 = vpop.f32.mrb[0].mxu0
    %1211 = vmatprep.mubr.f32.mxu0 0.0
    %1212 = vmatmul.mubr.f32.gmra.mrb[0].mxu0 %v1118
    %v1213 = vpop.f32.mrb[0].mxu0
    %v1214 = vadd.f32 %v1103, %v1213
    %v1215 = vpop.f32.mrb[0].mxu0
    %1216 = vmatprep.mubr.f32.mxu0 0.0
    %1217 = vmatmul.mubr.f32.gmra.mrb[0].mxu0 %v1121
    %v1218 = vpop.f32.mrb[0].mxu0
    %v1219 = vadd.f32 %v1107, %v1218
    %v1220 = vpop.f32.mrb[0].mxu0
    %1221 = vmatprep.mubr.f32.mxu0 0.0
    %1222 = vmatmul.mubr.f32.gmra.mrb[0].mxu0 %v1124
    %v1223 = vpop.f32.mrb[0].mxu0
    %v1224 = vadd.f32 %v1107, %v1223
    %v1225 = vpop.f32.mrb[0].mxu0
    %1226 = vmatprep.mubr.f32.mxu0 0.0
    %1227 = vmatmul.mubr.f32.gmra.mrb[0].mxu0 %v1127
    %v1228 = vpop.f32.mrb[0].mxu0
    %v1229 = vadd.f32 %v1107, %v1228
    %v1230 = vpop.f32.mrb[0].mxu0
    %1231 = vmatprep.mubr.f32.mxu0 0.0
    %1232 = vmatmul.mubr.f32.gmra.mrb[0].mxu0 %v1130
    %v1233 = vpop.f32.mrb[0].mxu0
    %v1234 = vadd.f32 %v1107, %v1233
    %v1235 = vpop.f32.mrb[0].mxu0
    %1236 = vdwg.mxu0
    %v1237 = vadd.f32 %v1199, %v989
    %v1238 = vadd.f32 %v1204, %v994
    %v1239 = vadd.f32 %v1209, %v999
    %v1240 = vadd.f32 %v1214, %v1004
    %v1241 = vadd.f32 %v1219, %v1009
    %v1242 = vadd.f32 %v1224, %v1014
    %v1243 = vadd.f32 %v1229, %v1019
    %v1244 = vadd.f32 %v1234, %v1024
    %v1245 = vld [vmem:[%s3 + $0xa0] sm:$0xff]
    %v1246 = vld [vmem:[%s3 + $0xa8] sm:$0xff]
    %v1247 = vld [vmem:[%s3 + $0xb0] sm:$0xff]
    %v1248 = vld [vmem:[%s3 + $0xb8] sm:$0xff]
    %v1249 = vld [vmem:[%s3 + $0xc0] sm:$0xff]
    %v1250 = vld [vmem:[%s3 + $0xc8] sm:$0xff]
    %v1251 = vld [vmem:[%s3 + $0xd0] sm:$0xff]
    %v1252 = vld [vmem:[%s3 + $0xd8] sm:$0xff]
    %v1253 = vld [vmem:[%s3 + $0xe0] sm:$0xff]
    %v1254 = vld [vmem:[%s3 + $0xe8] sm:$0xff]
    %v1255 = vld [vmem:[%s3 + $0xf0] sm:$0xff]
    %v1256 = vld [vmem:[%s3 + $0xf8] sm:$0xff]
    %v1257 = vld [vmem:[%s3 + $0x100] sm:$0xff]
    %v1258 = vld [vmem:[%s3 + $0x108] sm:$0xff]
    %v1259 = vld [vmem:[%s3 + $0x110] sm:$0xff]
    %v1260 = vld [vmem:[%s3 + $0x118] sm:$0xff]
    %v1261 = vld [vmem:[%s3 + $0x120] sm:$0xff]
    %v1262 = vld [vmem:[%s3 + $0x128] sm:$0xff]
    %v1263 = vld [vmem:[%s3 + $0x130] sm:$0xff]
    %v1264 = vld [vmem:[%s3 + $0x138] sm:$0xff]
    %v1265 = vsel %vm346, %v1237, -inf
    %v1266 = vsel %vm346, %v1238, -inf
    %v1267 = vsel %vm346, %v1239, -inf
    %v1268 = vsel %vm346, %v1240, -inf
    %v1269 = vmax.f32 %v1265, %v1266
    %v1270 = vmax.f32 %v1267, %v1268
    %v1271 = vmax.f32 %v1269, %v1270
    %v1272 = vrot.slane %v1271, 4
    %v1273 = vmax.f32 %v1271, %v1272
    %v1274 = vrot.slane %v1273, 2
    %v1275 = vmax.f32 %v1273, %v1274
    %v1276 = vrot.slane %v1275, 1
    %v1277 = vmax.f32 %v1275, %v1276
    %v1278 = vsel %vm346, %v1241, -inf
    %v1279 = vsel %vm346, %v1242, -inf
    %v1280 = vsel %vm346, %v1243, -inf
    %v1281 = vsel %vm346, %v1244, -inf
    %v1282 = vmax.f32 %v1278, %v1279
    %v1283 = vmax.f32 %v1280, %v1281
    %v1284 = vmax.f32 %v1282, %v1283
    %v1285 = vrot.slane %v1284, 4
    %v1286 = vmax.f32 %v1284, %v1285
    %v1287 = vrot.slane %v1286, 2
    %v1288 = vmax.f32 %v1286, %v1287
    %v1289 = vrot.slane %v1288, 1
    %v1290 = vmax.f32 %v1288, %v1289
    %v1291 = vsel %vm651, %v1277, %v1290
    %v1292 = vmax.f32 %v1237, 0.0
    %v1293 = vmax.f32 %v1238, 0.0
    %v1294 = vmax.f32 %v1239, 0.0
    %v1295 = vmax.f32 %v1240, 0.0
    %v1296 = vmax.f32 %v1241, 0.0
    %v1297 = vmax.f32 %v1242, 0.0
    %v1298 = vmax.f32 %v1243, 0.0
    %v1299 = vmax.f32 %v1244, 0.0
    %v1300 = vmax.f32 %v1291, 0.0
    %v1302 = vsel %vm346, %v1300, 0
    %1304 = vmatprep.subr.mxu0 0.0
    %1305 = vmatpush1.msra.mxu0 %v1249
    %1306 = vmatprep.subr.mxu0 0.0
    %1307 = vmatpush1.msra.mxu0 %v1250
    %1308 = vmatprep.subr.mxu0 0.0
    %1309 = vmatpush1.msra.mxu0 %v1251
    %1310 = vmatprep.subr.mxu0 0.0
    %1311 = vmatpush1.msra.mxu0 %v1252
    %1312 = vmatprep.subr.mxu0 0.0
    %1313 = vmatpush1.msra.mxu0 0.0
    %1314 = vmatprep.subr.mxu0 0.0
    %1315 = vmatpush1.msra.mxu0 0.0
    %1316 = vmatprep.subr.mxu0 0.0
    %1317 = vmatpush1.msra.mxu0 0.0
    %1318 = vmatprep.subr.mxu0 0.0
    %1319 = vmatpush1.msra.mxu0 0.0
    %1320 = vmatprep.subr.mxu0 0.0
    %1321 = vmatpush1.msra.mxu0 0.0
    %1322 = vmatprep.subr.mxu0 0.0
    %1323 = vmatpush1.msra.mxu0 0.0
    %1324 = vmatprep.subr.mxu0 0.0
    %1325 = vmatpush1.msra.mxu0 0.0
    %1326 = vmatprep.subr.mxu0 0.0
    %1327 = vmatpush1.msra.mxu0 0.0
    %1328 = vmatprep.subr.mxu0 0.0
    %1329 = vmatpush1.msra.mxu0 0.0
    %1330 = vmatprep.subr.mxu0 0.0
    %1331 = vmatpush1.msra.mxu0 0.0
    %1332 = vmatprep.subr.mxu0 0.0
    %1333 = vmatpush1.msra.mxu0 0.0
    %1334 = vmatprep.subr.mxu0 0.0
    %1335 = vmatpush1.msra.mxu0 0.0
    %1336 = vmatprep.subr.mxu0 0.0
    %1337 = vmatpush1.msra.mxu0 0.0
    %1338 = vmatprep.subr.mxu0 0.0
    %1339 = vmatpush1.msra.mxu0 0.0
    %1340 = vmatprep.subr.mxu0 0.0
    %1341 = vmatpush1.msra.mxu0 0.0
    %1342 = vmatprep.subr.mxu0 0.0
    %1343 = vmatpush1.msra.mxu0 0.0
    %1344 = vmatprep.subr.mxu0 0.0
    %1345 = vmatpush1.msra.mxu0 0.0
    %1346 = vmatprep.subr.mxu0 0.0
    %1347 = vmatpush1.msra.mxu0 0.0
    %1348 = vmatprep.subr.mxu0 0.0
    %1349 = vmatpush1.msra.mxu0 0.0
    %1350 = vmatprep.subr.mxu0 0.0
    %1351 = vmatpush1.msra.mxu0 0.0
    %1352 = vmatprep.subr.mxu0 0.0
    %1353 = vmatpush1.msra.mxu0 0.0
    %1354 = vmatprep.subr.mxu0 0.0
    %1355 = vmatpush1.msra.mxu0 0.0
    %1356 = vmatprep.subr.mxu0 0.0
    %1357 = vmatpush1.msra.mxu0 0.0
    %1358 = vmatprep.subr.mxu0 0.0
    %1359 = vmatpush1.msra.mxu0 0.0
    %1360 = vmatprep.subr.mxu0 0.0
    %1361 = vmatpush1.msra.mxu0 0.0
    %1362 = vmatprep.subr.mxu0 0.0
    %1363 = vmatpush1.msra.mxu0 0.0
    %1364 = vmatprep.subr.mxu0 0.0
    %1365 = vmatpush1.msra.mxu0 0.0
    %1366 = vmatprep.subr.mxu0 0.0
    %1367 = vmatpush1.msra.mxu0 0.0
    %1368 = vmatprep.mubr.f32.mxu0 0.0
    %1369 = vmatmul.mubr.f32.gmra.mrb[0].mxu0 %v1302
    %v1370 = vpop.f32.mrb[0].mxu0
    %v1371 = vadd.f32 0.0, %v1370
    %v1372 = vpop.f32.mrb[0].mxu0
    %1373 = vdwg.mxu0
    %v1374 = vlaneseq
    %v1375 = vshrl.u32 %v1374, 7
    %v1376 = vsub.s32 0, %v1375
    %v1377 = vrot.slane %v1371, %v1376
    %v1378 = vlaneseq
    %v1379 = vshrl.u32 %v1378, 7
    %v1380 = vsub.s32 1, %v1379
    %v1381 = vrot.slane %v1371, %v1380
    %v1383 = vsel %vm346, %v1292, 0
    %v1386 = vsel %vm346, %v1293, 0
    %v1389 = vsel %vm346, %v1294, 0
    %v1392 = vsel %vm346, %v1295, 0
    %v1395 = vsel %vm346, %v1296, 0
    %v1398 = vsel %vm346, %v1297, 0
    %v1401 = vsel %vm346, %v1298, 0
    %v1404 = vsel %vm346, %v1299, 0
    %1406 = vmatprep.subr.mxu0 0.0
    %1407 = vmatpush1.msra.mxu0 %v1245
    %1408 = vmatprep.subr.mxu0 0.0
    %1409 = vmatpush1.msra.mxu0 %v1246
    %1410 = vmatprep.subr.mxu0 0.0
    %1411 = vmatpush1.msra.mxu0 %v1247
    %1412 = vmatprep.subr.mxu0 0.0
    %1413 = vmatpush1.msra.mxu0 %v1248
    %1414 = vmatprep.subr.mxu0 0.0
    %1415 = vmatpush1.msra.mxu0 0.0
    %1416 = vmatprep.subr.mxu0 0.0
    %1417 = vmatpush1.msra.mxu0 0.0
    %1418 = vmatprep.subr.mxu0 0.0
    %1419 = vmatpush1.msra.mxu0 0.0
    %1420 = vmatprep.subr.mxu0 0.0
    %1421 = vmatpush1.msra.mxu0 0.0
    %1422 = vmatprep.subr.mxu0 0.0
    %1423 = vmatpush1.msra.mxu0 0.0
    %1424 = vmatprep.subr.mxu0 0.0
    %1425 = vmatpush1.msra.mxu0 0.0
    %1426 = vmatprep.subr.mxu0 0.0
    %1427 = vmatpush1.msra.mxu0 0.0
    %1428 = vmatprep.subr.mxu0 0.0
    %1429 = vmatpush1.msra.mxu0 0.0
    %1430 = vmatprep.subr.mxu0 0.0
    %1431 = vmatpush1.msra.mxu0 0.0
    %1432 = vmatprep.subr.mxu0 0.0
    %1433 = vmatpush1.msra.mxu0 0.0
    %1434 = vmatprep.subr.mxu0 0.0
    %1435 = vmatpush1.msra.mxu0 0.0
    %1436 = vmatprep.subr.mxu0 0.0
    %1437 = vmatpush1.msra.mxu0 0.0
    %1438 = vmatprep.subr.mxu0 0.0
    %1439 = vmatpush1.msra.mxu0 0.0
    %1440 = vmatprep.subr.mxu0 0.0
    %1441 = vmatpush1.msra.mxu0 0.0
    %1442 = vmatprep.subr.mxu0 0.0
    %1443 = vmatpush1.msra.mxu0 0.0
    %1444 = vmatprep.subr.mxu0 0.0
    %1445 = vmatpush1.msra.mxu0 0.0
    %1446 = vmatprep.subr.mxu0 0.0
    %1447 = vmatpush1.msra.mxu0 0.0
    %1448 = vmatprep.subr.mxu0 0.0
    %1449 = vmatpush1.msra.mxu0 0.0
    %1450 = vmatprep.subr.mxu0 0.0
    %1451 = vmatpush1.msra.mxu0 0.0
    %1452 = vmatprep.subr.mxu0 0.0
    %1453 = vmatpush1.msra.mxu0 0.0
    %1454 = vmatprep.subr.mxu0 0.0
    %1455 = vmatpush1.msra.mxu0 0.0
    %1456 = vmatprep.subr.mxu0 0.0
    %1457 = vmatpush1.msra.mxu0 0.0
    %1458 = vmatprep.subr.mxu0 0.0
    %1459 = vmatpush1.msra.mxu0 0.0
    %1460 = vmatprep.subr.mxu0 0.0
    %1461 = vmatpush1.msra.mxu0 0.0
    %1462 = vmatprep.subr.mxu0 0.0
    %1463 = vmatpush1.msra.mxu0 0.0
    %1464 = vmatprep.subr.mxu0 0.0
    %1465 = vmatpush1.msra.mxu0 0.0
    %1466 = vmatprep.subr.mxu0 0.0
    %1467 = vmatpush1.msra.mxu0 0.0
    %1468 = vmatprep.subr.mxu0 0.0
    %1469 = vmatpush1.msra.mxu0 0.0
    %1470 = vmatprep.mubr.f32.mxu0 0.0
    %1471 = vmatmul.mubr.f32.gmra.mrb[0].mxu0 %v1383
    %v1472 = vpop.f32.mrb[0].mxu0
    %v1473 = vadd.f32 %v1377, %v1472
    %v1474 = vpop.f32.mrb[0].mxu0
    %1475 = vmatprep.mubr.f32.mxu0 0.0
    %1476 = vmatmul.mubr.f32.gmra.mrb[0].mxu0 %v1386
    %v1477 = vpop.f32.mrb[0].mxu0
    %v1478 = vadd.f32 %v1377, %v1477
    %v1479 = vpop.f32.mrb[0].mxu0
    %1480 = vmatprep.mubr.f32.mxu0 0.0
    %1481 = vmatmul.mubr.f32.gmra.mrb[0].mxu0 %v1389
    %v1482 = vpop.f32.mrb[0].mxu0
    %v1483 = vadd.f32 %v1377, %v1482
    %v1484 = vpop.f32.mrb[0].mxu0
    %1485 = vmatprep.mubr.f32.mxu0 0.0
    %1486 = vmatmul.mubr.f32.gmra.mrb[0].mxu0 %v1392
    %v1487 = vpop.f32.mrb[0].mxu0
    %v1488 = vadd.f32 %v1377, %v1487
    %v1489 = vpop.f32.mrb[0].mxu0
    %1490 = vmatprep.mubr.f32.mxu0 0.0
    %1491 = vmatmul.mubr.f32.gmra.mrb[0].mxu0 %v1395
    %v1492 = vpop.f32.mrb[0].mxu0
    %v1493 = vadd.f32 %v1381, %v1492
    %v1494 = vpop.f32.mrb[0].mxu0
    %1495 = vmatprep.mubr.f32.mxu0 0.0
    %1496 = vmatmul.mubr.f32.gmra.mrb[0].mxu0 %v1398
    %v1497 = vpop.f32.mrb[0].mxu0
    %v1498 = vadd.f32 %v1381, %v1497
    %v1499 = vpop.f32.mrb[0].mxu0
    %1500 = vmatprep.mubr.f32.mxu0 0.0
    %1501 = vmatmul.mubr.f32.gmra.mrb[0].mxu0 %v1401
    %v1502 = vpop.f32.mrb[0].mxu0
    %v1503 = vadd.f32 %v1381, %v1502
    %v1504 = vpop.f32.mrb[0].mxu0
    %1505 = vmatprep.mubr.f32.mxu0 0.0
    %1506 = vmatmul.mubr.f32.gmra.mrb[0].mxu0 %v1404
    %v1507 = vpop.f32.mrb[0].mxu0
    %v1508 = vadd.f32 %v1381, %v1507
    %v1509 = vpop.f32.mrb[0].mxu0
    %1510 = vdwg.mxu0
    %v1511 = vld [vmem:[%s4 + $0x2] sm:$0x1]
    %v1512 = vlaneseq
    %v1513 = vshrl.u32 %v1512, 7
    %v1514 = vsub.s32 0, %v1513
    %v1515 = vrot.slane %v1511, %v1514
    %v1516 = vadd.f32 %v1473, %v1515
    %v1517 = vadd.f32 %v1478, %v1515
    %v1518 = vadd.f32 %v1483, %v1515
    %v1519 = vadd.f32 %v1488, %v1515
    %v1520 = vadd.f32 %v1493, %v1515
    %v1521 = vadd.f32 %v1498, %v1515
    %v1522 = vadd.f32 %v1503, %v1515
    %v1523 = vadd.f32 %v1508, %v1515
    %v1524 = vmax.f32 %v1516, 0.0
    %v1525 = vmax.f32 %v1517, 0.0
    %v1526 = vmax.f32 %v1518, 0.0
    %v1527 = vmax.f32 %v1519, 0.0
    %v1528 = vmax.f32 %v1520, 0.0
    %v1529 = vmax.f32 %v1521, 0.0
    %v1530 = vmax.f32 %v1522, 0.0
    %v1531 = vmax.f32 %v1523, 0.0
    %v1532 = vld [vmem:[%s4 + $0x7] sm:$0x1]
    %v1533 = vlaneseq
    %v1534 = vshrl.u32 %v1533, 7
    %v1535 = vsub.s32 0, %v1534
    %v1536 = vrot.slane %v1532, %v1535
    %v1538 = vsel %vm346, %v1524, 0
    %v1541 = vsel %vm346, %v1525, 0
    %v1544 = vsel %vm346, %v1526, 0
    %v1547 = vsel %vm346, %v1527, 0
    %v1550 = vsel %vm346, %v1528, 0
    %v1553 = vsel %vm346, %v1529, 0
    %v1556 = vsel %vm346, %v1530, 0
    %v1559 = vsel %vm346, %v1531, 0
    %1561 = vmatprep.subr.mxu0 0.0
    %1562 = vmatpush1.msra.mxu0 %v1253
    %1563 = vmatprep.subr.mxu0 0.0
    %1564 = vmatpush1.msra.mxu0 %v1254
    %1565 = vmatprep.subr.mxu0 0.0
    %1566 = vmatpush1.msra.mxu0 %v1255
    %1567 = vmatprep.subr.mxu0 0.0
    %1568 = vmatpush1.msra.mxu0 %v1256
    %1569 = vmatprep.subr.mxu0 0.0
    %1570 = vmatpush1.msra.mxu0 0.0
    %1571 = vmatprep.subr.mxu0 0.0
    %1572 = vmatpush1.msra.mxu0 0.0
    %1573 = vmatprep.subr.mxu0 0.0
    %1574 = vmatpush1.msra.mxu0 0.0
    %1575 = vmatprep.subr.mxu0 0.0
    %1576 = vmatpush1.msra.mxu0 0.0
    %1577 = vmatprep.subr.mxu0 0.0
    %1578 = vmatpush1.msra.mxu0 0.0
    %1579 = vmatprep.subr.mxu0 0.0
    %1580 = vmatpush1.msra.mxu0 0.0
    %1581 = vmatprep.subr.mxu0 0.0
    %1582 = vmatpush1.msra.mxu0 0.0
    %1583 = vmatprep.subr.mxu0 0.0
    %1584 = vmatpush1.msra.mxu0 0.0
    %1585 = vmatprep.subr.mxu0 0.0
    %1586 = vmatpush1.msra.mxu0 0.0
    %1587 = vmatprep.subr.mxu0 0.0
    %1588 = vmatpush1.msra.mxu0 0.0
    %1589 = vmatprep.subr.mxu0 0.0
    %1590 = vmatpush1.msra.mxu0 0.0
    %1591 = vmatprep.subr.mxu0 0.0
    %1592 = vmatpush1.msra.mxu0 0.0
    %1593 = vmatprep.subr.mxu0 0.0
    %1594 = vmatpush1.msra.mxu0 0.0
    %1595 = vmatprep.subr.mxu0 0.0
    %1596 = vmatpush1.msra.mxu0 0.0
    %1597 = vmatprep.subr.mxu0 0.0
    %1598 = vmatpush1.msra.mxu0 0.0
    %1599 = vmatprep.subr.mxu0 0.0
    %1600 = vmatpush1.msra.mxu0 0.0
    %1601 = vmatprep.subr.mxu0 0.0
    %1602 = vmatpush1.msra.mxu0 0.0
    %1603 = vmatprep.subr.mxu0 0.0
    %1604 = vmatpush1.msra.mxu0 0.0
    %1605 = vmatprep.subr.mxu0 0.0
    %1606 = vmatpush1.msra.mxu0 0.0
    %1607 = vmatprep.subr.mxu0 0.0
    %1608 = vmatpush1.msra.mxu0 0.0
    %1609 = vmatprep.subr.mxu0 0.0
    %1610 = vmatpush1.msra.mxu0 0.0
    %1611 = vmatprep.subr.mxu0 0.0
    %1612 = vmatpush1.msra.mxu0 0.0
    %1613 = vmatprep.subr.mxu0 0.0
    %1614 = vmatpush1.msra.mxu0 0.0
    %1615 = vmatprep.subr.mxu0 0.0
    %1616 = vmatpush1.msra.mxu0 0.0
    %1617 = vmatprep.subr.mxu0 0.0
    %1618 = vmatpush1.msra.mxu0 0.0
    %1619 = vmatprep.subr.mxu0 0.0
    %1620 = vmatpush1.msra.mxu0 0.0
    %1621 = vmatprep.subr.mxu0 0.0
    %1622 = vmatpush1.msra.mxu0 0.0
    %1623 = vmatprep.subr.mxu0 0.0
    %1624 = vmatpush1.msra.mxu0 0.0
    %1625 = vmatprep.mubr.f32.mxu0 0.0
    %1626 = vmatmul.mubr.f32.gmra.mrb[0].mxu0 %v1538
    %v1627 = vpop.f32.mrb[0].mxu0
    %v1628 = vadd.f32 %v1536, %v1627
    %v1629 = vpop.f32.mrb[0].mxu0
    %1630 = vmatprep.mubr.f32.mxu0 0.0
    %1631 = vmatmul.mubr.f32.gmra.mrb[0].mxu0 %v1541
    %v1632 = vpop.f32.mrb[0].mxu0
    %v1633 = vadd.f32 %v1536, %v1632
    %v1634 = vpop.f32.mrb[0].mxu0
    %1635 = vmatprep.mubr.f32.mxu0 0.0
    %1636 = vmatmul.mubr.f32.gmra.mrb[0].mxu0 %v1544
    %v1637 = vpop.f32.mrb[0].mxu0
    %v1638 = vadd.f32 %v1536, %v1637
    %v1639 = vpop.f32.mrb[0].mxu0
    %1640 = vmatprep.mubr.f32.mxu0 0.0
    %1641 = vmatmul.mubr.f32.gmra.mrb[0].mxu0 %v1547
    %v1642 = vpop.f32.mrb[0].mxu0
    %v1643 = vadd.f32 %v1536, %v1642
    %v1644 = vpop.f32.mrb[0].mxu0
    %1645 = vmatprep.mubr.f32.mxu0 0.0
    %1646 = vmatmul.mubr.f32.gmra.mrb[0].mxu0 %v1550
    %v1647 = vpop.f32.mrb[0].mxu0
    %v1648 = vadd.f32 %v1536, %v1647
    %v1649 = vpop.f32.mrb[0].mxu0
    %1650 = vmatprep.mubr.f32.mxu0 0.0
    %1651 = vmatmul.mubr.f32.gmra.mrb[0].mxu0 %v1553
    %v1652 = vpop.f32.mrb[0].mxu0
    %v1653 = vadd.f32 %v1536, %v1652
    %v1654 = vpop.f32.mrb[0].mxu0
    %1655 = vmatprep.mubr.f32.mxu0 0.0
    %1656 = vmatmul.mubr.f32.gmra.mrb[0].mxu0 %v1556
    %v1657 = vpop.f32.mrb[0].mxu0
    %v1658 = vadd.f32 %v1536, %v1657
    %v1659 = vpop.f32.mrb[0].mxu0
    %1660 = vmatprep.mubr.f32.mxu0 0.0
    %1661 = vmatmul.mubr.f32.gmra.mrb[0].mxu0 %v1559
    %v1662 = vpop.f32.mrb[0].mxu0
    %v1663 = vadd.f32 %v1536, %v1662
    %v1664 = vpop.f32.mrb[0].mxu0
    %1665 = vdwg.mxu0
    %v1667 = vsel %vm346, %v1291, 0
    %1669 = vmatprep.subr.mxu0 0.0
    %1670 = vmatpush1.msra.mxu0 %v1261
    %1671 = vmatprep.subr.mxu0 0.0
    %1672 = vmatpush1.msra.mxu0 %v1262
    %1673 = vmatprep.subr.mxu0 0.0
    %1674 = vmatpush1.msra.mxu0 %v1263
    %1675 = vmatprep.subr.mxu0 0.0
    %1676 = vmatpush1.msra.mxu0 %v1264
    %1677 = vmatprep.subr.mxu0 0.0
    %1678 = vmatpush1.msra.mxu0 0.0
    %1679 = vmatprep.subr.mxu0 0.0
    %1680 = vmatpush1.msra.mxu0 0.0
    %1681 = vmatprep.subr.mxu0 0.0
    %1682 = vmatpush1.msra.mxu0 0.0
    %1683 = vmatprep.subr.mxu0 0.0
    %1684 = vmatpush1.msra.mxu0 0.0
    %1685 = vmatprep.subr.mxu0 0.0
    %1686 = vmatpush1.msra.mxu0 0.0
    %1687 = vmatprep.subr.mxu0 0.0
    %1688 = vmatpush1.msra.mxu0 0.0
    %1689 = vmatprep.subr.mxu0 0.0
    %1690 = vmatpush1.msra.mxu0 0.0
    %1691 = vmatprep.subr.mxu0 0.0
    %1692 = vmatpush1.msra.mxu0 0.0
    %1693 = vmatprep.subr.mxu0 0.0
    %1694 = vmatpush1.msra.mxu0 0.0
    %1695 = vmatprep.subr.mxu0 0.0
    %1696 = vmatpush1.msra.mxu0 0.0
    %1697 = vmatprep.subr.mxu0 0.0
    %1698 = vmatpush1.msra.mxu0 0.0
    %1699 = vmatprep.subr.mxu0 0.0
    %1700 = vmatpush1.msra.mxu0 0.0
    %1701 = vmatprep.subr.mxu0 0.0
    %1702 = vmatpush1.msra.mxu0 0.0
    %1703 = vmatprep.subr.mxu0 0.0
    %1704 = vmatpush1.msra.mxu0 0.0
    %1705 = vmatprep.subr.mxu0 0.0
    %1706 = vmatpush1.msra.mxu0 0.0
    %1707 = vmatprep.subr.mxu0 0.0
    %1708 = vmatpush1.msra.mxu0 0.0
    %1709 = vmatprep.subr.mxu0 0.0
    %1710 = vmatpush1.msra.mxu0 0.0
    %1711 = vmatprep.subr.mxu0 0.0
    %1712 = vmatpush1.msra.mxu0 0.0
    %1713 = vmatprep.subr.mxu0 0.0
    %1714 = vmatpush1.msra.mxu0 0.0
    %1715 = vmatprep.subr.mxu0 0.0
    %1716 = vmatpush1.msra.mxu0 0.0
    %1717 = vmatprep.subr.mxu0 0.0
    %1718 = vmatpush1.msra.mxu0 0.0
    %1719 = vmatprep.subr.mxu0 0.0
    %1720 = vmatpush1.msra.mxu0 0.0
    %1721 = vmatprep.subr.mxu0 0.0
    %1722 = vmatpush1.msra.mxu0 0.0
    %1723 = vmatprep.subr.mxu0 0.0
    %1724 = vmatpush1.msra.mxu0 0.0
    %1725 = vmatprep.subr.mxu0 0.0
    %1726 = vmatpush1.msra.mxu0 0.0
    %1727 = vmatprep.subr.mxu0 0.0
    %1728 = vmatpush1.msra.mxu0 0.0
    %1729 = vmatprep.subr.mxu0 0.0
    %1730 = vmatpush1.msra.mxu0 0.0
    %1731 = vmatprep.subr.mxu0 0.0
    %1732 = vmatpush1.msra.mxu0 0.0
    %1733 = vmatprep.mubr.f32.mxu0 0.0
    %1734 = vmatmul.mubr.f32.gmra.mrb[0].mxu0 %v1667
    %v1735 = vpop.f32.mrb[0].mxu0
    %v1736 = vadd.f32 0.0, %v1735
    %v1737 = vpop.f32.mrb[0].mxu0
    %1738 = vdwg.mxu0
    %v1739 = vlaneseq
    %v1740 = vshrl.u32 %v1739, 7
    %v1741 = vsub.s32 0, %v1740
    %v1742 = vrot.slane %v1736, %v1741
    %v1743 = vlaneseq
    %v1744 = vshrl.u32 %v1743, 7
    %v1745 = vsub.s32 1, %v1744
    %v1746 = vrot.slane %v1736, %v1745
    %v1748 = vsel %vm346, %v1237, 0
    %v1751 = vsel %vm346, %v1238, 0
    %v1754 = vsel %vm346, %v1239, 0
    %v1757 = vsel %vm346, %v1240, 0
    %v1760 = vsel %vm346, %v1241, 0
    %v1763 = vsel %vm346, %v1242, 0
    %v1766 = vsel %vm346, %v1243, 0
    %v1769 = vsel %vm346, %v1244, 0
    %1771 = vmatprep.subr.mxu0 0.0
    %1772 = vmatpush1.msra.mxu0 %v1257
    %1773 = vmatprep.subr.mxu0 0.0
    %1774 = vmatpush1.msra.mxu0 %v1258
    %1775 = vmatprep.subr.mxu0 0.0
    %1776 = vmatpush1.msra.mxu0 %v1259
    %1777 = vmatprep.subr.mxu0 0.0
    %1778 = vmatpush1.msra.mxu0 %v1260
    %1779 = vmatprep.subr.mxu0 0.0
    %1780 = vmatpush1.msra.mxu0 0.0
    %1781 = vmatprep.subr.mxu0 0.0
    %1782 = vmatpush1.msra.mxu0 0.0
    %1783 = vmatprep.subr.mxu0 0.0
    %1784 = vmatpush1.msra.mxu0 0.0
    %1785 = vmatprep.subr.mxu0 0.0
    %1786 = vmatpush1.msra.mxu0 0.0
    %1787 = vmatprep.subr.mxu0 0.0
    %1788 = vmatpush1.msra.mxu0 0.0
    %1789 = vmatprep.subr.mxu0 0.0
    %1790 = vmatpush1.msra.mxu0 0.0
    %1791 = vmatprep.subr.mxu0 0.0
    %1792 = vmatpush1.msra.mxu0 0.0
    %1793 = vmatprep.subr.mxu0 0.0
    %1794 = vmatpush1.msra.mxu0 0.0
    %1795 = vmatprep.subr.mxu0 0.0
    %1796 = vmatpush1.msra.mxu0 0.0
    %1797 = vmatprep.subr.mxu0 0.0
    %1798 = vmatpush1.msra.mxu0 0.0
    %1799 = vmatprep.subr.mxu0 0.0
    %1800 = vmatpush1.msra.mxu0 0.0
    %1801 = vmatprep.subr.mxu0 0.0
    %1802 = vmatpush1.msra.mxu0 0.0
    %1803 = vmatprep.subr.mxu0 0.0
    %1804 = vmatpush1.msra.mxu0 0.0
    %1805 = vmatprep.subr.mxu0 0.0
    %1806 = vmatpush1.msra.mxu0 0.0
    %1807 = vmatprep.subr.mxu0 0.0
    %1808 = vmatpush1.msra.mxu0 0.0
    %1809 = vmatprep.subr.mxu0 0.0
    %1810 = vmatpush1.msra.mxu0 0.0
    %1811 = vmatprep.subr.mxu0 0.0
    %1812 = vmatpush1.msra.mxu0 0.0
    %1813 = vmatprep.subr.mxu0 0.0
    %1814 = vmatpush1.msra.mxu0 0.0
    %1815 = vmatprep.subr.mxu0 0.0
    %1816 = vmatpush1.msra.mxu0 0.0
    %1817 = vmatprep.subr.mxu0 0.0
    %1818 = vmatpush1.msra.mxu0 0.0
    %1819 = vmatprep.subr.mxu0 0.0
    %1820 = vmatpush1.msra.mxu0 0.0
    %1821 = vmatprep.subr.mxu0 0.0
    %1822 = vmatpush1.msra.mxu0 0.0
    %1823 = vmatprep.subr.mxu0 0.0
    %1824 = vmatpush1.msra.mxu0 0.0
    %1825 = vmatprep.subr.mxu0 0.0
    %1826 = vmatpush1.msra.mxu0 0.0
    %1827 = vmatprep.subr.mxu0 0.0
    %1828 = vmatpush1.msra.mxu0 0.0
    %1829 = vmatprep.subr.mxu0 0.0
    %1830 = vmatpush1.msra.mxu0 0.0
    %1831 = vmatprep.subr.mxu0 0.0
    %1832 = vmatpush1.msra.mxu0 0.0
    %1833 = vmatprep.subr.mxu0 0.0
    %1834 = vmatpush1.msra.mxu0 0.0
    %1835 = vmatprep.mubr.f32.mxu0 0.0
    %1836 = vmatmul.mubr.f32.gmra.mrb[0].mxu0 %v1748
    %v1837 = vpop.f32.mrb[0].mxu0
    %v1838 = vadd.f32 %v1742, %v1837
    %v1839 = vpop.f32.mrb[0].mxu0
    %1840 = vmatprep.mubr.f32.mxu0 0.0
    %1841 = vmatmul.mubr.f32.gmra.mrb[0].mxu0 %v1751
    %v1842 = vpop.f32.mrb[0].mxu0
    %v1843 = vadd.f32 %v1742, %v1842
    %v1844 = vpop.f32.mrb[0].mxu0
    %1845 = vmatprep.mubr.f32.mxu0 0.0
    %1846 = vmatmul.mubr.f32.gmra.mrb[0].mxu0 %v1754
    %v1847 = vpop.f32.mrb[0].mxu0
    %v1848 = vadd.f32 %v1742, %v1847
    %v1849 = vpop.f32.mrb[0].mxu0
    %1850 = vmatprep.mubr.f32.mxu0 0.0
    %1851 = vmatmul.mubr.f32.gmra.mrb[0].mxu0 %v1757
    %v1852 = vpop.f32.mrb[0].mxu0
    %v1853 = vadd.f32 %v1742, %v1852
    %v1854 = vpop.f32.mrb[0].mxu0
    %1855 = vmatprep.mubr.f32.mxu0 0.0
    %1856 = vmatmul.mubr.f32.gmra.mrb[0].mxu0 %v1760
    %v1857 = vpop.f32.mrb[0].mxu0
    %v1858 = vadd.f32 %v1746, %v1857
    %v1859 = vpop.f32.mrb[0].mxu0
    %1860 = vmatprep.mubr.f32.mxu0 0.0
    %1861 = vmatmul.mubr.f32.gmra.mrb[0].mxu0 %v1763
    %v1862 = vpop.f32.mrb[0].mxu0
    %v1863 = vadd.f32 %v1746, %v1862
    %v1864 = vpop.f32.mrb[0].mxu0
    %1865 = vmatprep.mubr.f32.mxu0 0.0
    %1866 = vmatmul.mubr.f32.gmra.mrb[0].mxu0 %v1766
    %v1867 = vpop.f32.mrb[0].mxu0
    %v1868 = vadd.f32 %v1746, %v1867
    %v1869 = vpop.f32.mrb[0].mxu0
    %1870 = vmatprep.mubr.f32.mxu0 0.0
    %1871 = vmatmul.mubr.f32.gmra.mrb[0].mxu0 %v1769
    %v1872 = vpop.f32.mrb[0].mxu0
    %v1873 = vadd.f32 %v1746, %v1872
    %v1874 = vpop.f32.mrb[0].mxu0
    %1875 = vdwg.mxu0
    %v1876 = vadd.f32 %v1838, %v1628
    %v1877 = vadd.f32 %v1843, %v1633
    %v1878 = vadd.f32 %v1848, %v1638
    %v1879 = vadd.f32 %v1853, %v1643
    %v1880 = vadd.f32 %v1858, %v1648
    %v1881 = vadd.f32 %v1863, %v1653
    %v1882 = vadd.f32 %v1868, %v1658
    %v1883 = vadd.f32 %v1873, %v1663
    %v1884 = vld [vmem:[%s3 + $0x140] sm:$0xff]
    %v1885 = vld [vmem:[%s3 + $0x148] sm:$0xff]
    %v1886 = vld [vmem:[%s3 + $0x150] sm:$0xff]
    %v1887 = vld [vmem:[%s3 + $0x158] sm:$0xff]
    %v1888 = vld [vmem:[%s3 + $0x160] sm:$0xff]
    %v1889 = vld [vmem:[%s3 + $0x168] sm:$0xff]
    %v1890 = vld [vmem:[%s3 + $0x170] sm:$0xff]
    %v1891 = vld [vmem:[%s3 + $0x178] sm:$0xff]
    %v1892 = vld [vmem:[%s3 + $0x180] sm:$0xff]
    %v1893 = vld [vmem:[%s3 + $0x188] sm:$0xff]
    %v1894 = vld [vmem:[%s3 + $0x190] sm:$0xff]
    %v1895 = vld [vmem:[%s3 + $0x198] sm:$0xff]
    %v1896 = vld [vmem:[%s3 + $0x1a0] sm:$0xff]
    %v1897 = vld [vmem:[%s3 + $0x1a8] sm:$0xff]
    %v1898 = vld [vmem:[%s3 + $0x1b0] sm:$0xff]
    %v1899 = vld [vmem:[%s3 + $0x1b8] sm:$0xff]
    %v1900 = vld [vmem:[%s3 + $0x1c0] sm:$0xff]
    %v1901 = vld [vmem:[%s3 + $0x1c8] sm:$0xff]
    %v1902 = vld [vmem:[%s3 + $0x1d0] sm:$0xff]
    %v1903 = vld [vmem:[%s3 + $0x1d8] sm:$0xff]
    %v1904 = vsel %vm346, %v1876, -inf
    %v1905 = vsel %vm346, %v1877, -inf
    %v1906 = vsel %vm346, %v1878, -inf
    %v1907 = vsel %vm346, %v1879, -inf
    %v1908 = vmax.f32 %v1904, %v1905
    %v1909 = vmax.f32 %v1906, %v1907
    %v1910 = vmax.f32 %v1908, %v1909
    %v1911 = vrot.slane %v1910, 4
    %v1912 = vmax.f32 %v1910, %v1911
    %v1913 = vrot.slane %v1912, 2
    %v1914 = vmax.f32 %v1912, %v1913
    %v1915 = vrot.slane %v1914, 1
    %v1916 = vmax.f32 %v1914, %v1915
    %v1917 = vsel %vm346, %v1880, -inf
    %v1918 = vsel %vm346, %v1881, -inf
    %v1919 = vsel %vm346, %v1882, -inf
    %v1920 = vsel %vm346, %v1883, -inf
    %v1921 = vmax.f32 %v1917, %v1918
    %v1922 = vmax.f32 %v1919, %v1920
    %v1923 = vmax.f32 %v1921, %v1922
    %v1924 = vrot.slane %v1923, 4
    %v1925 = vmax.f32 %v1923, %v1924
    %v1926 = vrot.slane %v1925, 2
    %v1927 = vmax.f32 %v1925, %v1926
    %v1928 = vrot.slane %v1927, 1
    %v1929 = vmax.f32 %v1927, %v1928
    %v1930 = vsel %vm651, %v1916, %v1929
    %v1931 = vmax.f32 %v1876, 0.0
    %v1932 = vmax.f32 %v1877, 0.0
    %v1933 = vmax.f32 %v1878, 0.0
    %v1934 = vmax.f32 %v1879, 0.0
    %v1935 = vmax.f32 %v1880, 0.0
    %v1936 = vmax.f32 %v1881, 0.0
    %v1937 = vmax.f32 %v1882, 0.0
    %v1938 = vmax.f32 %v1883, 0.0
    %v1939 = vmax.f32 %v1930, 0.0
    %v1941 = vsel %vm346, %v1939, 0
    %1943 = vmatprep.subr.mxu0 0.0
    %1944 = vmatpush1.msra.mxu0 %v1888
    %1945 = vmatprep.subr.mxu0 0.0
    %1946 = vmatpush1.msra.mxu0 %v1889
    %1947 = vmatprep.subr.mxu0 0.0
    %1948 = vmatpush1.msra.mxu0 %v1890
    %1949 = vmatprep.subr.mxu0 0.0
    %1950 = vmatpush1.msra.mxu0 %v1891
    %1951 = vmatprep.subr.mxu0 0.0
    %1952 = vmatpush1.msra.mxu0 0.0
    %1953 = vmatprep.subr.mxu0 0.0
    %1954 = vmatpush1.msra.mxu0 0.0
    %1955 = vmatprep.subr.mxu0 0.0
    %1956 = vmatpush1.msra.mxu0 0.0
    %1957 = vmatprep.subr.mxu0 0.0
    %1958 = vmatpush1.msra.mxu0 0.0
    %1959 = vmatprep.subr.mxu0 0.0
    %1960 = vmatpush1.msra.mxu0 0.0
    %1961 = vmatprep.subr.mxu0 0.0
    %1962 = vmatpush1.msra.mxu0 0.0
    %1963 = vmatprep.subr.mxu0 0.0
    %1964 = vmatpush1.msra.mxu0 0.0
    %1965 = vmatprep.subr.mxu0 0.0
    %1966 = vmatpush1.msra.mxu0 0.0
    %1967 = vmatprep.subr.mxu0 0.0
    %1968 = vmatpush1.msra.mxu0 0.0
    %1969 = vmatprep.subr.mxu0 0.0
    %1970 = vmatpush1.msra.mxu0 0.0
    %1971 = vmatprep.subr.mxu0 0.0
    %1972 = vmatpush1.msra.mxu0 0.0
    %1973 = vmatprep.subr.mxu0 0.0
    %1974 = vmatpush1.msra.mxu0 0.0
    %1975 = vmatprep.subr.mxu0 0.0
    %1976 = vmatpush1.msra.mxu0 0.0
    %1977 = vmatprep.subr.mxu0 0.0
    %1978 = vmatpush1.msra.mxu0 0.0
    %1979 = vmatprep.subr.mxu0 0.0
    %1980 = vmatpush1.msra.mxu0 0.0
    %1981 = vmatprep.subr.mxu0 0.0
    %1982 = vmatpush1.msra.mxu0 0.0
    %1983 = vmatprep.subr.mxu0 0.0
    %1984 = vmatpush1.msra.mxu0 0.0
    %1985 = vmatprep.subr.mxu0 0.0
    %1986 = vmatpush1.msra.mxu0 0.0
    %1987 = vmatprep.subr.mxu0 0.0
    %1988 = vmatpush1.msra.mxu0 0.0
    %1989 = vmatprep.subr.mxu0 0.0
    %1990 = vmatpush1.msra.mxu0 0.0
    %1991 = vmatprep.subr.mxu0 0.0
    %1992 = vmatpush1.msra.mxu0 0.0
    %1993 = vmatprep.subr.mxu0 0.0
    %1994 = vmatpush1.msra.mxu0 0.0
    %1995 = vmatprep.subr.mxu0 0.0
    %1996 = vmatpush1.msra.mxu0 0.0
    %1997 = vmatprep.subr.mxu0 0.0
    %1998 = vmatpush1.msra.mxu0 0.0
    %1999 = vmatprep.subr.mxu0 0.0
    %2000 = vmatpush1.msra.mxu0 0.0
    %2001 = vmatprep.subr.mxu0 0.0
    %2002 = vmatpush1.msra.mxu0 0.0
    %2003 = vmatprep.subr.mxu0 0.0
    %2004 = vmatpush1.msra.mxu0 0.0
    %2005 = vmatprep.subr.mxu0 0.0
    %2006 = vmatpush1.msra.mxu0 0.0
    %2007 = vmatprep.mubr.f32.mxu0 0.0
    %2008 = vmatmul.mubr.f32.gmra.mrb[0].mxu0 %v1941
    %v2009 = vpop.f32.mrb[0].mxu0
    %v2010 = vadd.f32 0.0, %v2009
    %v2011 = vpop.f32.mrb[0].mxu0
    %2012 = vdwg.mxu0
    %v2013 = vlaneseq
    %v2014 = vshrl.u32 %v2013, 7
    %v2015 = vsub.s32 0, %v2014
    %v2016 = vrot.slane %v2010, %v2015
    %v2017 = vlaneseq
    %v2018 = vshrl.u32 %v2017, 7
    %v2019 = vsub.s32 1, %v2018
    %v2020 = vrot.slane %v2010, %v2019
    %v2022 = vsel %vm346, %v1931, 0
    %v2025 = vsel %vm346, %v1932, 0
    %v2028 = vsel %vm346, %v1933, 0
    %v2031 = vsel %vm346, %v1934, 0
    %v2034 = vsel %vm346, %v1935, 0
    %v2037 = vsel %vm346, %v1936, 0
    %v2040 = vsel %vm346, %v1937, 0
    %v2043 = vsel %vm346, %v1938, 0
    %2045 = vmatprep.subr.mxu0 0.0
    %2046 = vmatpush1.msra.mxu0 %v1884
    %2047 = vmatprep.subr.mxu0 0.0
    %2048 = vmatpush1.msra.mxu0 %v1885
    %2049 = vmatprep.subr.mxu0 0.0
    %2050 = vmatpush1.msra.mxu0 %v1886
    %2051 = vmatprep.subr.mxu0 0.0
    %2052 = vmatpush1.msra.mxu0 %v1887
    %2053 = vmatprep.subr.mxu0 0.0
    %2054 = vmatpush1.msra.mxu0 0.0
    %2055 = vmatprep.subr.mxu0 0.0
    %2056 = vmatpush1.msra.mxu0 0.0
    %2057 = vmatprep.subr.mxu0 0.0
    %2058 = vmatpush1.msra.mxu0 0.0
    %2059 = vmatprep.subr.mxu0 0.0
    %2060 = vmatpush1.msra.mxu0 0.0
    %2061 = vmatprep.subr.mxu0 0.0
    %2062 = vmatpush1.msra.mxu0 0.0
    %2063 = vmatprep.subr.mxu0 0.0
    %2064 = vmatpush1.msra.mxu0 0.0
    %2065 = vmatprep.subr.mxu0 0.0
    %2066 = vmatpush1.msra.mxu0 0.0
    %2067 = vmatprep.subr.mxu0 0.0
    %2068 = vmatpush1.msra.mxu0 0.0
    %2069 = vmatprep.subr.mxu0 0.0
    %2070 = vmatpush1.msra.mxu0 0.0
    %2071 = vmatprep.subr.mxu0 0.0
    %2072 = vmatpush1.msra.mxu0 0.0
    %2073 = vmatprep.subr.mxu0 0.0
    %2074 = vmatpush1.msra.mxu0 0.0
    %2075 = vmatprep.subr.mxu0 0.0
    %2076 = vmatpush1.msra.mxu0 0.0
    %2077 = vmatprep.subr.mxu0 0.0
    %2078 = vmatpush1.msra.mxu0 0.0
    %2079 = vmatprep.subr.mxu0 0.0
    %2080 = vmatpush1.msra.mxu0 0.0
    %2081 = vmatprep.subr.mxu0 0.0
    %2082 = vmatpush1.msra.mxu0 0.0
    %2083 = vmatprep.subr.mxu0 0.0
    %2084 = vmatpush1.msra.mxu0 0.0
    %2085 = vmatprep.subr.mxu0 0.0
    %2086 = vmatpush1.msra.mxu0 0.0
    %2087 = vmatprep.subr.mxu0 0.0
    %2088 = vmatpush1.msra.mxu0 0.0
    %2089 = vmatprep.subr.mxu0 0.0
    %2090 = vmatpush1.msra.mxu0 0.0
    %2091 = vmatprep.subr.mxu0 0.0
    %2092 = vmatpush1.msra.mxu0 0.0
    %2093 = vmatprep.subr.mxu0 0.0
    %2094 = vmatpush1.msra.mxu0 0.0
    %2095 = vmatprep.subr.mxu0 0.0
    %2096 = vmatpush1.msra.mxu0 0.0
    %2097 = vmatprep.subr.mxu0 0.0
    %2098 = vmatpush1.msra.mxu0 0.0
    %2099 = vmatprep.subr.mxu0 0.0
    %2100 = vmatpush1.msra.mxu0 0.0
    %2101 = vmatprep.subr.mxu0 0.0
    %2102 = vmatpush1.msra.mxu0 0.0
    %2103 = vmatprep.subr.mxu0 0.0
    %2104 = vmatpush1.msra.mxu0 0.0
    %2105 = vmatprep.subr.mxu0 0.0
    %2106 = vmatpush1.msra.mxu0 0.0
    %2107 = vmatprep.subr.mxu0 0.0
    %2108 = vmatpush1.msra.mxu0 0.0
    %2109 = vmatprep.mubr.f32.mxu0 0.0
    %2110 = vmatmul.mubr.f32.gmra.mrb[0].mxu0 %v2022
    %v2111 = vpop.f32.mrb[0].mxu0
    %v2112 = vadd.f32 %v2016, %v2111
    %v2113 = vpop.f32.mrb[0].mxu0
    %2114 = vmatprep.mubr.f32.mxu0 0.0
    %2115 = vmatmul.mubr.f32.gmra.mrb[0].mxu0 %v2025
    %v2116 = vpop.f32.mrb[0].mxu0
    %v2117 = vadd.f32 %v2016, %v2116
    %v2118 = vpop.f32.mrb[0].mxu0
    %2119 = vmatprep.mubr.f32.mxu0 0.0
    %2120 = vmatmul.mubr.f32.gmra.mrb[0].mxu0 %v2028
    %v2121 = vpop.f32.mrb[0].mxu0
    %v2122 = vadd.f32 %v2016, %v2121
    %v2123 = vpop.f32.mrb[0].mxu0
    %2124 = vmatprep.mubr.f32.mxu0 0.0
    %2125 = vmatmul.mubr.f32.gmra.mrb[0].mxu0 %v2031
    %v2126 = vpop.f32.mrb[0].mxu0
    %v2127 = vadd.f32 %v2016, %v2126
    %v2128 = vpop.f32.mrb[0].mxu0
    %2129 = vmatprep.mubr.f32.mxu0 0.0
    %2130 = vmatmul.mubr.f32.gmra.mrb[0].mxu0 %v2034
    %v2131 = vpop.f32.mrb[0].mxu0
    %v2132 = vadd.f32 %v2020, %v2131
    %v2133 = vpop.f32.mrb[0].mxu0
    %2134 = vmatprep.mubr.f32.mxu0 0.0
    %2135 = vmatmul.mubr.f32.gmra.mrb[0].mxu0 %v2037
    %v2136 = vpop.f32.mrb[0].mxu0
    %v2137 = vadd.f32 %v2020, %v2136
    %v2138 = vpop.f32.mrb[0].mxu0
    %2139 = vmatprep.mubr.f32.mxu0 0.0
    %2140 = vmatmul.mubr.f32.gmra.mrb[0].mxu0 %v2040
    %v2141 = vpop.f32.mrb[0].mxu0
    %v2142 = vadd.f32 %v2020, %v2141
    %v2143 = vpop.f32.mrb[0].mxu0
    %2144 = vmatprep.mubr.f32.mxu0 0.0
    %2145 = vmatmul.mubr.f32.gmra.mrb[0].mxu0 %v2043
    %v2146 = vpop.f32.mrb[0].mxu0
    %v2147 = vadd.f32 %v2020, %v2146
    %v2148 = vpop.f32.mrb[0].mxu0
    %2149 = vdwg.mxu0
    %v2150 = vld [vmem:[%s4 + $0x3] sm:$0x1]
    %v2151 = vlaneseq
    %v2152 = vshrl.u32 %v2151, 7
    %v2153 = vsub.s32 0, %v2152
    %v2154 = vrot.slane %v2150, %v2153
    %v2155 = vadd.f32 %v2112, %v2154
    %v2156 = vadd.f32 %v2117, %v2154
    %v2157 = vadd.f32 %v2122, %v2154
    %v2158 = vadd.f32 %v2127, %v2154
    %v2159 = vadd.f32 %v2132, %v2154
    %v2160 = vadd.f32 %v2137, %v2154
    %v2161 = vadd.f32 %v2142, %v2154
    %v2162 = vadd.f32 %v2147, %v2154
    %v2163 = vmax.f32 %v2155, 0.0
    %v2164 = vmax.f32 %v2156, 0.0
    %v2165 = vmax.f32 %v2157, 0.0
    %v2166 = vmax.f32 %v2158, 0.0
    %v2167 = vmax.f32 %v2159, 0.0
    %v2168 = vmax.f32 %v2160, 0.0
    %v2169 = vmax.f32 %v2161, 0.0
    %v2170 = vmax.f32 %v2162, 0.0
    %v2171 = vld [vmem:[%s4 + $0x8] sm:$0x1]
    %v2172 = vlaneseq
    %v2173 = vshrl.u32 %v2172, 7
    %v2174 = vsub.s32 0, %v2173
    %v2175 = vrot.slane %v2171, %v2174
    %v2177 = vsel %vm346, %v2163, 0
    %v2180 = vsel %vm346, %v2164, 0
    %v2183 = vsel %vm346, %v2165, 0
    %v2186 = vsel %vm346, %v2166, 0
    %v2189 = vsel %vm346, %v2167, 0
    %v2192 = vsel %vm346, %v2168, 0
    %v2195 = vsel %vm346, %v2169, 0
    %v2198 = vsel %vm346, %v2170, 0
    %2200 = vmatprep.subr.mxu0 0.0
    %2201 = vmatpush1.msra.mxu0 %v1892
    %2202 = vmatprep.subr.mxu0 0.0
    %2203 = vmatpush1.msra.mxu0 %v1893
    %2204 = vmatprep.subr.mxu0 0.0
    %2205 = vmatpush1.msra.mxu0 %v1894
    %2206 = vmatprep.subr.mxu0 0.0
    %2207 = vmatpush1.msra.mxu0 %v1895
    %2208 = vmatprep.subr.mxu0 0.0
    %2209 = vmatpush1.msra.mxu0 0.0
    %2210 = vmatprep.subr.mxu0 0.0
    %2211 = vmatpush1.msra.mxu0 0.0
    %2212 = vmatprep.subr.mxu0 0.0
    %2213 = vmatpush1.msra.mxu0 0.0
    %2214 = vmatprep.subr.mxu0 0.0
    %2215 = vmatpush1.msra.mxu0 0.0
    %2216 = vmatprep.subr.mxu0 0.0
    %2217 = vmatpush1.msra.mxu0 0.0
    %2218 = vmatprep.subr.mxu0 0.0
    %2219 = vmatpush1.msra.mxu0 0.0
    %2220 = vmatprep.subr.mxu0 0.0
    %2221 = vmatpush1.msra.mxu0 0.0
    %2222 = vmatprep.subr.mxu0 0.0
    %2223 = vmatpush1.msra.mxu0 0.0
    %2224 = vmatprep.subr.mxu0 0.0
    %2225 = vmatpush1.msra.mxu0 0.0
    %2226 = vmatprep.subr.mxu0 0.0
    %2227 = vmatpush1.msra.mxu0 0.0
    %2228 = vmatprep.subr.mxu0 0.0
    %2229 = vmatpush1.msra.mxu0 0.0
    %2230 = vmatprep.subr.mxu0 0.0
    %2231 = vmatpush1.msra.mxu0 0.0
    %2232 = vmatprep.subr.mxu0 0.0
    %2233 = vmatpush1.msra.mxu0 0.0
    %2234 = vmatprep.subr.mxu0 0.0
    %2235 = vmatpush1.msra.mxu0 0.0
    %2236 = vmatprep.subr.mxu0 0.0
    %2237 = vmatpush1.msra.mxu0 0.0
    %2238 = vmatprep.subr.mxu0 0.0
    %2239 = vmatpush1.msra.mxu0 0.0
    %2240 = vmatprep.subr.mxu0 0.0
    %2241 = vmatpush1.msra.mxu0 0.0
    %2242 = vmatprep.subr.mxu0 0.0
    %2243 = vmatpush1.msra.mxu0 0.0
    %2244 = vmatprep.subr.mxu0 0.0
    %2245 = vmatpush1.msra.mxu0 0.0
    %2246 = vmatprep.subr.mxu0 0.0
    %2247 = vmatpush1.msra.mxu0 0.0
    %2248 = vmatprep.subr.mxu0 0.0
    %2249 = vmatpush1.msra.mxu0 0.0
    %2250 = vmatprep.subr.mxu0 0.0
    %2251 = vmatpush1.msra.mxu0 0.0
    %2252 = vmatprep.subr.mxu0 0.0
    %2253 = vmatpush1.msra.mxu0 0.0
    %2254 = vmatprep.subr.mxu0 0.0
    %2255 = vmatpush1.msra.mxu0 0.0
    %2256 = vmatprep.subr.mxu0 0.0
    %2257 = vmatpush1.msra.mxu0 0.0
    %2258 = vmatprep.subr.mxu0 0.0
    %2259 = vmatpush1.msra.mxu0 0.0
    %2260 = vmatprep.subr.mxu0 0.0
    %2261 = vmatpush1.msra.mxu0 0.0
    %2262 = vmatprep.subr.mxu0 0.0
    %2263 = vmatpush1.msra.mxu0 0.0
    %2264 = vmatprep.mubr.f32.mxu0 0.0
    %2265 = vmatmul.mubr.f32.gmra.mrb[0].mxu0 %v2177
    %v2266 = vpop.f32.mrb[0].mxu0
    %v2267 = vadd.f32 %v2175, %v2266
    %v2268 = vpop.f32.mrb[0].mxu0
    %2269 = vmatprep.mubr.f32.mxu0 0.0
    %2270 = vmatmul.mubr.f32.gmra.mrb[0].mxu0 %v2180
    %v2271 = vpop.f32.mrb[0].mxu0
    %v2272 = vadd.f32 %v2175, %v2271
    %v2273 = vpop.f32.mrb[0].mxu0
    %2274 = vmatprep.mubr.f32.mxu0 0.0
    %2275 = vmatmul.mubr.f32.gmra.mrb[0].mxu0 %v2183
    %v2276 = vpop.f32.mrb[0].mxu0
    %v2277 = vadd.f32 %v2175, %v2276
    %v2278 = vpop.f32.mrb[0].mxu0
    %2279 = vmatprep.mubr.f32.mxu0 0.0
    %2280 = vmatmul.mubr.f32.gmra.mrb[0].mxu0 %v2186
    %v2281 = vpop.f32.mrb[0].mxu0
    %v2282 = vadd.f32 %v2175, %v2281
    %v2283 = vpop.f32.mrb[0].mxu0
    %2284 = vmatprep.mubr.f32.mxu0 0.0
    %2285 = vmatmul.mubr.f32.gmra.mrb[0].mxu0 %v2189
    %v2286 = vpop.f32.mrb[0].mxu0
    %v2287 = vadd.f32 %v2175, %v2286
    %v2288 = vpop.f32.mrb[0].mxu0
    %2289 = vmatprep.mubr.f32.mxu0 0.0
    %2290 = vmatmul.mubr.f32.gmra.mrb[0].mxu0 %v2192
    %v2291 = vpop.f32.mrb[0].mxu0
    %v2292 = vadd.f32 %v2175, %v2291
    %v2293 = vpop.f32.mrb[0].mxu0
    %2294 = vmatprep.mubr.f32.mxu0 0.0
    %2295 = vmatmul.mubr.f32.gmra.mrb[0].mxu0 %v2195
    %v2296 = vpop.f32.mrb[0].mxu0
    %v2297 = vadd.f32 %v2175, %v2296
    %v2298 = vpop.f32.mrb[0].mxu0
    %2299 = vmatprep.mubr.f32.mxu0 0.0
    %2300 = vmatmul.mubr.f32.gmra.mrb[0].mxu0 %v2198
    %v2301 = vpop.f32.mrb[0].mxu0
    %v2302 = vadd.f32 %v2175, %v2301
    %v2303 = vpop.f32.mrb[0].mxu0
    %2304 = vdwg.mxu0
    %v2306 = vsel %vm346, %v1930, 0
    %2308 = vmatprep.subr.mxu0 0.0
    %2309 = vmatpush1.msra.mxu0 %v1900
    %2310 = vmatprep.subr.mxu0 0.0
    %2311 = vmatpush1.msra.mxu0 %v1901
    %2312 = vmatprep.subr.mxu0 0.0
    %2313 = vmatpush1.msra.mxu0 %v1902
    %2314 = vmatprep.subr.mxu0 0.0
    %2315 = vmatpush1.msra.mxu0 %v1903
    %2316 = vmatprep.subr.mxu0 0.0
    %2317 = vmatpush1.msra.mxu0 0.0
    %2318 = vmatprep.subr.mxu0 0.0
    %2319 = vmatpush1.msra.mxu0 0.0
    %2320 = vmatprep.subr.mxu0 0.0
    %2321 = vmatpush1.msra.mxu0 0.0
    %2322 = vmatprep.subr.mxu0 0.0
    %2323 = vmatpush1.msra.mxu0 0.0
    %2324 = vmatprep.subr.mxu0 0.0
    %2325 = vmatpush1.msra.mxu0 0.0
    %2326 = vmatprep.subr.mxu0 0.0
    %2327 = vmatpush1.msra.mxu0 0.0
    %2328 = vmatprep.subr.mxu0 0.0
    %2329 = vmatpush1.msra.mxu0 0.0
    %2330 = vmatprep.subr.mxu0 0.0
    %2331 = vmatpush1.msra.mxu0 0.0
    %2332 = vmatprep.subr.mxu0 0.0
    %2333 = vmatpush1.msra.mxu0 0.0
    %2334 = vmatprep.subr.mxu0 0.0
    %2335 = vmatpush1.msra.mxu0 0.0
    %2336 = vmatprep.subr.mxu0 0.0
    %2337 = vmatpush1.msra.mxu0 0.0
    %2338 = vmatprep.subr.mxu0 0.0
    %2339 = vmatpush1.msra.mxu0 0.0
    %2340 = vmatprep.subr.mxu0 0.0
    %2341 = vmatpush1.msra.mxu0 0.0
    %2342 = vmatprep.subr.mxu0 0.0
    %2343 = vmatpush1.msra.mxu0 0.0
    %2344 = vmatprep.subr.mxu0 0.0
    %2345 = vmatpush1.msra.mxu0 0.0
    %2346 = vmatprep.subr.mxu0 0.0
    %2347 = vmatpush1.msra.mxu0 0.0
    %2348 = vmatprep.subr.mxu0 0.0
    %2349 = vmatpush1.msra.mxu0 0.0
    %2350 = vmatprep.subr.mxu0 0.0
    %2351 = vmatpush1.msra.mxu0 0.0
    %2352 = vmatprep.subr.mxu0 0.0
    %2353 = vmatpush1.msra.mxu0 0.0
    %2354 = vmatprep.subr.mxu0 0.0
    %2355 = vmatpush1.msra.mxu0 0.0
    %2356 = vmatprep.subr.mxu0 0.0
    %2357 = vmatpush1.msra.mxu0 0.0
    %2358 = vmatprep.subr.mxu0 0.0
    %2359 = vmatpush1.msra.mxu0 0.0
    %2360 = vmatprep.subr.mxu0 0.0
    %2361 = vmatpush1.msra.mxu0 0.0
    %2362 = vmatprep.subr.mxu0 0.0
    %2363 = vmatpush1.msra.mxu0 0.0
    %2364 = vmatprep.subr.mxu0 0.0
    %2365 = vmatpush1.msra.mxu0 0.0
    %2366 = vmatprep.subr.mxu0 0.0
    %2367 = vmatpush1.msra.mxu0 0.0
    %2368 = vmatprep.subr.mxu0 0.0
    %2369 = vmatpush1.msra.mxu0 0.0
    %2370 = vmatprep.subr.mxu0 0.0
    %2371 = vmatpush1.msra.mxu0 0.0
    %2372 = vmatprep.mubr.f32.mxu0 0.0
    %2373 = vmatmul.mubr.f32.gmra.mrb[0].mxu0 %v2306
    %v2374 = vpop.f32.mrb[0].mxu0
    %v2375 = vadd.f32 0.0, %v2374
    %v2376 = vpop.f32.mrb[0].mxu0
    %2377 = vdwg.mxu0
    %v2378 = vlaneseq
    %v2379 = vshrl.u32 %v2378, 7
    %v2380 = vsub.s32 0, %v2379
    %v2381 = vrot.slane %v2375, %v2380
    %v2382 = vlaneseq
    %v2383 = vshrl.u32 %v2382, 7
    %v2384 = vsub.s32 1, %v2383
    %v2385 = vrot.slane %v2375, %v2384
    %v2387 = vsel %vm346, %v1876, 0
    %v2390 = vsel %vm346, %v1877, 0
    %v2393 = vsel %vm346, %v1878, 0
    %v2396 = vsel %vm346, %v1879, 0
    %v2399 = vsel %vm346, %v1880, 0
    %v2402 = vsel %vm346, %v1881, 0
    %v2405 = vsel %vm346, %v1882, 0
    %v2408 = vsel %vm346, %v1883, 0
    %2410 = vmatprep.subr.mxu0 0.0
    %2411 = vmatpush1.msra.mxu0 %v1896
    %2412 = vmatprep.subr.mxu0 0.0
    %2413 = vmatpush1.msra.mxu0 %v1897
    %2414 = vmatprep.subr.mxu0 0.0
    %2415 = vmatpush1.msra.mxu0 %v1898
    %2416 = vmatprep.subr.mxu0 0.0
    %2417 = vmatpush1.msra.mxu0 %v1899
    %2418 = vmatprep.subr.mxu0 0.0
    %2419 = vmatpush1.msra.mxu0 0.0
    %2420 = vmatprep.subr.mxu0 0.0
    %2421 = vmatpush1.msra.mxu0 0.0
    %2422 = vmatprep.subr.mxu0 0.0
    %2423 = vmatpush1.msra.mxu0 0.0
    %2424 = vmatprep.subr.mxu0 0.0
    %2425 = vmatpush1.msra.mxu0 0.0
    %2426 = vmatprep.subr.mxu0 0.0
    %2427 = vmatpush1.msra.mxu0 0.0
    %2428 = vmatprep.subr.mxu0 0.0
    %2429 = vmatpush1.msra.mxu0 0.0
    %2430 = vmatprep.subr.mxu0 0.0
    %2431 = vmatpush1.msra.mxu0 0.0
    %2432 = vmatprep.subr.mxu0 0.0
    %2433 = vmatpush1.msra.mxu0 0.0
    %2434 = vmatprep.subr.mxu0 0.0
    %2435 = vmatpush1.msra.mxu0 0.0
    %2436 = vmatprep.subr.mxu0 0.0
    %2437 = vmatpush1.msra.mxu0 0.0
    %2438 = vmatprep.subr.mxu0 0.0
    %2439 = vmatpush1.msra.mxu0 0.0
    %2440 = vmatprep.subr.mxu0 0.0
    %2441 = vmatpush1.msra.mxu0 0.0
    %2442 = vmatprep.subr.mxu0 0.0
    %2443 = vmatpush1.msra.mxu0 0.0
    %2444 = vmatprep.subr.mxu0 0.0
    %2445 = vmatpush1.msra.mxu0 0.0
    %2446 = vmatprep.subr.mxu0 0.0
    %2447 = vmatpush1.msra.mxu0 0.0
    %2448 = vmatprep.subr.mxu0 0.0
    %2449 = vmatpush1.msra.mxu0 0.0
    %2450 = vmatprep.subr.mxu0 0.0
    %2451 = vmatpush1.msra.mxu0 0.0
    %2452 = vmatprep.subr.mxu0 0.0
    %2453 = vmatpush1.msra.mxu0 0.0
    %2454 = vmatprep.subr.mxu0 0.0
    %2455 = vmatpush1.msra.mxu0 0.0
    %2456 = vmatprep.subr.mxu0 0.0
    %2457 = vmatpush1.msra.mxu0 0.0
    %2458 = vmatprep.subr.mxu0 0.0
    %2459 = vmatpush1.msra.mxu0 0.0
    %2460 = vmatprep.subr.mxu0 0.0
    %2461 = vmatpush1.msra.mxu0 0.0
    %2462 = vmatprep.subr.mxu0 0.0
    %2463 = vmatpush1.msra.mxu0 0.0
    %2464 = vmatprep.subr.mxu0 0.0
    %2465 = vmatpush1.msra.mxu0 0.0
    %2466 = vmatprep.subr.mxu0 0.0
    %2467 = vmatpush1.msra.mxu0 0.0
    %2468 = vmatprep.subr.mxu0 0.0
    %2469 = vmatpush1.msra.mxu0 0.0
    %2470 = vmatprep.subr.mxu0 0.0
    %2471 = vmatpush1.msra.mxu0 0.0
    %2472 = vmatprep.subr.mxu0 0.0
    %2473 = vmatpush1.msra.mxu0 0.0
    %2474 = vmatprep.mubr.f32.mxu0 0.0
    %2475 = vmatmul.mubr.f32.gmra.mrb[0].mxu0 %v2387
    %v2476 = vpop.f32.mrb[0].mxu0
    %v2477 = vadd.f32 %v2381, %v2476
    %v2478 = vpop.f32.mrb[0].mxu0
    %2479 = vmatprep.mubr.f32.mxu0 0.0
    %2480 = vmatmul.mubr.f32.gmra.mrb[0].mxu0 %v2390
    %v2481 = vpop.f32.mrb[0].mxu0
    %v2482 = vadd.f32 %v2381, %v2481
    %v2483 = vpop.f32.mrb[0].mxu0
    %2484 = vmatprep.mubr.f32.mxu0 0.0
    %2485 = vmatmul.mubr.f32.gmra.mrb[0].mxu0 %v2393
    %v2486 = vpop.f32.mrb[0].mxu0
    %v2487 = vadd.f32 %v2381, %v2486
    %v2488 = vpop.f32.mrb[0].mxu0
    %2489 = vmatprep.mubr.f32.mxu0 0.0
    %2490 = vmatmul.mubr.f32.gmra.mrb[0].mxu0 %v2396
    %v2491 = vpop.f32.mrb[0].mxu0
    %v2492 = vadd.f32 %v2381, %v2491
    %v2493 = vpop.f32.mrb[0].mxu0
    %2494 = vmatprep.mubr.f32.mxu0 0.0
    %2495 = vmatmul.mubr.f32.gmra.mrb[0].mxu0 %v2399
    %v2496 = vpop.f32.mrb[0].mxu0
    %v2497 = vadd.f32 %v2385, %v2496
    %v2498 = vpop.f32.mrb[0].mxu0
    %2499 = vmatprep.mubr.f32.mxu0 0.0
    %2500 = vmatmul.mubr.f32.gmra.mrb[0].mxu0 %v2402
    %v2501 = vpop.f32.mrb[0].mxu0
    %v2502 = vadd.f32 %v2385, %v2501
    %v2503 = vpop.f32.mrb[0].mxu0
    %2504 = vmatprep.mubr.f32.mxu0 0.0
    %2505 = vmatmul.mubr.f32.gmra.mrb[0].mxu0 %v2405
    %v2506 = vpop.f32.mrb[0].mxu0
    %v2507 = vadd.f32 %v2385, %v2506
    %v2508 = vpop.f32.mrb[0].mxu0
    %2509 = vmatprep.mubr.f32.mxu0 0.0
    %2510 = vmatmul.mubr.f32.gmra.mrb[0].mxu0 %v2408
    %v2511 = vpop.f32.mrb[0].mxu0
    %v2512 = vadd.f32 %v2385, %v2511
    %v2513 = vpop.f32.mrb[0].mxu0
    %2514 = vdwg.mxu0
    %v2515 = vadd.f32 %v2477, %v2267
    %v2516 = vadd.f32 %v2482, %v2272
    %v2517 = vadd.f32 %v2487, %v2277
    %v2518 = vadd.f32 %v2492, %v2282
    %v2519 = vadd.f32 %v2497, %v2287
    %v2520 = vadd.f32 %v2502, %v2292
    %v2521 = vadd.f32 %v2507, %v2297
    %v2522 = vadd.f32 %v2512, %v2302
    %v2523 = vld [vmem:[%s3 + $0x1e0] sm:$0xff]
    %v2524 = vld [vmem:[%s3 + $0x1e8] sm:$0xff]
    %v2525 = vld [vmem:[%s3 + $0x1f0] sm:$0xff]
    %v2526 = vld [vmem:[%s3 + $0x1f8] sm:$0xff]
    %v2527 = vld [vmem:[%s3 + $0x200] sm:$0xff]
    %v2528 = vld [vmem:[%s3 + $0x208] sm:$0xff]
    %v2529 = vld [vmem:[%s3 + $0x210] sm:$0xff]
    %v2530 = vld [vmem:[%s3 + $0x218] sm:$0xff]
    %v2531 = vld [vmem:[%s3 + $0x220] sm:$0xff]
    %v2532 = vld [vmem:[%s3 + $0x228] sm:$0xff]
    %v2533 = vld [vmem:[%s3 + $0x230] sm:$0xff]
    %v2534 = vld [vmem:[%s3 + $0x238] sm:$0xff]
    %v2535 = vld [vmem:[%s3 + $0x240] sm:$0xff]
    %v2536 = vld [vmem:[%s3 + $0x248] sm:$0xff]
    %v2537 = vld [vmem:[%s3 + $0x250] sm:$0xff]
    %v2538 = vld [vmem:[%s3 + $0x258] sm:$0xff]
    %v2539 = vld [vmem:[%s3 + $0x260] sm:$0xff]
    %v2540 = vld [vmem:[%s3 + $0x268] sm:$0xff]
    %v2541 = vld [vmem:[%s3 + $0x270] sm:$0xff]
    %v2542 = vld [vmem:[%s3 + $0x278] sm:$0xff]
    %v2543 = vsel %vm346, %v2515, -inf
    %v2544 = vsel %vm346, %v2516, -inf
    %v2545 = vsel %vm346, %v2517, -inf
    %v2546 = vsel %vm346, %v2518, -inf
    %v2547 = vmax.f32 %v2543, %v2544
    %v2548 = vmax.f32 %v2545, %v2546
    %v2549 = vmax.f32 %v2547, %v2548
    %v2550 = vrot.slane %v2549, 4
    %v2551 = vmax.f32 %v2549, %v2550
    %v2552 = vrot.slane %v2551, 2
    %v2553 = vmax.f32 %v2551, %v2552
    %v2554 = vrot.slane %v2553, 1
    %v2555 = vmax.f32 %v2553, %v2554
    %v2556 = vsel %vm346, %v2519, -inf
    %v2557 = vsel %vm346, %v2520, -inf
    %v2558 = vsel %vm346, %v2521, -inf
    %v2559 = vsel %vm346, %v2522, -inf
    %v2560 = vmax.f32 %v2556, %v2557
    %v2561 = vmax.f32 %v2558, %v2559
    %v2562 = vmax.f32 %v2560, %v2561
    %v2563 = vrot.slane %v2562, 4
    %v2564 = vmax.f32 %v2562, %v2563
    %v2565 = vrot.slane %v2564, 2
    %v2566 = vmax.f32 %v2564, %v2565
    %v2567 = vrot.slane %v2566, 1
    %v2568 = vmax.f32 %v2566, %v2567
    %v2569 = vsel %vm651, %v2555, %v2568
    %v2570 = vmax.f32 %v2515, 0.0
    %v2571 = vmax.f32 %v2516, 0.0
    %v2572 = vmax.f32 %v2517, 0.0
    %v2573 = vmax.f32 %v2518, 0.0
    %v2574 = vmax.f32 %v2519, 0.0
    %v2575 = vmax.f32 %v2520, 0.0
    %v2576 = vmax.f32 %v2521, 0.0
    %v2577 = vmax.f32 %v2522, 0.0
    %v2578 = vmax.f32 %v2569, 0.0
    %v2580 = vsel %vm346, %v2578, 0
    %2582 = vmatprep.subr.mxu0 0.0
    %2583 = vmatpush1.msra.mxu0 %v2527
    %2584 = vmatprep.subr.mxu0 0.0
    %2585 = vmatpush1.msra.mxu0 %v2528
    %2586 = vmatprep.subr.mxu0 0.0
    %2587 = vmatpush1.msra.mxu0 %v2529
    %2588 = vmatprep.subr.mxu0 0.0
    %2589 = vmatpush1.msra.mxu0 %v2530
    %2590 = vmatprep.subr.mxu0 0.0
    %2591 = vmatpush1.msra.mxu0 0.0
    %2592 = vmatprep.subr.mxu0 0.0
    %2593 = vmatpush1.msra.mxu0 0.0
    %2594 = vmatprep.subr.mxu0 0.0
    %2595 = vmatpush1.msra.mxu0 0.0
    %2596 = vmatprep.subr.mxu0 0.0
    %2597 = vmatpush1.msra.mxu0 0.0
    %2598 = vmatprep.subr.mxu0 0.0
    %2599 = vmatpush1.msra.mxu0 0.0
    %2600 = vmatprep.subr.mxu0 0.0
    %2601 = vmatpush1.msra.mxu0 0.0
    %2602 = vmatprep.subr.mxu0 0.0
    %2603 = vmatpush1.msra.mxu0 0.0
    %2604 = vmatprep.subr.mxu0 0.0
    %2605 = vmatpush1.msra.mxu0 0.0
    %2606 = vmatprep.subr.mxu0 0.0
    %2607 = vmatpush1.msra.mxu0 0.0
    %2608 = vmatprep.subr.mxu0 0.0
    %2609 = vmatpush1.msra.mxu0 0.0
    %2610 = vmatprep.subr.mxu0 0.0
    %2611 = vmatpush1.msra.mxu0 0.0
    %2612 = vmatprep.subr.mxu0 0.0
    %2613 = vmatpush1.msra.mxu0 0.0
    %2614 = vmatprep.subr.mxu0 0.0
    %2615 = vmatpush1.msra.mxu0 0.0
    %2616 = vmatprep.subr.mxu0 0.0
    %2617 = vmatpush1.msra.mxu0 0.0
    %2618 = vmatprep.subr.mxu0 0.0
    %2619 = vmatpush1.msra.mxu0 0.0
    %2620 = vmatprep.subr.mxu0 0.0
    %2621 = vmatpush1.msra.mxu0 0.0
    %2622 = vmatprep.subr.mxu0 0.0
    %2623 = vmatpush1.msra.mxu0 0.0
    %2624 = vmatprep.subr.mxu0 0.0
    %2625 = vmatpush1.msra.mxu0 0.0
    %2626 = vmatprep.subr.mxu0 0.0
    %2627 = vmatpush1.msra.mxu0 0.0
    %2628 = vmatprep.subr.mxu0 0.0
    %2629 = vmatpush1.msra.mxu0 0.0
    %2630 = vmatprep.subr.mxu0 0.0
    %2631 = vmatpush1.msra.mxu0 0.0
    %2632 = vmatprep.subr.mxu0 0.0
    %2633 = vmatpush1.msra.mxu0 0.0
    %2634 = vmatprep.subr.mxu0 0.0
    %2635 = vmatpush1.msra.mxu0 0.0
    %2636 = vmatprep.subr.mxu0 0.0
    %2637 = vmatpush1.msra.mxu0 0.0
    %2638 = vmatprep.subr.mxu0 0.0
    %2639 = vmatpush1.msra.mxu0 0.0
    %2640 = vmatprep.subr.mxu0 0.0
    %2641 = vmatpush1.msra.mxu0 0.0
    %2642 = vmatprep.subr.mxu0 0.0
    %2643 = vmatpush1.msra.mxu0 0.0
    %2644 = vmatprep.subr.mxu0 0.0
    %2645 = vmatpush1.msra.mxu0 0.0
    %2646 = vmatprep.mubr.f32.mxu0 0.0
    %2647 = vmatmul.mubr.f32.gmra.mrb[0].mxu0 %v2580
    %v2648 = vpop.f32.mrb[0].mxu0
    %v2649 = vadd.f32 0.0, %v2648
    %v2650 = vpop.f32.mrb[0].mxu0
    %2651 = vdwg.mxu0
    %v2652 = vlaneseq
    %v2653 = vshrl.u32 %v2652, 7
    %v2654 = vsub.s32 0, %v2653
    %v2655 = vrot.slane %v2649, %v2654
    %v2656 = vlaneseq
    %v2657 = vshrl.u32 %v2656, 7
    %v2658 = vsub.s32 1, %v2657
    %v2659 = vrot.slane %v2649, %v2658
    %v2661 = vsel %vm346, %v2570, 0
    %v2664 = vsel %vm346, %v2571, 0
    %v2667 = vsel %vm346, %v2572, 0
    %v2670 = vsel %vm346, %v2573, 0
    %v2673 = vsel %vm346, %v2574, 0
    %v2676 = vsel %vm346, %v2575, 0
    %v2679 = vsel %vm346, %v2576, 0
    %v2682 = vsel %vm346, %v2577, 0
    %2684 = vmatprep.subr.mxu0 0.0
    %2685 = vmatpush1.msra.mxu0 %v2523
    %2686 = vmatprep.subr.mxu0 0.0
    %2687 = vmatpush1.msra.mxu0 %v2524
    %2688 = vmatprep.subr.mxu0 0.0
    %2689 = vmatpush1.msra.mxu0 %v2525
    %2690 = vmatprep.subr.mxu0 0.0
    %2691 = vmatpush1.msra.mxu0 %v2526
    %2692 = vmatprep.subr.mxu0 0.0
    %2693 = vmatpush1.msra.mxu0 0.0
    %2694 = vmatprep.subr.mxu0 0.0
    %2695 = vmatpush1.msra.mxu0 0.0
    %2696 = vmatprep.subr.mxu0 0.0
    %2697 = vmatpush1.msra.mxu0 0.0
    %2698 = vmatprep.subr.mxu0 0.0
    %2699 = vmatpush1.msra.mxu0 0.0
    %2700 = vmatprep.subr.mxu0 0.0
    %2701 = vmatpush1.msra.mxu0 0.0
    %2702 = vmatprep.subr.mxu0 0.0
    %2703 = vmatpush1.msra.mxu0 0.0
    %2704 = vmatprep.subr.mxu0 0.0
    %2705 = vmatpush1.msra.mxu0 0.0
    %2706 = vmatprep.subr.mxu0 0.0
    %2707 = vmatpush1.msra.mxu0 0.0
    %2708 = vmatprep.subr.mxu0 0.0
    %2709 = vmatpush1.msra.mxu0 0.0
    %2710 = vmatprep.subr.mxu0 0.0
    %2711 = vmatpush1.msra.mxu0 0.0
    %2712 = vmatprep.subr.mxu0 0.0
    %2713 = vmatpush1.msra.mxu0 0.0
    %2714 = vmatprep.subr.mxu0 0.0
    %2715 = vmatpush1.msra.mxu0 0.0
    %2716 = vmatprep.subr.mxu0 0.0
    %2717 = vmatpush1.msra.mxu0 0.0
    %2718 = vmatprep.subr.mxu0 0.0
    %2719 = vmatpush1.msra.mxu0 0.0
    %2720 = vmatprep.subr.mxu0 0.0
    %2721 = vmatpush1.msra.mxu0 0.0
    %2722 = vmatprep.subr.mxu0 0.0
    %2723 = vmatpush1.msra.mxu0 0.0
    %2724 = vmatprep.subr.mxu0 0.0
    %2725 = vmatpush1.msra.mxu0 0.0
    %2726 = vmatprep.subr.mxu0 0.0
    %2727 = vmatpush1.msra.mxu0 0.0
    %2728 = vmatprep.subr.mxu0 0.0
    %2729 = vmatpush1.msra.mxu0 0.0
    %2730 = vmatprep.subr.mxu0 0.0
    %2731 = vmatpush1.msra.mxu0 0.0
    %2732 = vmatprep.subr.mxu0 0.0
    %2733 = vmatpush1.msra.mxu0 0.0
    %2734 = vmatprep.subr.mxu0 0.0
    %2735 = vmatpush1.msra.mxu0 0.0
    %2736 = vmatprep.subr.mxu0 0.0
    %2737 = vmatpush1.msra.mxu0 0.0
    %2738 = vmatprep.subr.mxu0 0.0
    %2739 = vmatpush1.msra.mxu0 0.0
    %2740 = vmatprep.subr.mxu0 0.0
    %2741 = vmatpush1.msra.mxu0 0.0
    %2742 = vmatprep.subr.mxu0 0.0
    %2743 = vmatpush1.msra.mxu0 0.0
    %2744 = vmatprep.subr.mxu0 0.0
    %2745 = vmatpush1.msra.mxu0 0.0
    %2746 = vmatprep.subr.mxu0 0.0
    %2747 = vmatpush1.msra.mxu0 0.0
    %2748 = vmatprep.mubr.f32.mxu0 0.0
    %2749 = vmatmul.mubr.f32.gmra.mrb[0].mxu0 %v2661
    %v2750 = vpop.f32.mrb[0].mxu0
    %v2751 = vadd.f32 %v2655, %v2750
    %v2752 = vpop.f32.mrb[0].mxu0
    %2753 = vmatprep.mubr.f32.mxu0 0.0
    %2754 = vmatmul.mubr.f32.gmra.mrb[0].mxu0 %v2664
    %v2755 = vpop.f32.mrb[0].mxu0
    %v2756 = vadd.f32 %v2655, %v2755
    %v2757 = vpop.f32.mrb[0].mxu0
    %2758 = vmatprep.mubr.f32.mxu0 0.0
    %2759 = vmatmul.mubr.f32.gmra.mrb[0].mxu0 %v2667
    %v2760 = vpop.f32.mrb[0].mxu0
    %v2761 = vadd.f32 %v2655, %v2760
    %v2762 = vpop.f32.mrb[0].mxu0
    %2763 = vmatprep.mubr.f32.mxu0 0.0
    %2764 = vmatmul.mubr.f32.gmra.mrb[0].mxu0 %v2670
    %v2765 = vpop.f32.mrb[0].mxu0
    %v2766 = vadd.f32 %v2655, %v2765
    %v2767 = vpop.f32.mrb[0].mxu0
    %2768 = vmatprep.mubr.f32.mxu0 0.0
    %2769 = vmatmul.mubr.f32.gmra.mrb[0].mxu0 %v2673
    %v2770 = vpop.f32.mrb[0].mxu0
    %v2771 = vadd.f32 %v2659, %v2770
    %v2772 = vpop.f32.mrb[0].mxu0
    %2773 = vmatprep.mubr.f32.mxu0 0.0
    %2774 = vmatmul.mubr.f32.gmra.mrb[0].mxu0 %v2676
    %v2775 = vpop.f32.mrb[0].mxu0
    %v2776 = vadd.f32 %v2659, %v2775
    %v2777 = vpop.f32.mrb[0].mxu0
    %2778 = vmatprep.mubr.f32.mxu0 0.0
    %2779 = vmatmul.mubr.f32.gmra.mrb[0].mxu0 %v2679
    %v2780 = vpop.f32.mrb[0].mxu0
    %v2781 = vadd.f32 %v2659, %v2780
    %v2782 = vpop.f32.mrb[0].mxu0
    %2783 = vmatprep.mubr.f32.mxu0 0.0
    %2784 = vmatmul.mubr.f32.gmra.mrb[0].mxu0 %v2682
    %v2785 = vpop.f32.mrb[0].mxu0
    %v2786 = vadd.f32 %v2659, %v2785
    %v2787 = vpop.f32.mrb[0].mxu0
    %2788 = vdwg.mxu0
    %v2789 = vld [vmem:[%s4 + $0x4] sm:$0x1]
    %v2790 = vlaneseq
    %v2791 = vshrl.u32 %v2790, 7
    %v2792 = vsub.s32 0, %v2791
    %v2793 = vrot.slane %v2789, %v2792
    %v2794 = vadd.f32 %v2751, %v2793
    %v2795 = vadd.f32 %v2756, %v2793
    %v2796 = vadd.f32 %v2761, %v2793
    %v2797 = vadd.f32 %v2766, %v2793
    %v2798 = vadd.f32 %v2771, %v2793
    %v2799 = vadd.f32 %v2776, %v2793
    %v2800 = vadd.f32 %v2781, %v2793
    %v2801 = vadd.f32 %v2786, %v2793
    %v2802 = vmax.f32 %v2794, 0.0
    %v2803 = vmax.f32 %v2795, 0.0
    %v2804 = vmax.f32 %v2796, 0.0
    %v2805 = vmax.f32 %v2797, 0.0
    %v2806 = vmax.f32 %v2798, 0.0
    %v2807 = vmax.f32 %v2799, 0.0
    %v2808 = vmax.f32 %v2800, 0.0
    %v2809 = vmax.f32 %v2801, 0.0
    %v2810 = vld [vmem:[%s4 + $0x9] sm:$0x1]
    %v2811 = vlaneseq
    %v2812 = vshrl.u32 %v2811, 7
    %v2813 = vsub.s32 0, %v2812
    %v2814 = vrot.slane %v2810, %v2813
    %v2816 = vsel %vm346, %v2802, 0
    %v2819 = vsel %vm346, %v2803, 0
    %v2822 = vsel %vm346, %v2804, 0
    %v2825 = vsel %vm346, %v2805, 0
    %v2828 = vsel %vm346, %v2806, 0
    %v2831 = vsel %vm346, %v2807, 0
    %v2834 = vsel %vm346, %v2808, 0
    %v2837 = vsel %vm346, %v2809, 0
    %2839 = vmatprep.subr.mxu0 0.0
    %2840 = vmatpush1.msra.mxu0 %v2531
    %2841 = vmatprep.subr.mxu0 0.0
    %2842 = vmatpush1.msra.mxu0 %v2532
    %2843 = vmatprep.subr.mxu0 0.0
    %2844 = vmatpush1.msra.mxu0 %v2533
    %2845 = vmatprep.subr.mxu0 0.0
    %2846 = vmatpush1.msra.mxu0 %v2534
    %2847 = vmatprep.subr.mxu0 0.0
    %2848 = vmatpush1.msra.mxu0 0.0
    %2849 = vmatprep.subr.mxu0 0.0
    %2850 = vmatpush1.msra.mxu0 0.0
    %2851 = vmatprep.subr.mxu0 0.0
    %2852 = vmatpush1.msra.mxu0 0.0
    %2853 = vmatprep.subr.mxu0 0.0
    %2854 = vmatpush1.msra.mxu0 0.0
    %2855 = vmatprep.subr.mxu0 0.0
    %2856 = vmatpush1.msra.mxu0 0.0
    %2857 = vmatprep.subr.mxu0 0.0
    %2858 = vmatpush1.msra.mxu0 0.0
    %2859 = vmatprep.subr.mxu0 0.0
    %2860 = vmatpush1.msra.mxu0 0.0
    %2861 = vmatprep.subr.mxu0 0.0
    %2862 = vmatpush1.msra.mxu0 0.0
    %2863 = vmatprep.subr.mxu0 0.0
    %2864 = vmatpush1.msra.mxu0 0.0
    %2865 = vmatprep.subr.mxu0 0.0
    %2866 = vmatpush1.msra.mxu0 0.0
    %2867 = vmatprep.subr.mxu0 0.0
    %2868 = vmatpush1.msra.mxu0 0.0
    %2869 = vmatprep.subr.mxu0 0.0
    %2870 = vmatpush1.msra.mxu0 0.0
    %2871 = vmatprep.subr.mxu0 0.0
    %2872 = vmatpush1.msra.mxu0 0.0
    %2873 = vmatprep.subr.mxu0 0.0
    %2874 = vmatpush1.msra.mxu0 0.0
    %2875 = vmatprep.subr.mxu0 0.0
    %2876 = vmatpush1.msra.mxu0 0.0
    %2877 = vmatprep.subr.mxu0 0.0
    %2878 = vmatpush1.msra.mxu0 0.0
    %2879 = vmatprep.subr.mxu0 0.0
    %2880 = vmatpush1.msra.mxu0 0.0
    %2881 = vmatprep.subr.mxu0 0.0
    %2882 = vmatpush1.msra.mxu0 0.0
    %2883 = vmatprep.subr.mxu0 0.0
    %2884 = vmatpush1.msra.mxu0 0.0
    %2885 = vmatprep.subr.mxu0 0.0
    %2886 = vmatpush1.msra.mxu0 0.0
    %2887 = vmatprep.subr.mxu0 0.0
    %2888 = vmatpush1.msra.mxu0 0.0
    %2889 = vmatprep.subr.mxu0 0.0
    %2890 = vmatpush1.msra.mxu0 0.0
    %2891 = vmatprep.subr.mxu0 0.0
    %2892 = vmatpush1.msra.mxu0 0.0
    %2893 = vmatprep.subr.mxu0 0.0
    %2894 = vmatpush1.msra.mxu0 0.0
    %2895 = vmatprep.subr.mxu0 0.0
    %2896 = vmatpush1.msra.mxu0 0.0
    %2897 = vmatprep.subr.mxu0 0.0
    %2898 = vmatpush1.msra.mxu0 0.0
    %2899 = vmatprep.subr.mxu0 0.0
    %2900 = vmatpush1.msra.mxu0 0.0
    %2901 = vmatprep.subr.mxu0 0.0
    %2902 = vmatpush1.msra.mxu0 0.0
    %2903 = vmatprep.mubr.f32.mxu0 0.0
    %2904 = vmatmul.mubr.f32.gmra.mrb[0].mxu0 %v2816
    %v2905 = vpop.f32.mrb[0].mxu0
    %v2906 = vadd.f32 %v2814, %v2905
    %v2907 = vpop.f32.mrb[0].mxu0
    %2908 = vmatprep.mubr.f32.mxu0 0.0
    %2909 = vmatmul.mubr.f32.gmra.mrb[0].mxu0 %v2819
    %v2910 = vpop.f32.mrb[0].mxu0
    %v2911 = vadd.f32 %v2814, %v2910
    %v2912 = vpop.f32.mrb[0].mxu0
    %2913 = vmatprep.mubr.f32.mxu0 0.0
    %2914 = vmatmul.mubr.f32.gmra.mrb[0].mxu0 %v2822
    %v2915 = vpop.f32.mrb[0].mxu0
    %v2916 = vadd.f32 %v2814, %v2915
    %v2917 = vpop.f32.mrb[0].mxu0
    %2918 = vmatprep.mubr.f32.mxu0 0.0
    %2919 = vmatmul.mubr.f32.gmra.mrb[0].mxu0 %v2825
    %v2920 = vpop.f32.mrb[0].mxu0
    %v2921 = vadd.f32 %v2814, %v2920
    %v2922 = vpop.f32.mrb[0].mxu0
    %2923 = vmatprep.mubr.f32.mxu0 0.0
    %2924 = vmatmul.mubr.f32.gmra.mrb[0].mxu0 %v2828
    %v2925 = vpop.f32.mrb[0].mxu0
    %v2926 = vadd.f32 %v2814, %v2925
    %v2927 = vpop.f32.mrb[0].mxu0
    %2928 = vmatprep.mubr.f32.mxu0 0.0
    %2929 = vmatmul.mubr.f32.gmra.mrb[0].mxu0 %v2831
    %v2930 = vpop.f32.mrb[0].mxu0
    %v2931 = vadd.f32 %v2814, %v2930
    %v2932 = vpop.f32.mrb[0].mxu0
    %2933 = vmatprep.mubr.f32.mxu0 0.0
    %2934 = vmatmul.mubr.f32.gmra.mrb[0].mxu0 %v2834
    %v2935 = vpop.f32.mrb[0].mxu0
    %v2936 = vadd.f32 %v2814, %v2935
    %v2937 = vpop.f32.mrb[0].mxu0
    %2938 = vmatprep.mubr.f32.mxu0 0.0
    %2939 = vmatmul.mubr.f32.gmra.mrb[0].mxu0 %v2837
    %v2940 = vpop.f32.mrb[0].mxu0
    %v2941 = vadd.f32 %v2814, %v2940
    %v2942 = vpop.f32.mrb[0].mxu0
    %2943 = vdwg.mxu0
    %v2945 = vsel %vm346, %v2569, 0
    %2947 = vmatprep.subr.mxu0 0.0
    %2948 = vmatpush1.msra.mxu0 %v2539
    %2949 = vmatprep.subr.mxu0 0.0
    %2950 = vmatpush1.msra.mxu0 %v2540
    %2951 = vmatprep.subr.mxu0 0.0
    %2952 = vmatpush1.msra.mxu0 %v2541
    %2953 = vmatprep.subr.mxu0 0.0
    %2954 = vmatpush1.msra.mxu0 %v2542
    %2955 = vmatprep.subr.mxu0 0.0
    %2956 = vmatpush1.msra.mxu0 0.0
    %2957 = vmatprep.subr.mxu0 0.0
    %2958 = vmatpush1.msra.mxu0 0.0
    %2959 = vmatprep.subr.mxu0 0.0
    %2960 = vmatpush1.msra.mxu0 0.0
    %2961 = vmatprep.subr.mxu0 0.0
    %2962 = vmatpush1.msra.mxu0 0.0
    %2963 = vmatprep.subr.mxu0 0.0
    %2964 = vmatpush1.msra.mxu0 0.0
    %2965 = vmatprep.subr.mxu0 0.0
    %2966 = vmatpush1.msra.mxu0 0.0
    %2967 = vmatprep.subr.mxu0 0.0
    %2968 = vmatpush1.msra.mxu0 0.0
    %2969 = vmatprep.subr.mxu0 0.0
    %2970 = vmatpush1.msra.mxu0 0.0
    %2971 = vmatprep.subr.mxu0 0.0
    %2972 = vmatpush1.msra.mxu0 0.0
    %2973 = vmatprep.subr.mxu0 0.0
    %2974 = vmatpush1.msra.mxu0 0.0
    %2975 = vmatprep.subr.mxu0 0.0
    %2976 = vmatpush1.msra.mxu0 0.0
    %2977 = vmatprep.subr.mxu0 0.0
    %2978 = vmatpush1.msra.mxu0 0.0
    %2979 = vmatprep.subr.mxu0 0.0
    %2980 = vmatpush1.msra.mxu0 0.0
    %2981 = vmatprep.subr.mxu0 0.0
    %2982 = vmatpush1.msra.mxu0 0.0
    %2983 = vmatprep.subr.mxu0 0.0
    %2984 = vmatpush1.msra.mxu0 0.0
    %2985 = vmatprep.subr.mxu0 0.0
    %2986 = vmatpush1.msra.mxu0 0.0
    %2987 = vmatprep.subr.mxu0 0.0
    %2988 = vmatpush1.msra.mxu0 0.0
    %2989 = vmatprep.subr.mxu0 0.0
    %2990 = vmatpush1.msra.mxu0 0.0
    %2991 = vmatprep.subr.mxu0 0.0
    %2992 = vmatpush1.msra.mxu0 0.0
    %2993 = vmatprep.subr.mxu0 0.0
    %2994 = vmatpush1.msra.mxu0 0.0
    %2995 = vmatprep.subr.mxu0 0.0
    %2996 = vmatpush1.msra.mxu0 0.0
    %2997 = vmatprep.subr.mxu0 0.0
    %2998 = vmatpush1.msra.mxu0 0.0
    %2999 = vmatprep.subr.mxu0 0.0
    %3000 = vmatpush1.msra.mxu0 0.0
    %3001 = vmatprep.subr.mxu0 0.0
    %3002 = vmatpush1.msra.mxu0 0.0
    %3003 = vmatprep.subr.mxu0 0.0
    %3004 = vmatpush1.msra.mxu0 0.0
    %3005 = vmatprep.subr.mxu0 0.0
    %3006 = vmatpush1.msra.mxu0 0.0
    %3007 = vmatprep.subr.mxu0 0.0
    %3008 = vmatpush1.msra.mxu0 0.0
    %3009 = vmatprep.subr.mxu0 0.0
    %3010 = vmatpush1.msra.mxu0 0.0
    %3011 = vmatprep.mubr.f32.mxu0 0.0
    %3012 = vmatmul.mubr.f32.gmra.mrb[0].mxu0 %v2945
    %v3013 = vpop.f32.mrb[0].mxu0
    %v3014 = vadd.f32 0.0, %v3013
    %v3015 = vpop.f32.mrb[0].mxu0
    %3016 = vdwg.mxu0
    %v3017 = vlaneseq
    %v3018 = vshrl.u32 %v3017, 7
    %v3019 = vsub.s32 0, %v3018
    %v3020 = vrot.slane %v3014, %v3019
    %v3021 = vlaneseq
    %v3022 = vshrl.u32 %v3021, 7
    %v3023 = vsub.s32 1, %v3022
    %v3024 = vrot.slane %v3014, %v3023
    %v3026 = vsel %vm346, %v2515, 0
    %v3029 = vsel %vm346, %v2516, 0
    %v3032 = vsel %vm346, %v2517, 0
    %v3035 = vsel %vm346, %v2518, 0
    %v3038 = vsel %vm346, %v2519, 0
    %v3041 = vsel %vm346, %v2520, 0
    %v3044 = vsel %vm346, %v2521, 0
    %v3047 = vsel %vm346, %v2522, 0
    %3049 = vmatprep.subr.mxu0 0.0
    %3050 = vmatpush1.msra.mxu0 %v2535
    %3051 = vmatprep.subr.mxu0 0.0
    %3052 = vmatpush1.msra.mxu0 %v2536
    %3053 = vmatprep.subr.mxu0 0.0
    %3054 = vmatpush1.msra.mxu0 %v2537
    %3055 = vmatprep.subr.mxu0 0.0
    %3056 = vmatpush1.msra.mxu0 %v2538
    %3057 = vmatprep.subr.mxu0 0.0
    %3058 = vmatpush1.msra.mxu0 0.0
    %3059 = vmatprep.subr.mxu0 0.0
    %3060 = vmatpush1.msra.mxu0 0.0
    %3061 = vmatprep.subr.mxu0 0.0
    %3062 = vmatpush1.msra.mxu0 0.0
    %3063 = vmatprep.subr.mxu0 0.0
    %3064 = vmatpush1.msra.mxu0 0.0
    %3065 = vmatprep.subr.mxu0 0.0
    %3066 = vmatpush1.msra.mxu0 0.0
    %3067 = vmatprep.subr.mxu0 0.0
    %3068 = vmatpush1.msra.mxu0 0.0
    %3069 = vmatprep.subr.mxu0 0.0
    %3070 = vmatpush1.msra.mxu0 0.0
    %3071 = vmatprep.subr.mxu0 0.0
    %3072 = vmatpush1.msra.mxu0 0.0
    %3073 = vmatprep.subr.mxu0 0.0
    %3074 = vmatpush1.msra.mxu0 0.0
    %3075 = vmatprep.subr.mxu0 0.0
    %3076 = vmatpush1.msra.mxu0 0.0
    %3077 = vmatprep.subr.mxu0 0.0
    %3078 = vmatpush1.msra.mxu0 0.0
    %3079 = vmatprep.subr.mxu0 0.0
    %3080 = vmatpush1.msra.mxu0 0.0
    %3081 = vmatprep.subr.mxu0 0.0
    %3082 = vmatpush1.msra.mxu0 0.0
    %3083 = vmatprep.subr.mxu0 0.0
    %3084 = vmatpush1.msra.mxu0 0.0
    %3085 = vmatprep.subr.mxu0 0.0
    %3086 = vmatpush1.msra.mxu0 0.0
    %3087 = vmatprep.subr.mxu0 0.0
    %3088 = vmatpush1.msra.mxu0 0.0
    %3089 = vmatprep.subr.mxu0 0.0
    %3090 = vmatpush1.msra.mxu0 0.0
    %3091 = vmatprep.subr.mxu0 0.0
    %3092 = vmatpush1.msra.mxu0 0.0
    %3093 = vmatprep.subr.mxu0 0.0
    %3094 = vmatpush1.msra.mxu0 0.0
    %3095 = vmatprep.subr.mxu0 0.0
    %3096 = vmatpush1.msra.mxu0 0.0
    %3097 = vmatprep.subr.mxu0 0.0
    %3098 = vmatpush1.msra.mxu0 0.0
    %3099 = vmatprep.subr.mxu0 0.0
    %3100 = vmatpush1.msra.mxu0 0.0
    %3101 = vmatprep.subr.mxu0 0.0
    %3102 = vmatpush1.msra.mxu0 0.0
    %3103 = vmatprep.subr.mxu0 0.0
    %3104 = vmatpush1.msra.mxu0 0.0
    %3105 = vmatprep.subr.mxu0 0.0
    %3106 = vmatpush1.msra.mxu0 0.0
    %3107 = vmatprep.subr.mxu0 0.0
    %3108 = vmatpush1.msra.mxu0 0.0
    %3109 = vmatprep.subr.mxu0 0.0
    %3110 = vmatpush1.msra.mxu0 0.0
    %3111 = vmatprep.subr.mxu0 0.0
    %3112 = vmatpush1.msra.mxu0 0.0
    %3113 = vmatprep.mubr.f32.mxu0 0.0
    %3114 = vmatmul.mubr.f32.gmra.mrb[0].mxu0 %v3026
    %v3115 = vpop.f32.mrb[0].mxu0
    %v3116 = vadd.f32 %v3020, %v3115
    %v3117 = vpop.f32.mrb[0].mxu0
    %3118 = vmatprep.mubr.f32.mxu0 0.0
    %3119 = vmatmul.mubr.f32.gmra.mrb[0].mxu0 %v3029
    %v3120 = vpop.f32.mrb[0].mxu0
    %v3121 = vadd.f32 %v3020, %v3120
    %v3122 = vpop.f32.mrb[0].mxu0
    %3123 = vmatprep.mubr.f32.mxu0 0.0
    %3124 = vmatmul.mubr.f32.gmra.mrb[0].mxu0 %v3032
    %v3125 = vpop.f32.mrb[0].mxu0
    %v3126 = vadd.f32 %v3020, %v3125
    %v3127 = vpop.f32.mrb[0].mxu0
    %3128 = vmatprep.mubr.f32.mxu0 0.0
    %3129 = vmatmul.mubr.f32.gmra.mrb[0].mxu0 %v3035
    %v3130 = vpop.f32.mrb[0].mxu0
    %v3131 = vadd.f32 %v3020, %v3130
    %v3132 = vpop.f32.mrb[0].mxu0
    %3133 = vmatprep.mubr.f32.mxu0 0.0
    %3134 = vmatmul.mubr.f32.gmra.mrb[0].mxu0 %v3038
    %v3135 = vpop.f32.mrb[0].mxu0
    %v3136 = vadd.f32 %v3024, %v3135
    %v3137 = vpop.f32.mrb[0].mxu0
    %3138 = vmatprep.mubr.f32.mxu0 0.0
    %3139 = vmatmul.mubr.f32.gmra.mrb[0].mxu0 %v3041
    %v3140 = vpop.f32.mrb[0].mxu0
    %v3141 = vadd.f32 %v3024, %v3140
    %v3142 = vpop.f32.mrb[0].mxu0
    %3143 = vmatprep.mubr.f32.mxu0 0.0
    %3144 = vmatmul.mubr.f32.gmra.mrb[0].mxu0 %v3044
    %v3145 = vpop.f32.mrb[0].mxu0
    %v3146 = vadd.f32 %v3024, %v3145
    %v3147 = vpop.f32.mrb[0].mxu0
    %3148 = vmatprep.mubr.f32.mxu0 0.0
    %3149 = vmatmul.mubr.f32.gmra.mrb[0].mxu0 %v3047
    %v3150 = vpop.f32.mrb[0].mxu0
    %v3151 = vadd.f32 %v3024, %v3150
    %v3152 = vpop.f32.mrb[0].mxu0
    %3153 = vdwg.mxu0
    %v3154 = vadd.f32 %v3116, %v2906
    %v3155 = vadd.f32 %v3121, %v2911
    %v3156 = vadd.f32 %v3126, %v2916
    %v3157 = vadd.f32 %v3131, %v2921
    %v3158 = vadd.f32 %v3136, %v2926
    %v3159 = vadd.f32 %v3141, %v2931
    %v3160 = vadd.f32 %v3146, %v2936
    %v3161 = vadd.f32 %v3151, %v2941
    %v3162 = vsel %vm346, %v3154, -inf
    %v3163 = vsel %vm346, %v3155, -inf
    %v3164 = vsel %vm346, %v3156, -inf
    %v3165 = vsel %vm346, %v3157, -inf
    %v3166 = vmax.f32 %v3162, %v3163
    %v3167 = vmax.f32 %v3164, %v3165
    %v3168 = vmax.f32 %v3166, %v3167
    %v3169 = vrot.slane %v3168, 4
    %v3170 = vmax.f32 %v3168, %v3169
    %v3171 = vrot.slane %v3170, 2
    %v3172 = vmax.f32 %v3170, %v3171
    %v3173 = vrot.slane %v3172, 1
    %v3174 = vmax.f32 %v3172, %v3173
    %v3175 = vsel %vm346, %v3158, -inf
    %v3176 = vsel %vm346, %v3159, -inf
    %v3177 = vsel %vm346, %v3160, -inf
    %v3178 = vsel %vm346, %v3161, -inf
    %v3179 = vmax.f32 %v3175, %v3176
    %v3180 = vmax.f32 %v3177, %v3178
    %v3181 = vmax.f32 %v3179, %v3180
    %v3182 = vrot.slane %v3181, 4
    %v3183 = vmax.f32 %v3181, %v3182
    %v3184 = vrot.slane %v3183, 2
    %v3185 = vmax.f32 %v3183, %v3184
    %v3186 = vrot.slane %v3185, 1
    %v3187 = vmax.f32 %v3185, %v3186
    %v3188 = vsel %vm651, %v3174, %v3187
    %v3189 = vmax.f32 %v3188, 0.0
    %v3190 = vld [vmem:[%s5] sm:$0xff]
    %v3191 = vld [vmem:[%s5 + $0x8] sm:$0xff]
    %v3192 = vld [vmem:[%s5 + $0x10] sm:$0xff]
    %v3193 = vld [vmem:[%s5 + $0x18] sm:$0xff]
    %v3194 = vld [vmem:[%s6] sm:$0x1]
    %v3196 = vlaneseq
    %v3197 = vshrl.u32 %v3196, 7
    %v3198 = vsub.s32 0, %v3197
    %v3199 = vrot.slane %v3194, %v3198
    %v3202 = vsel %vm346, %v3189, 0
    %3204 = vmatprep.subr.mxu0 0.0
    %3205 = vmatpush1.msra.mxu0 %v3190
    %3206 = vmatprep.subr.mxu0 0.0
    %3207 = vmatpush1.msra.mxu0 %v3191
    %3208 = vmatprep.subr.mxu0 0.0
    %3209 = vmatpush1.msra.mxu0 %v3192
    %3210 = vmatprep.subr.mxu0 0.0
    %3211 = vmatpush1.msra.mxu0 %v3193
    %3212 = vmatprep.subr.mxu0 0.0
    %3213 = vmatpush1.msra.mxu0 0.0
    %3214 = vmatprep.subr.mxu0 0.0
    %3215 = vmatpush1.msra.mxu0 0.0
    %3216 = vmatprep.subr.mxu0 0.0
    %3217 = vmatpush1.msra.mxu0 0.0
    %3218 = vmatprep.subr.mxu0 0.0
    %3219 = vmatpush1.msra.mxu0 0.0
    %3220 = vmatprep.subr.mxu0 0.0
    %3221 = vmatpush1.msra.mxu0 0.0
    %3222 = vmatprep.subr.mxu0 0.0
    %3223 = vmatpush1.msra.mxu0 0.0
    %3224 = vmatprep.subr.mxu0 0.0
    %3225 = vmatpush1.msra.mxu0 0.0
    %3226 = vmatprep.subr.mxu0 0.0
    %3227 = vmatpush1.msra.mxu0 0.0
    %3228 = vmatprep.subr.mxu0 0.0
    %3229 = vmatpush1.msra.mxu0 0.0
    %3230 = vmatprep.subr.mxu0 0.0
    %3231 = vmatpush1.msra.mxu0 0.0
    %3232 = vmatprep.subr.mxu0 0.0
    %3233 = vmatpush1.msra.mxu0 0.0
    %3234 = vmatprep.subr.mxu0 0.0
    %3235 = vmatpush1.msra.mxu0 0.0
    %3236 = vmatprep.subr.mxu0 0.0
    %3237 = vmatpush1.msra.mxu0 0.0
    %3238 = vmatprep.subr.mxu0 0.0
    %3239 = vmatpush1.msra.mxu0 0.0
    %3240 = vmatprep.subr.mxu0 0.0
    %3241 = vmatpush1.msra.mxu0 0.0
    %3242 = vmatprep.subr.mxu0 0.0
    %3243 = vmatpush1.msra.mxu0 0.0
    %3244 = vmatprep.subr.mxu0 0.0
    %3245 = vmatpush1.msra.mxu0 0.0
    %3246 = vmatprep.subr.mxu0 0.0
    %3247 = vmatpush1.msra.mxu0 0.0
    %3248 = vmatprep.subr.mxu0 0.0
    %3249 = vmatpush1.msra.mxu0 0.0
    %3250 = vmatprep.subr.mxu0 0.0
    %3251 = vmatpush1.msra.mxu0 0.0
    %3252 = vmatprep.subr.mxu0 0.0
    %3253 = vmatpush1.msra.mxu0 0.0
    %3254 = vmatprep.subr.mxu0 0.0
    %3255 = vmatpush1.msra.mxu0 0.0
    %3256 = vmatprep.subr.mxu0 0.0
    %3257 = vmatpush1.msra.mxu0 0.0
    %3258 = vmatprep.subr.mxu0 0.0
    %3259 = vmatpush1.msra.mxu0 0.0
    %3260 = vmatprep.subr.mxu0 0.0
    %3261 = vmatpush1.msra.mxu0 0.0
    %3262 = vmatprep.subr.mxu0 0.0
    %3263 = vmatpush1.msra.mxu0 0.0
    %3264 = vmatprep.subr.mxu0 0.0
    %3265 = vmatpush1.msra.mxu0 0.0
    %3266 = vmatprep.subr.mxu0 0.0
    %3267 = vmatpush1.msra.mxu0 0.0
    %3268 = vmatprep.mubr.f32.mxu0 0.0
    %3269 = vmatmul.mubr.f32.gmra.mrb[0].mxu0 %v3202
    %v3270 = vpop.f32.mrb[0].mxu0
    %v3271 = vadd.f32 %v3199, %v3270
    %v3272 = vpop.f32.mrb[0].mxu0
    %3273 = vdwg.mxu0
    %vm3274 = vcmask 123904
    %3275 = vst.msk [vmem:[#allocation2] sm:$0x3] %vm3274, %v3271
    // Predicated region
    $region30: #{tpu_custom_call.1} parent=1 // pred_check
      _
    $region31: #{tpu_custom_call.1} parent=1 // pred_check_branch
      %3277 = sbr.rel (0) target = $region33
    $region32: #{tpu_custom_call.1} parent=1 // pred_region
      %s3279 = ssub.s32 32, 32
      %3280 = vsyncadd [#allocation3], %s3279
      %s3282 = sshll.u32 [#allocation2], 4
      %s3283 = int_to_ptr.vmem [resolvable:$true] %s3282
      %3285 = dma.vmem_to_hbm [thread:$0]  %s3283, 32, %s7, [#allocation3]
    $region33: #{tpu_custom_call.1} parent=1 // pred_fallthru
      _
    // Predicated region
    $region34: #{tpu_custom_call.1} parent=1 // pred_check
      _
    $region35: #{tpu_custom_call.1} parent=1 // pred_check_branch
      %3287 = sbr.rel (0) target = $region37
    $region36: #{tpu_custom_call.1} parent=1 // pred_region
      %3288 = dma.done [#allocation3], 32
    $region37: #{tpu_custom_call.1} parent=1 // pred_fallthru
      _
    %3289 = vsyncpa [#allocation3], 1

</llo_original>
